<compile_context>
chip_gen: v7x
topology: tpu7x:2x2x1
jax: 0.10.0
libtpu: 0.0.40
codegen_flags: <defaults>
</compile_context>

<pallas_src>
import jax
import jax.numpy as jnp
from jax import lax
from jax.experimental import pallas as pl
from jax.experimental.pallas import tpu as pltpu


def make_kernel(n_layers, seq, batch, bp, vocab, emb_dim, hidden):
    H = hidden
    SB = seq * bp  # time-major rows, batch padded to bp

    def kernel(*refs):
        tok_ref, table_ref = refs[0], refs[1]
        layer_refs = refs[2:2 + 3 * n_layers]
        fc1_wT_ref, fc1_b_ref, fc2_wT_ref, fc2_b_ref = \
            refs[2 + 3 * n_layers: 2 + 3 * n_layers + 4]
        out_ref = refs[2 + 3 * n_layers + 4]
        xproj_ref, lo_ref = refs[2 + 3 * n_layers + 5:]

        # ---- embedding: single fused one-hot matmul over all (time, batch) rows ----
        # (out-of-range token ids map to the zero embedding; reference assumes in-range)
        tok = tok_ref[...]                                                 # (SB, 1) int32
        onehot = (tok == lax.broadcasted_iota(jnp.int32, (SB, vocab), 1)
                  ).astype(jnp.float32)                                    # (SB, vocab)
        layer_in = jnp.dot(onehot, table_ref[...],
                           preferred_element_type=jnp.float32)             # (SB, emb)

        h_packed = None
        for l in range(n_layers):
            w_ih_cat = layer_refs[3 * l][...]      # (in_dim, 8H)  [fwd gates | bwd gates]
            w_hh_blk = layer_refs[3 * l + 1][...]  # (2H, 8H)      block-diag fwd/bwd
            b_cat = layer_refs[3 * l + 2][...]     # (1, 8H)

            # one MXU pass: input projection for every timestep, both directions,
            # with the (combined) bias folded in here instead of per step.
            xproj_ref[...] = (jnp.dot(layer_in, w_ih_cat,
                                      preferred_element_type=jnp.float32)
                              + b_cat)                                     # (SB, 8H)

            def step(t, carry, w_hh_blk=w_hh_blk):
                h_packed, c_f, c_b = carry
                toff = pl.multiple_of(t * bp, bp)
                tboff = pl.multiple_of((seq - 1 - t) * bp, bp)

                # fused recurrent projection for both directions (block-diag weight):
                # one MXU push per timestep.
                rdot = jnp.dot(h_packed, w_hh_blk,
                               preferred_element_type=jnp.float32)          # (bp, 8H)

                # 128-lane-aligned halves; pure VPU adds, no packing.
                gates_f = rdot[:, 0:4 * H] + xproj_ref[pl.ds(toff, bp), 0:4 * H]
                gates_b = rdot[:, 4 * H:8 * H] + xproj_ref[pl.ds(tboff, bp), 4 * H:8 * H]

                sig_f = jax.nn.sigmoid(gates_f)                             # (bp, 4H)
                sig_b = jax.nn.sigmoid(gates_b)                             # (bp, 4H)
                g_f = jnp.tanh(gates_f[:, 2 * H:3 * H])                     # (bp, H)
                g_b = jnp.tanh(gates_b[:, 2 * H:3 * H])                     # (bp, H)

                # PyTorch gate order i, f, g, o
                c_f_new = sig_f[:, H:2 * H] * c_f + sig_f[:, 0:H] * g_f
                c_b_new = sig_b[:, H:2 * H] * c_b + sig_b[:, 0:H] * g_b
                h_f_new = sig_f[:, 3 * H:4 * H] * jnp.tanh(c_f_new)
                h_b_new = sig_b[:, 3 * H:4 * H] * jnp.tanh(c_b_new)

                # per-timestep layer outputs (next layer's input), single buffer:
                # fwd half at time t, bwd half at time seq-1-t.
                lo_ref[pl.ds(toff, bp), 0:H] = h_f_new
                lo_ref[pl.ds(tboff, bp), H:2 * H] = h_b_new

                # the only lane pack left per step: new packed hidden carry.
                h_packed_new = jnp.concatenate([h_f_new, h_b_new], axis=1)  # (bp, 2H)
                return (h_packed_new, c_f_new, c_b_new)

            zeros_h = jnp.zeros((bp, 2 * H), jnp.float32)
            zeros_c = jnp.zeros((bp, H), jnp.float32)
            h_packed, _, _ = lax.fori_loop(
                0, seq, step, (zeros_h, zeros_c, zeros_c), unroll=True)

            if l + 1 < n_layers:
                layer_in = lo_ref[...]                                      # (SB, 2H)

        # torch.cat((hidden[-2], hidden[-1]), dim=1) == [final fwd h | final bwd h]
        # == h_packed, already in packed layout: no concat needed.
        y = jnp.dot(h_packed, fc1_wT_ref[...],
                    preferred_element_type=jnp.float32) + fc1_b_ref[...]
        y = jnp.maximum(y, 0.0)
        z = jnp.dot(y, fc2_wT_ref[...],
                    preferred_element_type=jnp.float32) + fc2_b_ref[...]
        out_ref[...] = jax.nn.sigmoid(z)[:batch, :]

    return kernel


def init_params(key, vocab, emb_dim, n_layers, hidden):
    """Deterministic parameter init (PyTorch-style uniform ranges)."""
    params = {}
    key, k_emb = jax.random.split(key)
    params["emb"] = jax.random.normal(k_emb, (vocab, emb_dim), jnp.float32)

    k_lstm = 1.0 / jnp.sqrt(hidden).astype(jnp.float32)
    params["lstm"] = []
    for l in range(n_layers):
        in_dim = emb_dim if l == 0 else 2 * hidden
        for _d in range(2):  # fwd, bwd
            key, k1, k2, k3, k4 = jax.random.split(key, 5)
            w_ih = jax.random.uniform(k1, (4 * hidden, in_dim), jnp.float32, -k_lstm, k_lstm)
            w_hh = jax.random.uniform(k2, (4 * hidden, hidden), jnp.float32, -k_lstm, k_lstm)
            b_ih = jax.random.uniform(k3, (4 * hidden,), jnp.float32, -k_lstm, k_lstm)
            b_hh = jax.random.uniform(k4, (4 * hidden,), jnp.float32, -k_lstm, k_lstm)
            params["lstm"].append((w_ih, w_hh, b_ih, b_hh))

    k1v = 1.0 / jnp.sqrt(2 * hidden).astype(jnp.float32)
    key, ka, kb = jax.random.split(key, 3)
    params["fc1_w"] = jax.random.uniform(ka, (5, 2 * hidden), jnp.float32, -k1v, k1v)
    params["fc1_b"] = jax.random.uniform(kb, (5,), jnp.float32, -k1v, k1v)
    k2v = 1.0 / jnp.sqrt(5.0)
    key, kc, kd = jax.random.split(key, 3)
    params["fc2_w"] = jax.random.uniform(kc, (1, 5), jnp.float32, -k2v, k2v)
    params["fc2_b"] = jax.random.uniform(kd, (1,), jnp.float32, -k2v, k2v)
    return params


def lang_detect_pallas(tokens, params, *, n_layers, hidden):
    batch, seq = tokens.shape
    vocab, emb_dim = params["emb"].shape
    H = hidden
    bp = ((batch + 7) // 8) * 8     # pad batch to a full sublane group
    SB = seq * bp

    # time-major, batch-padded token ids -> (seq*bp, 1)
    tok_tm = jnp.zeros((seq, bp), jnp.int32).at[:, :batch].set(tokens.astype(jnp.int32).T)
    tok_tm = tok_tm.reshape(SB, 1)

    inputs = [tok_tm, params["emb"]]
    for l in range(n_layers):
        w_ih_f, w_hh_f, b_ih_f, b_hh_f = params["lstm"][2 * l]
        w_ih_b, w_hh_b, b_ih_b, b_hh_b = params["lstm"][2 * l + 1]
        # fused input-projection weight: (in_dim, 8H) = [fwd gates | bwd gates]
        w_ih_cat = jnp.concatenate([w_ih_f.T, w_ih_b.T], axis=1)
        # block-diagonal recurrent weight: (2H, 8H)
        w_hh_blk = jnp.zeros((2 * H, 8 * H), jnp.float32)
        w_hh_blk = w_hh_blk.at[:H, :4 * H].set(w_hh_f.T)
        w_hh_blk = w_hh_blk.at[H:, 4 * H:].set(w_hh_b.T)
        b_cat = jnp.concatenate([b_ih_f + b_hh_f, b_ih_b + b_hh_b]).reshape(1, 8 * H)
        inputs += [w_ih_cat, w_hh_blk, b_cat]
    inputs += [params["fc1_w"].T, params["fc1_b"].reshape(1, -1),
               params["fc2_w"].T, params["fc2_b"].reshape(1, -1)]

    kernel = make_kernel(n_layers, seq, batch, bp, vocab, emb_dim, H)
    vmem = pl.BlockSpec(memory_space=pltpu.MemorySpace.VMEM)
    # Everything (weights + activations + scratch) is ~hundreds of KB: keep it fully
    # VMEM-resident, no grid / pipelining needed at this size.
    # TODO(synk): at production batch sizes, add a batch-tile grid axis with
    # dimension_semantics=("parallel",) so v7x's second TensorCore is used, and size
    # the per-tile scratch (seq*bp*10H*4 B + weights) against v7x's 64 MiB VMEM.
    return pl.pallas_call(
        kernel,
        out_shape=jax.ShapeDtypeStruct((batch, 1), jnp.float32),
        in_specs=[vmem] * len(inputs),
        out_specs=vmem,
        scratch_shapes=[
            pltpu.VMEM((SB, 8 * H), jnp.float32),   # fused input projections (both dirs, bias folded)
            pltpu.VMEM((SB, 2 * H), jnp.float32),   # per-timestep layer outputs [fwd | bwd]
        ],
    )(*inputs)


def lang_detect_reference(tokens, params, *, n_layers, hidden):
    """Pure-JAX reference mirroring the PyTorch forward pass."""
    H = hidden
    x = params["emb"][tokens]                     # (batch, seq, emb)
    batch, seq, _ = x.shape
    seq_in = [x[:, t, :] for t in range(seq)]

    def cell(x_t, h, c, w_ih, w_hh, b_ih, b_hh):
        gates = x_t @ w_ih.T + h @ w_hh.T + b_ih + b_hh
        i = jax.nn.sigmoid(gates[:, 0 * H:1 * H])
        f = jax.nn.sigmoid(gates[:, 1 * H:2 * H])
        g = jnp.tanh(gates[:, 2 * H:3 * H])
        o = jax.nn.sigmoid(gates[:, 3 * H:4 * H])
        c = f * c + i * g
        return o * jnp.tanh(c), c

    idx = 0
    h_f = h_b = None
    for _l in range(n_layers):
        w_ih, w_hh, b_ih, b_hh = params["lstm"][idx]; idx += 1
        h = c = jnp.zeros((batch, H), jnp.float32)
        of = []
        for t in range(seq):
            h, c = cell(seq_in[t], h, c, w_ih, w_hh, b_ih, b_hh)
            of.append(h)
        h_f = h
        w_ih, w_hh, b_ih, b_hh = params["lstm"][idx]; idx += 1
        h = c = jnp.zeros((batch, H), jnp.float32)
        ob = [None] * seq
        for t in reversed(range(seq)):
            h, c = cell(seq_in[t], h, c, w_ih, w_hh, b_ih, b_hh)
            ob[t] = h
        h_b = h
        seq_in = [jnp.concatenate([of[t], ob[t]], axis=1) for t in range(seq)]

    hid = jnp.concatenate([h_f, h_b], axis=1)
    y = jnp.maximum(hid @ params["fc1_w"].T + params["fc1_b"], 0.0)
    z = y @ params["fc2_w"].T + params["fc2_b"]
    return jax.nn.sigmoid(z)


if __name__ == "__main__":
    vocab, emb_dim, n_layers, hidden = 32, 16, 2, 32
    batch, seq = 2, 8

    key = jax.random.PRNGKey(0)
    key, k_tok = jax.random.split(key)
    tokens = jax.random.randint(k_tok, (batch, seq), 0, vocab, dtype=jnp.int32)
    params = init_params(key, vocab, emb_dim, n_layers, hidden)

    out = lang_detect_pallas(tokens, params, n_layers=n_layers, hidden=hidden)
    out = jax.block_until_ready(out)

    ref = lang_detect_reference(tokens, params, n_layers=n_layers, hidden=hidden)
    assert out.shape == (batch, 1)
    assert jnp.allclose(out, ref, atol=1e-5, rtol=1e-5), (out, ref)
    print("KERNEL_OK")
</pallas_src>

<mosaic_0001>
module attributes {stable_mosaic.version = 11 : i64} {
  func.func @kernel(%arg0: memref<64x1xi32, #tpu.memory_space<vmem>>, %arg1: memref<32x16xf32, #tpu.memory_space<vmem>>, %arg2: memref<16x256xf32, #tpu.memory_space<vmem>>, %arg3: memref<64x256xf32, #tpu.memory_space<vmem>>, %arg4: memref<1x256xf32, #tpu.memory_space<vmem>>, %arg5: memref<64x256xf32, #tpu.memory_space<vmem>>, %arg6: memref<64x256xf32, #tpu.memory_space<vmem>>, %arg7: memref<1x256xf32, #tpu.memory_space<vmem>>, %arg8: memref<64x5xf32, #tpu.memory_space<vmem>>, %arg9: memref<1x5xf32, #tpu.memory_space<vmem>>, %arg10: memref<5x1xf32, #tpu.memory_space<vmem>>, %arg11: memref<1x1xf32, #tpu.memory_space<vmem>>, %arg12: memref<2x1xf32, #tpu.memory_space<vmem>>, %arg13: memref<64x256xf32, #tpu.memory_space<vmem>>, %arg14: memref<64x64xf32, #tpu.memory_space<vmem>>) attributes {dimension_semantics = [], scalar_prefetch = 0 : i64, scratch_operands = 2 : i64, tpu.core_type = #tpu.core_type<tc>} {
    %c0 = arith.constant 0 : index
    %c0_0 = arith.constant 0 : index
    %0 = vector.load %arg0[%c0, %c0_0] : memref<64x1xi32, #tpu.memory_space<vmem>>, vector<64x1xi32>
    %1 = tpu.iota {dimensions = array<i32: 1>} : vector<64x32xi32>
    %2 = vector.broadcast %0 : vector<64x1xi32> to vector<64x32xi32>
    %3 = arith.cmpi eq, %2, %1 : vector<64x32xi32>
    %4 = arith.extui %3 : vector<64x32xi1> to vector<64x32xi32>
    %5 = arith.sitofp %4 : vector<64x32xi32> to vector<64x32xf32>
    %c0_1 = arith.constant 0 : index
    %c0_2 = arith.constant 0 : index
    %6 = vector.load %arg1[%c0_1, %c0_2] : memref<32x16xf32, #tpu.memory_space<vmem>>, vector<32x16xf32>
    %cst = arith.constant dense<0.000000e+00> : vector<64x16xf32>
    %7 = tpu.matmul %5, %6, %cst {dimension_numbers = #tpu.dot_dimension_numbers<[1], [0], [0], [1], [0, 0, 1, 1], [], []>} : vector<64x32xf32>, vector<32x16xf32>, vector<64x16xf32> -> vector<64x16xf32>
    %c0_3 = arith.constant 0 : index
    %c0_4 = arith.constant 0 : index
    %8 = vector.load %arg2[%c0_3, %c0_4] : memref<16x256xf32, #tpu.memory_space<vmem>>, vector<16x256xf32>
    %c0_5 = arith.constant 0 : index
    %c0_6 = arith.constant 0 : index
    %9 = vector.load %arg3[%c0_5, %c0_6] : memref<64x256xf32, #tpu.memory_space<vmem>>, vector<64x256xf32>
    %c0_7 = arith.constant 0 : index
    %c0_8 = arith.constant 0 : index
    %10 = vector.load %arg4[%c0_7, %c0_8] : memref<1x256xf32, #tpu.memory_space<vmem>>, vector<1x256xf32>
    %cst_9 = arith.constant dense<0.000000e+00> : vector<64x256xf32>
    %11 = tpu.matmul %7, %8, %cst_9 {dimension_numbers = #tpu.dot_dimension_numbers<[1], [0], [0], [1], [0, 0, 1, 1], [], []>} : vector<64x16xf32>, vector<16x256xf32>, vector<64x256xf32> -> vector<64x256xf32>
    %12 = vector.broadcast %10 : vector<1x256xf32> to vector<64x256xf32>
    %13 = arith.addf %11, %12 : vector<64x256xf32>
    %c0_10 = arith.constant 0 : index
    %c0_11 = arith.constant 0 : index
    %14 = vector.load %arg13[%c0_10, %c0_11] : memref<64x256xf32, #tpu.memory_space<vmem>>, vector<64x256xf32>
    tpu.vector_store %arg13[%c0_10, %c0_11], %13 {strides = array<i32>} : memref<64x256xf32, #tpu.memory_space<vmem>>, vector<64x256xf32>,
    %cst_12 = arith.constant 0.000000e+00 : f32
    %15 = vector.broadcast %cst_12 : f32 to vector<8x64xf32>
    %cst_13 = arith.constant 0.000000e+00 : f32
    %16 = vector.broadcast %cst_13 : f32 to vector<8x32xf32>
    %c0_i32 = arith.constant 0 : i32
    %c8_i32 = arith.constant 8 : i32
    %17 = arith.muli %c0_i32, %c8_i32 : i32
    %18 = tpu.assume_multiple %17, 8 : i32
    %c7_i32 = arith.constant 7 : i32
    %19 = arith.subi %c7_i32, %c0_i32 : i32
    %c8_i32_14 = arith.constant 8 : i32
    %20 = arith.muli %19, %c8_i32_14 : i32
    %21 = tpu.assume_multiple %20, 8 : i32
    %cst_15 = arith.constant dense<0.000000e+00> : vector<8x256xf32>
    %22 = tpu.matmul %15, %9, %cst_15 {dimension_numbers = #tpu.dot_dimension_numbers<[1], [0], [0], [1], [0, 0, 1, 1], [], []>} : vector<8x64xf32>, vector<64x256xf32>, vector<8x256xf32> -> vector<8x256xf32>
    %23 = vector.extract_strided_slice %22 {offsets = [0, 0], sizes = [8, 128], strides = [1, 1]} : vector<8x256xf32> to vector<8x128xf32>
    %24 = arith.index_cast %18 : i32 to index
    %c0_16 = arith.constant 0 : index
    %25 = vector.load %arg13[%24, %c0_16] : memref<64x256xf32, #tpu.memory_space<vmem>>, vector<8x128xf32>
    %26 = arith.addf %23, %25 : vector<8x128xf32>
    %27 = vector.extract_strided_slice %22 {offsets = [0, 128], sizes = [8, 128], strides = [1, 1]} : vector<8x256xf32> to vector<8x128xf32>
    %28 = arith.index_cast %21 : i32 to index
    %c128 = arith.constant 128 : index
    %29 = vector.load %arg13[%28, %c128] : memref<64x256xf32, #tpu.memory_space<vmem>>, vector<8x128xf32>
    %30 = arith.addf %27, %29 : vector<8x128xf32>
    %31 = arith.negf %26 : vector<8x128xf32>
    %32 = math.exp %31 : vector<8x128xf32>
    %cst_17 = arith.constant 1.000000e+00 : f32
    %33 = vector.broadcast %cst_17 : f32 to vector<8x128xf32>
    %34 = arith.addf %33, %32 : vector<8x128xf32>
    %35 = arith.divf %33, %34 : vector<8x128xf32>
    %36 = arith.negf %30 : vector<8x128xf32>
    %37 = math.exp %36 : vector<8x128xf32>
    %cst_18 = arith.constant 1.000000e+00 : f32
    %38 = vector.broadcast %cst_18 : f32 to vector<8x128xf32>
    %39 = arith.addf %38, %37 : vector<8x128xf32>
    %40 = arith.divf %38, %39 : vector<8x128xf32>
    %41 = vector.extract_strided_slice %26 {offsets = [0, 64], sizes = [8, 32], strides = [1, 1]} : vector<8x128xf32> to vector<8x32xf32>
    %42 = math.tanh %41 : vector<8x32xf32>
    %43 = vector.extract_strided_slice %30 {offsets = [0, 64], sizes = [8, 32], strides = [1, 1]} : vector<8x128xf32> to vector<8x32xf32>
    %44 = math.tanh %43 : vector<8x32xf32>
    %45 = vector.extract_strided_slice %35 {offsets = [0, 32], sizes = [8, 32], strides = [1, 1]} : vector<8x128xf32> to vector<8x32xf32>
    %46 = arith.mulf %45, %16 : vector<8x32xf32>
    %47 = vector.extract_strided_slice %35 {offsets = [0, 0], sizes = [8, 32], strides = [1, 1]} : vector<8x128xf32> to vector<8x32xf32>
    %48 = arith.mulf %47, %42 : vector<8x32xf32>
    %49 = arith.addf %46, %48 : vector<8x32xf32>
    %50 = vector.extract_strided_slice %40 {offsets = [0, 32], sizes = [8, 32], strides = [1, 1]} : vector<8x128xf32> to vector<8x32xf32>
    %51 = arith.mulf %50, %16 : vector<8x32xf32>
    %52 = vector.extract_strided_slice %40 {offsets = [0, 0], sizes = [8, 32], strides = [1, 1]} : vector<8x128xf32> to vector<8x32xf32>
    %53 = arith.mulf %52, %44 : vector<8x32xf32>
    %54 = arith.addf %51, %53 : vector<8x32xf32>
    %55 = vector.extract_strided_slice %35 {offsets = [0, 96], sizes = [8, 32], strides = [1, 1]} : vector<8x128xf32> to vector<8x32xf32>
    %56 = math.tanh %49 : vector<8x32xf32>
    %57 = arith.mulf %55, %56 : vector<8x32xf32>
    %58 = vector.extract_strided_slice %40 {offsets = [0, 96], sizes = [8, 32], strides = [1, 1]} : vector<8x128xf32> to vector<8x32xf32>
    %59 = math.tanh %54 : vector<8x32xf32>
    %60 = arith.mulf %58, %59 : vector<8x32xf32>
    %61 = arith.index_cast %18 : i32 to index
    %c0_19 = arith.constant 0 : index
    %62 = vector.load %arg14[%61, %c0_19] : memref<64x64xf32, #tpu.memory_space<vmem>>, vector<8x32xf32>
    tpu.vector_store %arg14[%61, %c0_19], %57 {strides = array<i32>} : memref<64x64xf32, #tpu.memory_space<vmem>>, vector<8x32xf32>,
    %63 = arith.index_cast %21 : i32 to index
    %c32 = arith.constant 32 : index
    %64 = vector.load %arg14[%63, %c32] : memref<64x64xf32, #tpu.memory_space<vmem>>, vector<8x32xf32>
    tpu.vector_store %arg14[%63, %c32], %60 {strides = array<i32>} : memref<64x64xf32, #tpu.memory_space<vmem>>, vector<8x32xf32>,
    %65 = tpu.concatenate %57, %60 in 1 : vector<8x32xf32>, vector<8x32xf32> -> vector<8x64xf32>
    %c1_i32 = arith.constant 1 : i32
    %c8_i32_20 = arith.constant 8 : i32
    %66 = arith.muli %c1_i32, %c8_i32_20 : i32
    %67 = tpu.assume_multiple %66, 8 : i32
    %c7_i32_21 = arith.constant 7 : i32
    %68 = arith.subi %c7_i32_21, %c1_i32 : i32
    %c8_i32_22 = arith.constant 8 : i32
    %69 = arith.muli %68, %c8_i32_22 : i32
    %70 = tpu.assume_multiple %69, 8 : i32
    %cst_23 = arith.constant dense<0.000000e+00> : vector<8x256xf32>
    %71 = tpu.matmul %65, %9, %cst_23 {dimension_numbers = #tpu.dot_dimension_numbers<[1], [0], [0], [1], [0, 0, 1, 1], [], []>} : vector<8x64xf32>, vector<64x256xf32>, vector<8x256xf32> -> vector<8x256xf32>
    %72 = vector.extract_strided_slice %71 {offsets = [0, 0], sizes = [8, 128], strides = [1, 1]} : vector<8x256xf32> to vector<8x128xf32>
    %73 = arith.index_cast %67 : i32 to index
    %c0_24 = arith.constant 0 : index
    %74 = vector.load %arg13[%73, %c0_24] : memref<64x256xf32, #tpu.memory_space<vmem>>, vector<8x128xf32>
    %75 = arith.addf %72, %74 : vector<8x128xf32>
    %76 = vector.extract_strided_slice %71 {offsets = [0, 128], sizes = [8, 128], strides = [1, 1]} : vector<8x256xf32> to vector<8x128xf32>
    %77 = arith.index_cast %70 : i32 to index
    %c128_25 = arith.constant 128 : index
    %78 = vector.load %arg13[%77, %c128_25] : memref<64x256xf32, #tpu.memory_space<vmem>>, vector<8x128xf32>
    %79 = arith.addf %76, %78 : vector<8x128xf32>
    %80 = arith.negf %75 : vector<8x128xf32>
    %81 = math.exp %80 : vector<8x128xf32>
    %cst_26 = arith.constant 1.000000e+00 : f32
    %82 = vector.broadcast %cst_26 : f32 to vector<8x128xf32>
    %83 = arith.addf %82, %81 : vector<8x128xf32>
    %84 = arith.divf %82, %83 : vector<8x128xf32>
    %85 = arith.negf %79 : vector<8x128xf32>
    %86 = math.exp %85 : vector<8x128xf32>
    %cst_27 = arith.constant 1.000000e+00 : f32
    %87 = vector.broadcast %cst_27 : f32 to vector<8x128xf32>
    %88 = arith.addf %87, %86 : vector<8x128xf32>
    %89 = arith.divf %87, %88 : vector<8x128xf32>
    %90 = vector.extract_strided_slice %75 {offsets = [0, 64], sizes = [8, 32], strides = [1, 1]} : vector<8x128xf32> to vector<8x32xf32>
    %91 = math.tanh %90 : vector<8x32xf32>
    %92 = vector.extract_strided_slice %79 {offsets = [0, 64], sizes = [8, 32], strides = [1, 1]} : vector<8x128xf32> to vector<8x32xf32>
    %93 = math.tanh %92 : vector<8x32xf32>
    %94 = vector.extract_strided_slice %84 {offsets = [0, 32], sizes = [8, 32], strides = [1, 1]} : vector<8x128xf32> to vector<8x32xf32>
    %95 = arith.mulf %94, %49 : vector<8x32xf32>
    %96 = vector.extract_strided_slice %84 {offsets = [0, 0], sizes = [8, 32], strides = [1, 1]} : vector<8x128xf32> to vector<8x32xf32>
    %97 = arith.mulf %96, %91 : vector<8x32xf32>
    %98 = arith.addf %95, %97 : vector<8x32xf32>
    %99 = vector.extract_strided_slice %89 {offsets = [0, 32], sizes = [8, 32], strides = [1, 1]} : vector<8x128xf32> to vector<8x32xf32>
    %100 = arith.mulf %99, %54 : vector<8x32xf32>
    %101 = vector.extract_strided_slice %89 {offsets = [0, 0], sizes = [8, 32], strides = [1, 1]} : vector<8x128xf32> to vector<8x32xf32>
    %102 = arith.mulf %101, %93 : vector<8x32xf32>
    %103 = arith.addf %100, %102 : vector<8x32xf32>
    %104 = vector.extract_strided_slice %84 {offsets = [0, 96], sizes = [8, 32], strides = [1, 1]} : vector<8x128xf32> to vector<8x32xf32>
    %105 = math.tanh %98 : vector<8x32xf32>
    %106 = arith.mulf %104, %105 : vector<8x32xf32>
    %107 = vector.extract_strided_slice %89 {offsets = [0, 96], sizes = [8, 32], strides = [1, 1]} : vector<8x128xf32> to vector<8x32xf32>
    %108 = math.tanh %103 : vector<8x32xf32>
    %109 = arith.mulf %107, %108 : vector<8x32xf32>
    %110 = arith.index_cast %67 : i32 to index
    %c0_28 = arith.constant 0 : index
    %111 = vector.load %arg14[%110, %c0_28] : memref<64x64xf32, #tpu.memory_space<vmem>>, vector<8x32xf32>
    tpu.vector_store %arg14[%110, %c0_28], %106 {strides = array<i32>} : memref<64x64xf32, #tpu.memory_space<vmem>>, vector<8x32xf32>,
    %112 = arith.index_cast %70 : i32 to index
    %c32_29 = arith.constant 32 : index
    %113 = vector.load %arg14[%112, %c32_29] : memref<64x64xf32, #tpu.memory_space<vmem>>, vector<8x32xf32>
    tpu.vector_store %arg14[%112, %c32_29], %109 {strides = array<i32>} : memref<64x64xf32, #tpu.memory_space<vmem>>, vector<8x32xf32>,
    %114 = tpu.concatenate %106, %109 in 1 : vector<8x32xf32>, vector<8x32xf32> -> vector<8x64xf32>
    %c2_i32 = arith.constant 2 : i32
    %c8_i32_30 = arith.constant 8 : i32
    %115 = arith.muli %c2_i32, %c8_i32_30 : i32
    %116 = tpu.assume_multiple %115, 8 : i32
    %c7_i32_31 = arith.constant 7 : i32
    %117 = arith.subi %c7_i32_31, %c2_i32 : i32
    %c8_i32_32 = arith.constant 8 : i32
    %118 = arith.muli %117, %c8_i32_32 : i32
    %119 = tpu.assume_multiple %118, 8 : i32
    %cst_33 = arith.constant dense<0.000000e+00> : vector<8x256xf32>
    %120 = tpu.matmul %114, %9, %cst_33 {dimension_numbers = #tpu.dot_dimension_numbers<[1], [0], [0], [1], [0, 0, 1, 1], [], []>} : vector<8x64xf32>, vector<64x256xf32>, vector<8x256xf32> -> vector<8x256xf32>
    %121 = vector.extract_strided_slice %120 {offsets = [0, 0], sizes = [8, 128], strides = [1, 1]} : vector<8x256xf32> to vector<8x128xf32>
    %122 = arith.index_cast %116 : i32 to index
    %c0_34 = arith.constant 0 : index
    %123 = vector.load %arg13[%122, %c0_34] : memref<64x256xf32, #tpu.memory_space<vmem>>, vector<8x128xf32>
    %124 = arith.addf %121, %123 : vector<8x128xf32>
    %125 = vector.extract_strided_slice %120 {offsets = [0, 128], sizes = [8, 128], strides = [1, 1]} : vector<8x256xf32> to vector<8x128xf32>
    %126 = arith.index_cast %119 : i32 to index
    %c128_35 = arith.constant 128 : index
    %127 = vector.load %arg13[%126, %c128_35] : memref<64x256xf32, #tpu.memory_space<vmem>>, vector<8x128xf32>
    %128 = arith.addf %125, %127 : vector<8x128xf32>
    %129 = arith.negf %124 : vector<8x128xf32>
    %130 = math.exp %129 : vector<8x128xf32>
    %cst_36 = arith.constant 1.000000e+00 : f32
    %131 = vector.broadcast %cst_36 : f32 to vector<8x128xf32>
    %132 = arith.addf %131, %130 : vector<8x128xf32>
    %133 = arith.divf %131, %132 : vector<8x128xf32>
    %134 = arith.negf %128 : vector<8x128xf32>
    %135 = math.exp %134 : vector<8x128xf32>
    %cst_37 = arith.constant 1.000000e+00 : f32
    %136 = vector.broadcast %cst_37 : f32 to vector<8x128xf32>
    %137 = arith.addf %136, %135 : vector<8x128xf32>
    %138 = arith.divf %136, %137 : vector<8x128xf32>
    %139 = vector.extract_strided_slice %124 {offsets = [0, 64], sizes = [8, 32], strides = [1, 1]} : vector<8x128xf32> to vector<8x32xf32>
    %140 = math.tanh %139 : vector<8x32xf32>
    %141 = vector.extract_strided_slice %128 {offsets = [0, 64], sizes = [8, 32], strides = [1, 1]} : vector<8x128xf32> to vector<8x32xf32>
    %142 = math.tanh %141 : vector<8x32xf32>
    %143 = vector.extract_strided_slice %133 {offsets = [0, 32], sizes = [8, 32], strides = [1, 1]} : vector<8x128xf32> to vector<8x32xf32>
    %144 = arith.mulf %143, %98 : vector<8x32xf32>
    %145 = vector.extract_strided_slice %133 {offsets = [0, 0], sizes = [8, 32], strides = [1, 1]} : vector<8x128xf32> to vector<8x32xf32>
    %146 = arith.mulf %145, %140 : vector<8x32xf32>
    %147 = arith.addf %144, %146 : vector<8x32xf32>
    %148 = vector.extract_strided_slice %138 {offsets = [0, 32], sizes = [8, 32], strides = [1, 1]} : vector<8x128xf32> to vector<8x32xf32>
    %149 = arith.mulf %148, %103 : vector<8x32xf32>
    %150 = vector.extract_strided_slice %138 {offsets = [0, 0], sizes = [8, 32], strides = [1, 1]} : vector<8x128xf32> to vector<8x32xf32>
    %151 = arith.mulf %150, %142 : vector<8x32xf32>
    %152 = arith.addf %149, %151 : vector<8x32xf32>
    %153 = vector.extract_strided_slice %133 {offsets = [0, 96], sizes = [8, 32], strides = [1, 1]} : vector<8x128xf32> to vector<8x32xf32>
    %154 = math.tanh %147 : vector<8x32xf32>
    %155 = arith.mulf %153, %154 : vector<8x32xf32>
    %156 = vector.extract_strided_slice %138 {offsets = [0, 96], sizes = [8, 32], strides = [1, 1]} : vector<8x128xf32> to vector<8x32xf32>
    %157 = math.tanh %152 : vector<8x32xf32>
    %158 = arith.mulf %156, %157 : vector<8x32xf32>
    %159 = arith.index_cast %116 : i32 to index
    %c0_38 = arith.constant 0 : index
    %160 = vector.load %arg14[%159, %c0_38] : memref<64x64xf32, #tpu.memory_space<vmem>>, vector<8x32xf32>
    tpu.vector_store %arg14[%159, %c0_38], %155 {strides = array<i32>} : memref<64x64xf32, #tpu.memory_space<vmem>>, vector<8x32xf32>,
    %161 = arith.index_cast %119 : i32 to index
    %c32_39 = arith.constant 32 : index
    %162 = vector.load %arg14[%161, %c32_39] : memref<64x64xf32, #tpu.memory_space<vmem>>, vector<8x32xf32>
    tpu.vector_store %arg14[%161, %c32_39], %158 {strides = array<i32>} : memref<64x64xf32, #tpu.memory_space<vmem>>, vector<8x32xf32>,
    %163 = tpu.concatenate %155, %158 in 1 : vector<8x32xf32>, vector<8x32xf32> -> vector<8x64xf32>
    %c3_i32 = arith.constant 3 : i32
    %c8_i32_40 = arith.constant 8 : i32
    %164 = arith.muli %c3_i32, %c8_i32_40 : i32
    %165 = tpu.assume_multiple %164, 8 : i32
    %c7_i32_41 = arith.constant 7 : i32
    %166 = arith.subi %c7_i32_41, %c3_i32 : i32
    %c8_i32_42 = arith.constant 8 : i32
    %167 = arith.muli %166, %c8_i32_42 : i32
    %168 = tpu.assume_multiple %167, 8 : i32
    %cst_43 = arith.constant dense<0.000000e+00> : vector<8x256xf32>
    %169 = tpu.matmul %163, %9, %cst_43 {dimension_numbers = #tpu.dot_dimension_numbers<[1], [0], [0], [1], [0, 0, 1, 1], [], []>} : vector<8x64xf32>, vector<64x256xf32>, vector<8x256xf32> -> vector<8x256xf32>
    %170 = vector.extract_strided_slice %169 {offsets = [0, 0], sizes = [8, 128], strides = [1, 1]} : vector<8x256xf32> to vector<8x128xf32>
    %171 = arith.index_cast %165 : i32 to index
    %c0_44 = arith.constant 0 : index
    %172 = vector.load %arg13[%171, %c0_44] : memref<64x256xf32, #tpu.memory_space<vmem>>, vector<8x128xf32>
    %173 = arith.addf %170, %172 : vector<8x128xf32>
    %174 = vector.extract_strided_slice %169 {offsets = [0, 128], sizes = [8, 128], strides = [1, 1]} : vector<8x256xf32> to vector<8x128xf32>
    %175 = arith.index_cast %168 : i32 to index
    %c128_45 = arith.constant 128 : index
    %176 = vector.load %arg13[%175, %c128_45] : memref<64x256xf32, #tpu.memory_space<vmem>>, vector<8x128xf32>
    %177 = arith.addf %174, %176 : vector<8x128xf32>
    %178 = arith.negf %173 : vector<8x128xf32>
    %179 = math.exp %178 : vector<8x128xf32>
    %cst_46 = arith.constant 1.000000e+00 : f32
    %180 = vector.broadcast %cst_46 : f32 to vector<8x128xf32>
    %181 = arith.addf %180, %179 : vector<8x128xf32>
    %182 = arith.divf %180, %181 : vector<8x128xf32>
    %183 = arith.negf %177 : vector<8x128xf32>
    %184 = math.exp %183 : vector<8x128xf32>
    %cst_47 = arith.constant 1.000000e+00 : f32
    %185 = vector.broadcast %cst_47 : f32 to vector<8x128xf32>
    %186 = arith.addf %185, %184 : vector<8x128xf32>
    %187 = arith.divf %185, %186 : vector<8x128xf32>
    %188 = vector.extract_strided_slice %173 {offsets = [0, 64], sizes = [8, 32], strides = [1, 1]} : vector<8x128xf32> to vector<8x32xf32>
    %189 = math.tanh %188 : vector<8x32xf32>
    %190 = vector.extract_strided_slice %177 {offsets = [0, 64], sizes = [8, 32], strides = [1, 1]} : vector<8x128xf32> to vector<8x32xf32>
    %191 = math.tanh %190 : vector<8x32xf32>
    %192 = vector.extract_strided_slice %182 {offsets = [0, 32], sizes = [8, 32], strides = [1, 1]} : vector<8x128xf32> to vector<8x32xf32>
    %193 = arith.mulf %192, %147 : vector<8x32xf32>
    %194 = vector.extract_strided_slice %182 {offsets = [0, 0], sizes = [8, 32], strides = [1, 1]} : vector<8x128xf32> to vector<8x32xf32>
    %195 = arith.mulf %194, %189 : vector<8x32xf32>
    %196 = arith.addf %193, %195 : vector<8x32xf32>
    %197 = vector.extract_strided_slice %187 {offsets = [0, 32], sizes = [8, 32], strides = [1, 1]} : vector<8x128xf32> to vector<8x32xf32>
    %198 = arith.mulf %197, %152 : vector<8x32xf32>
    %199 = vector.extract_strided_slice %187 {offsets = [0, 0], sizes = [8, 32], strides = [1, 1]} : vector<8x128xf32> to vector<8x32xf32>
    %200 = arith.mulf %199, %191 : vector<8x32xf32>
    %201 = arith.addf %198, %200 : vector<8x32xf32>
    %202 = vector.extract_strided_slice %182 {offsets = [0, 96], sizes = [8, 32], strides = [1, 1]} : vector<8x128xf32> to vector<8x32xf32>
    %203 = math.tanh %196 : vector<8x32xf32>
    %204 = arith.mulf %202, %203 : vector<8x32xf32>
    %205 = vector.extract_strided_slice %187 {offsets = [0, 96], sizes = [8, 32], strides = [1, 1]} : vector<8x128xf32> to vector<8x32xf32>
    %206 = math.tanh %201 : vector<8x32xf32>
    %207 = arith.mulf %205, %206 : vector<8x32xf32>
    %208 = arith.index_cast %165 : i32 to index
    %c0_48 = arith.constant 0 : index
    %209 = vector.load %arg14[%208, %c0_48] : memref<64x64xf32, #tpu.memory_space<vmem>>, vector<8x32xf32>
    tpu.vector_store %arg14[%208, %c0_48], %204 {strides = array<i32>} : memref<64x64xf32, #tpu.memory_space<vmem>>, vector<8x32xf32>,
    %210 = arith.index_cast %168 : i32 to index
    %c32_49 = arith.constant 32 : index
    %211 = vector.load %arg14[%210, %c32_49] : memref<64x64xf32, #tpu.memory_space<vmem>>, vector<8x32xf32>
    tpu.vector_store %arg14[%210, %c32_49], %207 {strides = array<i32>} : memref<64x64xf32, #tpu.memory_space<vmem>>, vector<8x32xf32>,
    %212 = tpu.concatenate %204, %207 in 1 : vector<8x32xf32>, vector<8x32xf32> -> vector<8x64xf32>
    %c4_i32 = arith.constant 4 : i32
    %c8_i32_50 = arith.constant 8 : i32
    %213 = arith.muli %c4_i32, %c8_i32_50 : i32
    %214 = tpu.assume_multiple %213, 8 : i32
    %c7_i32_51 = arith.constant 7 : i32
    %215 = arith.subi %c7_i32_51, %c4_i32 : i32
    %c8_i32_52 = arith.constant 8 : i32
    %216 = arith.muli %215, %c8_i32_52 : i32
    %217 = tpu.assume_multiple %216, 8 : i32
    %cst_53 = arith.constant dense<0.000000e+00> : vector<8x256xf32>
    %218 = tpu.matmul %212, %9, %cst_53 {dimension_numbers = #tpu.dot_dimension_numbers<[1], [0], [0], [1], [0, 0, 1, 1], [], []>} : vector<8x64xf32>, vector<64x256xf32>, vector<8x256xf32> -> vector<8x256xf32>
    %219 = vector.extract_strided_slice %218 {offsets = [0, 0], sizes = [8, 128], strides = [1, 1]} : vector<8x256xf32> to vector<8x128xf32>
    %220 = arith.index_cast %214 : i32 to index
    %c0_54 = arith.constant 0 : index
    %221 = vector.load %arg13[%220, %c0_54] : memref<64x256xf32, #tpu.memory_space<vmem>>, vector<8x128xf32>
    %222 = arith.addf %219, %221 : vector<8x128xf32>
    %223 = vector.extract_strided_slice %218 {offsets = [0, 128], sizes = [8, 128], strides = [1, 1]} : vector<8x256xf32> to vector<8x128xf32>
    %224 = arith.index_cast %217 : i32 to index
    %c128_55 = arith.constant 128 : index
    %225 = vector.load %arg13[%224, %c128_55] : memref<64x256xf32, #tpu.memory_space<vmem>>, vector<8x128xf32>
    %226 = arith.addf %223, %225 : vector<8x128xf32>
    %227 = arith.negf %222 : vector<8x128xf32>
    %228 = math.exp %227 : vector<8x128xf32>
    %cst_56 = arith.constant 1.000000e+00 : f32
    %229 = vector.broadcast %cst_56 : f32 to vector<8x128xf32>
    %230 = arith.addf %229, %228 : vector<8x128xf32>
    %231 = arith.divf %229, %230 : vector<8x128xf32>
    %232 = arith.negf %226 : vector<8x128xf32>
    %233 = math.exp %232 : vector<8x128xf32>
    %cst_57 = arith.constant 1.000000e+00 : f32
    %234 = vector.broadcast %cst_57 : f32 to vector<8x128xf32>
    %235 = arith.addf %234, %233 : vector<8x128xf32>
    %236 = arith.divf %234, %235 : vector<8x128xf32>
    %237 = vector.extract_strided_slice %222 {offsets = [0, 64], sizes = [8, 32], strides = [1, 1]} : vector<8x128xf32> to vector<8x32xf32>
    %238 = math.tanh %237 : vector<8x32xf32>
    %239 = vector.extract_strided_slice %226 {offsets = [0, 64], sizes = [8, 32], strides = [1, 1]} : vector<8x128xf32> to vector<8x32xf32>
    %240 = math.tanh %239 : vector<8x32xf32>
    %241 = vector.extract_strided_slice %231 {offsets = [0, 32], sizes = [8, 32], strides = [1, 1]} : vector<8x128xf32> to vector<8x32xf32>
    %242 = arith.mulf %241, %196 : vector<8x32xf32>
    %243 = vector.extract_strided_slice %231 {offsets = [0, 0], sizes = [8, 32], strides = [1, 1]} : vector<8x128xf32> to vector<8x32xf32>
    %244 = arith.mulf %243, %238 : vector<8x32xf32>
    %245 = arith.addf %242, %244 : vector<8x32xf32>
    %246 = vector.extract_strided_slice %236 {offsets = [0, 32], sizes = [8, 32], strides = [1, 1]} : vector<8x128xf32> to vector<8x32xf32>
    %247 = arith.mulf %246, %201 : vector<8x32xf32>
    %248 = vector.extract_strided_slice %236 {offsets = [0, 0], sizes = [8, 32], strides = [1, 1]} : vector<8x128xf32> to vector<8x32xf32>
    %249 = arith.mulf %248, %240 : vector<8x32xf32>
    %250 = arith.addf %247, %249 : vector<8x32xf32>
    %251 = vector.extract_strided_slice %231 {offsets = [0, 96], sizes = [8, 32], strides = [1, 1]} : vector<8x128xf32> to vector<8x32xf32>
    %252 = math.tanh %245 : vector<8x32xf32>
    %253 = arith.mulf %251, %252 : vector<8x32xf32>
    %254 = vector.extract_strided_slice %236 {offsets = [0, 96], sizes = [8, 32], strides = [1, 1]} : vector<8x128xf32> to vector<8x32xf32>
    %255 = math.tanh %250 : vector<8x32xf32>
    %256 = arith.mulf %254, %255 : vector<8x32xf32>
    %257 = arith.index_cast %214 : i32 to index
    %c0_58 = arith.constant 0 : index
    %258 = vector.load %arg14[%257, %c0_58] : memref<64x64xf32, #tpu.memory_space<vmem>>, vector<8x32xf32>
    tpu.vector_store %arg14[%257, %c0_58], %253 {strides = array<i32>} : memref<64x64xf32, #tpu.memory_space<vmem>>, vector<8x32xf32>,
    %259 = arith.index_cast %217 : i32 to index
    %c32_59 = arith.constant 32 : index
    %260 = vector.load %arg14[%259, %c32_59] : memref<64x64xf32, #tpu.memory_space<vmem>>, vector<8x32xf32>
    tpu.vector_store %arg14[%259, %c32_59], %256 {strides = array<i32>} : memref<64x64xf32, #tpu.memory_space<vmem>>, vector<8x32xf32>,
    %261 = tpu.concatenate %253, %256 in 1 : vector<8x32xf32>, vector<8x32xf32> -> vector<8x64xf32>
    %c5_i32 = arith.constant 5 : i32
    %c8_i32_60 = arith.constant 8 : i32
    %262 = arith.muli %c5_i32, %c8_i32_60 : i32
    %263 = tpu.assume_multiple %262, 8 : i32
    %c7_i32_61 = arith.constant 7 : i32
    %264 = arith.subi %c7_i32_61, %c5_i32 : i32
    %c8_i32_62 = arith.constant 8 : i32
    %265 = arith.muli %264, %c8_i32_62 : i32
    %266 = tpu.assume_multiple %265, 8 : i32
    %cst_63 = arith.constant dense<0.000000e+00> : vector<8x256xf32>
    %267 = tpu.matmul %261, %9, %cst_63 {dimension_numbers = #tpu.dot_dimension_numbers<[1], [0], [0], [1], [0, 0, 1, 1], [], []>} : vector<8x64xf32>, vector<64x256xf32>, vector<8x256xf32> -> vector<8x256xf32>
    %268 = vector.extract_strided_slice %267 {offsets = [0, 0], sizes = [8, 128], strides = [1, 1]} : vector<8x256xf32> to vector<8x128xf32>
    %269 = arith.index_cast %263 : i32 to index
    %c0_64 = arith.constant 0 : index
    %270 = vector.load %arg13[%269, %c0_64] : memref<64x256xf32, #tpu.memory_space<vmem>>, vector<8x128xf32>
    %271 = arith.addf %268, %270 : vector<8x128xf32>
    %272 = vector.extract_strided_slice %267 {offsets = [0, 128], sizes = [8, 128], strides = [1, 1]} : vector<8x256xf32> to vector<8x128xf32>
    %273 = arith.index_cast %266 : i32 to index
    %c128_65 = arith.constant 128 : index
    %274 = vector.load %arg13[%273, %c128_65] : memref<64x256xf32, #tpu.memory_space<vmem>>, vector<8x128xf32>
    %275 = arith.addf %272, %274 : vector<8x128xf32>
    %276 = arith.negf %271 : vector<8x128xf32>
    %277 = math.exp %276 : vector<8x128xf32>
    %cst_66 = arith.constant 1.000000e+00 : f32
    %278 = vector.broadcast %cst_66 : f32 to vector<8x128xf32>
    %279 = arith.addf %278, %277 : vector<8x128xf32>
    %280 = arith.divf %278, %279 : vector<8x128xf32>
    %281 = arith.negf %275 : vector<8x128xf32>
    %282 = math.exp %281 : vector<8x128xf32>
    %cst_67 = arith.constant 1.000000e+00 : f32
    %283 = vector.broadcast %cst_67 : f32 to vector<8x128xf32>
    %284 = arith.addf %283, %282 : vector<8x128xf32>
    %285 = arith.divf %283, %284 : vector<8x128xf32>
    %286 = vector.extract_strided_slice %271 {offsets = [0, 64], sizes = [8, 32], strides = [1, 1]} : vector<8x128xf32> to vector<8x32xf32>
    %287 = math.tanh %286 : vector<8x32xf32>
    %288 = vector.extract_strided_slice %275 {offsets = [0, 64], sizes = [8, 32], strides = [1, 1]} : vector<8x128xf32> to vector<8x32xf32>
    %289 = math.tanh %288 : vector<8x32xf32>
    %290 = vector.extract_strided_slice %280 {offsets = [0, 32], sizes = [8, 32], strides = [1, 1]} : vector<8x128xf32> to vector<8x32xf32>
    %291 = arith.mulf %290, %245 : vector<8x32xf32>
    %292 = vector.extract_strided_slice %280 {offsets = [0, 0], sizes = [8, 32], strides = [1, 1]} : vector<8x128xf32> to vector<8x32xf32>
    %293 = arith.mulf %292, %287 : vector<8x32xf32>
    %294 = arith.addf %291, %293 : vector<8x32xf32>
    %295 = vector.extract_strided_slice %285 {offsets = [0, 32], sizes = [8, 32], strides = [1, 1]} : vector<8x128xf32> to vector<8x32xf32>
    %296 = arith.mulf %295, %250 : vector<8x32xf32>
    %297 = vector.extract_strided_slice %285 {offsets = [0, 0], sizes = [8, 32], strides = [1, 1]} : vector<8x128xf32> to vector<8x32xf32>
    %298 = arith.mulf %297, %289 : vector<8x32xf32>
    %299 = arith.addf %296, %298 : vector<8x32xf32>
    %300 = vector.extract_strided_slice %280 {offsets = [0, 96], sizes = [8, 32], strides = [1, 1]} : vector<8x128xf32> to vector<8x32xf32>
    %301 = math.tanh %294 : vector<8x32xf32>
    %302 = arith.mulf %300, %301 : vector<8x32xf32>
    %303 = vector.extract_strided_slice %285 {offsets = [0, 96], sizes = [8, 32], strides = [1, 1]} : vector<8x128xf32> to vector<8x32xf32>
    %304 = math.tanh %299 : vector<8x32xf32>
    %305 = arith.mulf %303, %304 : vector<8x32xf32>
    %306 = arith.index_cast %263 : i32 to index
    %c0_68 = arith.constant 0 : index
    %307 = vector.load %arg14[%306, %c0_68] : memref<64x64xf32, #tpu.memory_space<vmem>>, vector<8x32xf32>
    tpu.vector_store %arg14[%306, %c0_68], %302 {strides = array<i32>} : memref<64x64xf32, #tpu.memory_space<vmem>>, vector<8x32xf32>,
    %308 = arith.index_cast %266 : i32 to index
    %c32_69 = arith.constant 32 : index
    %309 = vector.load %arg14[%308, %c32_69] : memref<64x64xf32, #tpu.memory_space<vmem>>, vector<8x32xf32>
    tpu.vector_store %arg14[%308, %c32_69], %305 {strides = array<i32>} : memref<64x64xf32, #tpu.memory_space<vmem>>, vector<8x32xf32>,
    %310 = tpu.concatenate %302, %305 in 1 : vector<8x32xf32>, vector<8x32xf32> -> vector<8x64xf32>
    %c6_i32 = arith.constant 6 : i32
    %c8_i32_70 = arith.constant 8 : i32
    %311 = arith.muli %c6_i32, %c8_i32_70 : i32
    %312 = tpu.assume_multiple %311, 8 : i32
    %c7_i32_71 = arith.constant 7 : i32
    %313 = arith.subi %c7_i32_71, %c6_i32 : i32
    %c8_i32_72 = arith.constant 8 : i32
    %314 = arith.muli %313, %c8_i32_72 : i32
    %315 = tpu.assume_multiple %314, 8 : i32
    %cst_73 = arith.constant dense<0.000000e+00> : vector<8x256xf32>
    %316 = tpu.matmul %310, %9, %cst_73 {dimension_numbers = #tpu.dot_dimension_numbers<[1], [0], [0], [1], [0, 0, 1, 1], [], []>} : vector<8x64xf32>, vector<64x256xf32>, vector<8x256xf32> -> vector<8x256xf32>
    %317 = vector.extract_strided_slice %316 {offsets = [0, 0], sizes = [8, 128], strides = [1, 1]} : vector<8x256xf32> to vector<8x128xf32>
    %318 = arith.index_cast %312 : i32 to index
    %c0_74 = arith.constant 0 : index
    %319 = vector.load %arg13[%318, %c0_74] : memref<64x256xf32, #tpu.memory_space<vmem>>, vector<8x128xf32>
    %320 = arith.addf %317, %319 : vector<8x128xf32>
    %321 = vector.extract_strided_slice %316 {offsets = [0, 128], sizes = [8, 128], strides = [1, 1]} : vector<8x256xf32> to vector<8x128xf32>
    %322 = arith.index_cast %315 : i32 to index
    %c128_75 = arith.constant 128 : index
    %323 = vector.load %arg13[%322, %c128_75] : memref<64x256xf32, #tpu.memory_space<vmem>>, vector<8x128xf32>
    %324 = arith.addf %321, %323 : vector<8x128xf32>
    %325 = arith.negf %320 : vector<8x128xf32>
    %326 = math.exp %325 : vector<8x128xf32>
    %cst_76 = arith.constant 1.000000e+00 : f32
    %327 = vector.broadcast %cst_76 : f32 to vector<8x128xf32>
    %328 = arith.addf %327, %326 : vector<8x128xf32>
    %329 = arith.divf %327, %328 : vector<8x128xf32>
    %330 = arith.negf %324 : vector<8x128xf32>
    %331 = math.exp %330 : vector<8x128xf32>
    %cst_77 = arith.constant 1.000000e+00 : f32
    %332 = vector.broadcast %cst_77 : f32 to vector<8x128xf32>
    %333 = arith.addf %332, %331 : vector<8x128xf32>
    %334 = arith.divf %332, %333 : vector<8x128xf32>
    %335 = vector.extract_strided_slice %320 {offsets = [0, 64], sizes = [8, 32], strides = [1, 1]} : vector<8x128xf32> to vector<8x32xf32>
    %336 = math.tanh %335 : vector<8x32xf32>
    %337 = vector.extract_strided_slice %324 {offsets = [0, 64], sizes = [8, 32], strides = [1, 1]} : vector<8x128xf32> to vector<8x32xf32>
    %338 = math.tanh %337 : vector<8x32xf32>
    %339 = vector.extract_strided_slice %329 {offsets = [0, 32], sizes = [8, 32], strides = [1, 1]} : vector<8x128xf32> to vector<8x32xf32>
    %340 = arith.mulf %339, %294 : vector<8x32xf32>
    %341 = vector.extract_strided_slice %329 {offsets = [0, 0], sizes = [8, 32], strides = [1, 1]} : vector<8x128xf32> to vector<8x32xf32>
    %342 = arith.mulf %341, %336 : vector<8x32xf32>
    %343 = arith.addf %340, %342 : vector<8x32xf32>
    %344 = vector.extract_strided_slice %334 {offsets = [0, 32], sizes = [8, 32], strides = [1, 1]} : vector<8x128xf32> to vector<8x32xf32>
    %345 = arith.mulf %344, %299 : vector<8x32xf32>
    %346 = vector.extract_strided_slice %334 {offsets = [0, 0], sizes = [8, 32], strides = [1, 1]} : vector<8x128xf32> to vector<8x32xf32>
    %347 = arith.mulf %346, %338 : vector<8x32xf32>
    %348 = arith.addf %345, %347 : vector<8x32xf32>
    %349 = vector.extract_strided_slice %329 {offsets = [0, 96], sizes = [8, 32], strides = [1, 1]} : vector<8x128xf32> to vector<8x32xf32>
    %350 = math.tanh %343 : vector<8x32xf32>
    %351 = arith.mulf %349, %350 : vector<8x32xf32>
    %352 = vector.extract_strided_slice %334 {offsets = [0, 96], sizes = [8, 32], strides = [1, 1]} : vector<8x128xf32> to vector<8x32xf32>
    %353 = math.tanh %348 : vector<8x32xf32>
    %354 = arith.mulf %352, %353 : vector<8x32xf32>
    %355 = arith.index_cast %312 : i32 to index
    %c0_78 = arith.constant 0 : index
    %356 = vector.load %arg14[%355, %c0_78] : memref<64x64xf32, #tpu.memory_space<vmem>>, vector<8x32xf32>
    tpu.vector_store %arg14[%355, %c0_78], %351 {strides = array<i32>} : memref<64x64xf32, #tpu.memory_space<vmem>>, vector<8x32xf32>,
    %357 = arith.index_cast %315 : i32 to index
    %c32_79 = arith.constant 32 : index
    %358 = vector.load %arg14[%357, %c32_79] : memref<64x64xf32, #tpu.memory_space<vmem>>, vector<8x32xf32>
    tpu.vector_store %arg14[%357, %c32_79], %354 {strides = array<i32>} : memref<64x64xf32, #tpu.memory_space<vmem>>, vector<8x32xf32>,
    %359 = tpu.concatenate %351, %354 in 1 : vector<8x32xf32>, vector<8x32xf32> -> vector<8x64xf32>
    %c7_i32_80 = arith.constant 7 : i32
    %c8_i32_81 = arith.constant 8 : i32
    %360 = arith.muli %c7_i32_80, %c8_i32_81 : i32
    %361 = tpu.assume_multiple %360, 8 : i32
    %c7_i32_82 = arith.constant 7 : i32
    %362 = arith.subi %c7_i32_82, %c7_i32_80 : i32
    %c8_i32_83 = arith.constant 8 : i32
    %363 = arith.muli %362, %c8_i32_83 : i32
    %364 = tpu.assume_multiple %363, 8 : i32
    %cst_84 = arith.constant dense<0.000000e+00> : vector<8x256xf32>
    %365 = tpu.matmul %359, %9, %cst_84 {dimension_numbers = #tpu.dot_dimension_numbers<[1], [0], [0], [1], [0, 0, 1, 1], [], []>} : vector<8x64xf32>, vector<64x256xf32>, vector<8x256xf32> -> vector<8x256xf32>
    %366 = vector.extract_strided_slice %365 {offsets = [0, 0], sizes = [8, 128], strides = [1, 1]} : vector<8x256xf32> to vector<8x128xf32>
    %367 = arith.index_cast %361 : i32 to index
    %c0_85 = arith.constant 0 : index
    %368 = vector.load %arg13[%367, %c0_85] : memref<64x256xf32, #tpu.memory_space<vmem>>, vector<8x128xf32>
    %369 = arith.addf %366, %368 : vector<8x128xf32>
    %370 = vector.extract_strided_slice %365 {offsets = [0, 128], sizes = [8, 128], strides = [1, 1]} : vector<8x256xf32> to vector<8x128xf32>
    %371 = arith.index_cast %364 : i32 to index
    %c128_86 = arith.constant 128 : index
    %372 = vector.load %arg13[%371, %c128_86] : memref<64x256xf32, #tpu.memory_space<vmem>>, vector<8x128xf32>
    %373 = arith.addf %370, %372 : vector<8x128xf32>
    %374 = arith.negf %369 : vector<8x128xf32>
    %375 = math.exp %374 : vector<8x128xf32>
    %cst_87 = arith.constant 1.000000e+00 : f32
    %376 = vector.broadcast %cst_87 : f32 to vector<8x128xf32>
    %377 = arith.addf %376, %375 : vector<8x128xf32>
    %378 = arith.divf %376, %377 : vector<8x128xf32>
    %379 = arith.negf %373 : vector<8x128xf32>
    %380 = math.exp %379 : vector<8x128xf32>
    %cst_88 = arith.constant 1.000000e+00 : f32
    %381 = vector.broadcast %cst_88 : f32 to vector<8x128xf32>
    %382 = arith.addf %381, %380 : vector<8x128xf32>
    %383 = arith.divf %381, %382 : vector<8x128xf32>
    %384 = vector.extract_strided_slice %369 {offsets = [0, 64], sizes = [8, 32], strides = [1, 1]} : vector<8x128xf32> to vector<8x32xf32>
    %385 = math.tanh %384 : vector<8x32xf32>
    %386 = vector.extract_strided_slice %373 {offsets = [0, 64], sizes = [8, 32], strides = [1, 1]} : vector<8x128xf32> to vector<8x32xf32>
    %387 = math.tanh %386 : vector<8x32xf32>
    %388 = vector.extract_strided_slice %378 {offsets = [0, 32], sizes = [8, 32], strides = [1, 1]} : vector<8x128xf32> to vector<8x32xf32>
    %389 = arith.mulf %388, %343 : vector<8x32xf32>
    %390 = vector.extract_strided_slice %378 {offsets = [0, 0], sizes = [8, 32], strides = [1, 1]} : vector<8x128xf32> to vector<8x32xf32>
    %391 = arith.mulf %390, %385 : vector<8x32xf32>
    %392 = arith.addf %389, %391 : vector<8x32xf32>
    %393 = vector.extract_strided_slice %383 {offsets = [0, 32], sizes = [8, 32], strides = [1, 1]} : vector<8x128xf32> to vector<8x32xf32>
    %394 = arith.mulf %393, %348 : vector<8x32xf32>
    %395 = vector.extract_strided_slice %383 {offsets = [0, 0], sizes = [8, 32], strides = [1, 1]} : vector<8x128xf32> to vector<8x32xf32>
    %396 = arith.mulf %395, %387 : vector<8x32xf32>
    %397 = arith.addf %394, %396 : vector<8x32xf32>
    %398 = vector.extract_strided_slice %378 {offsets = [0, 96], sizes = [8, 32], strides = [1, 1]} : vector<8x128xf32> to vector<8x32xf32>
    %399 = math.tanh %392 : vector<8x32xf32>
    %400 = arith.mulf %398, %399 : vector<8x32xf32>
    %401 = vector.extract_strided_slice %383 {offsets = [0, 96], sizes = [8, 32], strides = [1, 1]} : vector<8x128xf32> to vector<8x32xf32>
    %402 = math.tanh %397 : vector<8x32xf32>
    %403 = arith.mulf %401, %402 : vector<8x32xf32>
    %404 = arith.index_cast %361 : i32 to index
    %c0_89 = arith.constant 0 : index
    %405 = vector.load %arg14[%404, %c0_89] : memref<64x64xf32, #tpu.memory_space<vmem>>, vector<8x32xf32>
    tpu.vector_store %arg14[%404, %c0_89], %400 {strides = array<i32>} : memref<64x64xf32, #tpu.memory_space<vmem>>, vector<8x32xf32>,
    %406 = arith.index_cast %364 : i32 to index
    %c32_90 = arith.constant 32 : index
    %407 = vector.load %arg14[%406, %c32_90] : memref<64x64xf32, #tpu.memory_space<vmem>>, vector<8x32xf32>
    tpu.vector_store %arg14[%406, %c32_90], %403 {strides = array<i32>} : memref<64x64xf32, #tpu.memory_space<vmem>>, vector<8x32xf32>,
    %408 = tpu.concatenate %400, %403 in 1 : vector<8x32xf32>, vector<8x32xf32> -> vector<8x64xf32>
    %c8_i32_91 = arith.constant 8 : i32
    %c0_92 = arith.constant 0 : index
    %c0_93 = arith.constant 0 : index
    %409 = vector.load %arg14[%c0_92, %c0_93] : memref<64x64xf32, #tpu.memory_space<vmem>>, vector<64x64xf32>
    %c0_94 = arith.constant 0 : index
    %c0_95 = arith.constant 0 : index
    %410 = vector.load %arg5[%c0_94, %c0_95] : memref<64x256xf32, #tpu.memory_space<vmem>>, vector<64x256xf32>
    %c0_96 = arith.constant 0 : index
    %c0_97 = arith.constant 0 : index
    %411 = vector.load %arg6[%c0_96, %c0_97] : memref<64x256xf32, #tpu.memory_space<vmem>>, vector<64x256xf32>
    %c0_98 = arith.constant 0 : index
    %c0_99 = arith.constant 0 : index
    %412 = vector.load %arg7[%c0_98, %c0_99] : memref<1x256xf32, #tpu.memory_space<vmem>>, vector<1x256xf32>
    %cst_100 = arith.constant dense<0.000000e+00> : vector<64x256xf32>
    %413 = tpu.matmul %409, %410, %cst_100 {dimension_numbers = #tpu.dot_dimension_numbers<[1], [0], [0], [1], [0, 0, 1, 1], [], []>} : vector<64x64xf32>, vector<64x256xf32>, vector<64x256xf32> -> vector<64x256xf32>
    %414 = vector.broadcast %412 : vector<1x256xf32> to vector<64x256xf32>
    %415 = arith.addf %413, %414 : vector<64x256xf32>
    %c0_101 = arith.constant 0 : index
    %c0_102 = arith.constant 0 : index
    %416 = vector.load %arg13[%c0_101, %c0_102] : memref<64x256xf32, #tpu.memory_space<vmem>>, vector<64x256xf32>
    tpu.vector_store %arg13[%c0_101, %c0_102], %415 {strides = array<i32>} : memref<64x256xf32, #tpu.memory_space<vmem>>, vector<64x256xf32>,
    %cst_103 = arith.constant 0.000000e+00 : f32
    %417 = vector.broadcast %cst_103 : f32 to vector<8x64xf32>
    %cst_104 = arith.constant 0.000000e+00 : f32
    %418 = vector.broadcast %cst_104 : f32 to vector<8x32xf32>
    %c0_i32_105 = arith.constant 0 : i32
    %c8_i32_106 = arith.constant 8 : i32
    %419 = arith.muli %c0_i32_105, %c8_i32_106 : i32
    %420 = tpu.assume_multiple %419, 8 : i32
    %c7_i32_107 = arith.constant 7 : i32
    %421 = arith.subi %c7_i32_107, %c0_i32_105 : i32
    %c8_i32_108 = arith.constant 8 : i32
    %422 = arith.muli %421, %c8_i32_108 : i32
    %423 = tpu.assume_multiple %422, 8 : i32
    %cst_109 = arith.constant dense<0.000000e+00> : vector<8x256xf32>
    %424 = tpu.matmul %417, %411, %cst_109 {dimension_numbers = #tpu.dot_dimension_numbers<[1], [0], [0], [1], [0, 0, 1, 1], [], []>} : vector<8x64xf32>, vector<64x256xf32>, vector<8x256xf32> -> vector<8x256xf32>
    %425 = vector.extract_strided_slice %424 {offsets = [0, 0], sizes = [8, 128], strides = [1, 1]} : vector<8x256xf32> to vector<8x128xf32>
    %426 = arith.index_cast %420 : i32 to index
    %c0_110 = arith.constant 0 : index
    %427 = vector.load %arg13[%426, %c0_110] : memref<64x256xf32, #tpu.memory_space<vmem>>, vector<8x128xf32>
    %428 = arith.addf %425, %427 : vector<8x128xf32>
    %429 = vector.extract_strided_slice %424 {offsets = [0, 128], sizes = [8, 128], strides = [1, 1]} : vector<8x256xf32> to vector<8x128xf32>
    %430 = arith.index_cast %423 : i32 to index
    %c128_111 = arith.constant 128 : index
    %431 = vector.load %arg13[%430, %c128_111] : memref<64x256xf32, #tpu.memory_space<vmem>>, vector<8x128xf32>
    %432 = arith.addf %429, %431 : vector<8x128xf32>
    %433 = arith.negf %428 : vector<8x128xf32>
    %434 = math.exp %433 : vector<8x128xf32>
    %cst_112 = arith.constant 1.000000e+00 : f32
    %435 = vector.broadcast %cst_112 : f32 to vector<8x128xf32>
    %436 = arith.addf %435, %434 : vector<8x128xf32>
    %437 = arith.divf %435, %436 : vector<8x128xf32>
    %438 = arith.negf %432 : vector<8x128xf32>
    %439 = math.exp %438 : vector<8x128xf32>
    %cst_113 = arith.constant 1.000000e+00 : f32
    %440 = vector.broadcast %cst_113 : f32 to vector<8x128xf32>
    %441 = arith.addf %440, %439 : vector<8x128xf32>
    %442 = arith.divf %440, %441 : vector<8x128xf32>
    %443 = vector.extract_strided_slice %428 {offsets = [0, 64], sizes = [8, 32], strides = [1, 1]} : vector<8x128xf32> to vector<8x32xf32>
    %444 = math.tanh %443 : vector<8x32xf32>
    %445 = vector.extract_strided_slice %432 {offsets = [0, 64], sizes = [8, 32], strides = [1, 1]} : vector<8x128xf32> to vector<8x32xf32>
    %446 = math.tanh %445 : vector<8x32xf32>
    %447 = vector.extract_strided_slice %437 {offsets = [0, 32], sizes = [8, 32], strides = [1, 1]} : vector<8x128xf32> to vector<8x32xf32>
    %448 = arith.mulf %447, %418 : vector<8x32xf32>
    %449 = vector.extract_strided_slice %437 {offsets = [0, 0], sizes = [8, 32], strides = [1, 1]} : vector<8x128xf32> to vector<8x32xf32>
    %450 = arith.mulf %449, %444 : vector<8x32xf32>
    %451 = arith.addf %448, %450 : vector<8x32xf32>
    %452 = vector.extract_strided_slice %442 {offsets = [0, 32], sizes = [8, 32], strides = [1, 1]} : vector<8x128xf32> to vector<8x32xf32>
    %453 = arith.mulf %452, %418 : vector<8x32xf32>
    %454 = vector.extract_strided_slice %442 {offsets = [0, 0], sizes = [8, 32], strides = [1, 1]} : vector<8x128xf32> to vector<8x32xf32>
    %455 = arith.mulf %454, %446 : vector<8x32xf32>
    %456 = arith.addf %453, %455 : vector<8x32xf32>
    %457 = vector.extract_strided_slice %437 {offsets = [0, 96], sizes = [8, 32], strides = [1, 1]} : vector<8x128xf32> to vector<8x32xf32>
    %458 = math.tanh %451 : vector<8x32xf32>
    %459 = arith.mulf %457, %458 : vector<8x32xf32>
    %460 = vector.extract_strided_slice %442 {offsets = [0, 96], sizes = [8, 32], strides = [1, 1]} : vector<8x128xf32> to vector<8x32xf32>
    %461 = math.tanh %456 : vector<8x32xf32>
    %462 = arith.mulf %460, %461 : vector<8x32xf32>
    %463 = arith.index_cast %420 : i32 to index
    %c0_114 = arith.constant 0 : index
    %464 = vector.load %arg14[%463, %c0_114] : memref<64x64xf32, #tpu.memory_space<vmem>>, vector<8x32xf32>
    tpu.vector_store %arg14[%463, %c0_114], %459 {strides = array<i32>} : memref<64x64xf32, #tpu.memory_space<vmem>>, vector<8x32xf32>,
    %465 = arith.index_cast %423 : i32 to index
    %c32_115 = arith.constant 32 : index
    %466 = vector.load %arg14[%465, %c32_115] : memref<64x64xf32, #tpu.memory_space<vmem>>, vector<8x32xf32>
    tpu.vector_store %arg14[%465, %c32_115], %462 {strides = array<i32>} : memref<64x64xf32, #tpu.memory_space<vmem>>, vector<8x32xf32>,
    %467 = tpu.concatenate %459, %462 in 1 : vector<8x32xf32>, vector<8x32xf32> -> vector<8x64xf32>
    %c1_i32_116 = arith.constant 1 : i32
    %c8_i32_117 = arith.constant 8 : i32
    %468 = arith.muli %c1_i32_116, %c8_i32_117 : i32
    %469 = tpu.assume_multiple %468, 8 : i32
    %c7_i32_118 = arith.constant 7 : i32
    %470 = arith.subi %c7_i32_118, %c1_i32_116 : i32
    %c8_i32_119 = arith.constant 8 : i32
    %471 = arith.muli %470, %c8_i32_119 : i32
    %472 = tpu.assume_multiple %471, 8 : i32
    %cst_120 = arith.constant dense<0.000000e+00> : vector<8x256xf32>
    %473 = tpu.matmul %467, %411, %cst_120 {dimension_numbers = #tpu.dot_dimension_numbers<[1], [0], [0], [1], [0, 0, 1, 1], [], []>} : vector<8x64xf32>, vector<64x256xf32>, vector<8x256xf32> -> vector<8x256xf32>
    %474 = vector.extract_strided_slice %473 {offsets = [0, 0], sizes = [8, 128], strides = [1, 1]} : vector<8x256xf32> to vector<8x128xf32>
    %475 = arith.index_cast %469 : i32 to index
    %c0_121 = arith.constant 0 : index
    %476 = vector.load %arg13[%475, %c0_121] : memref<64x256xf32, #tpu.memory_space<vmem>>, vector<8x128xf32>
    %477 = arith.addf %474, %476 : vector<8x128xf32>
    %478 = vector.extract_strided_slice %473 {offsets = [0, 128], sizes = [8, 128], strides = [1, 1]} : vector<8x256xf32> to vector<8x128xf32>
    %479 = arith.index_cast %472 : i32 to index
    %c128_122 = arith.constant 128 : index
    %480 = vector.load %arg13[%479, %c128_122] : memref<64x256xf32, #tpu.memory_space<vmem>>, vector<8x128xf32>
    %481 = arith.addf %478, %480 : vector<8x128xf32>
    %482 = arith.negf %477 : vector<8x128xf32>
    %483 = math.exp %482 : vector<8x128xf32>
    %cst_123 = arith.constant 1.000000e+00 : f32
    %484 = vector.broadcast %cst_123 : f32 to vector<8x128xf32>
    %485 = arith.addf %484, %483 : vector<8x128xf32>
    %486 = arith.divf %484, %485 : vector<8x128xf32>
    %487 = arith.negf %481 : vector<8x128xf32>
    %488 = math.exp %487 : vector<8x128xf32>
    %cst_124 = arith.constant 1.000000e+00 : f32
    %489 = vector.broadcast %cst_124 : f32 to vector<8x128xf32>
    %490 = arith.addf %489, %488 : vector<8x128xf32>
    %491 = arith.divf %489, %490 : vector<8x128xf32>
    %492 = vector.extract_strided_slice %477 {offsets = [0, 64], sizes = [8, 32], strides = [1, 1]} : vector<8x128xf32> to vector<8x32xf32>
    %493 = math.tanh %492 : vector<8x32xf32>
    %494 = vector.extract_strided_slice %481 {offsets = [0, 64], sizes = [8, 32], strides = [1, 1]} : vector<8x128xf32> to vector<8x32xf32>
    %495 = math.tanh %494 : vector<8x32xf32>
    %496 = vector.extract_strided_slice %486 {offsets = [0, 32], sizes = [8, 32], strides = [1, 1]} : vector<8x128xf32> to vector<8x32xf32>
    %497 = arith.mulf %496, %451 : vector<8x32xf32>
    %498 = vector.extract_strided_slice %486 {offsets = [0, 0], sizes = [8, 32], strides = [1, 1]} : vector<8x128xf32> to vector<8x32xf32>
    %499 = arith.mulf %498, %493 : vector<8x32xf32>
    %500 = arith.addf %497, %499 : vector<8x32xf32>
    %501 = vector.extract_strided_slice %491 {offsets = [0, 32], sizes = [8, 32], strides = [1, 1]} : vector<8x128xf32> to vector<8x32xf32>
    %502 = arith.mulf %501, %456 : vector<8x32xf32>
    %503 = vector.extract_strided_slice %491 {offsets = [0, 0], sizes = [8, 32], strides = [1, 1]} : vector<8x128xf32> to vector<8x32xf32>
    %504 = arith.mulf %503, %495 : vector<8x32xf32>
    %505 = arith.addf %502, %504 : vector<8x32xf32>
    %506 = vector.extract_strided_slice %486 {offsets = [0, 96], sizes = [8, 32], strides = [1, 1]} : vector<8x128xf32> to vector<8x32xf32>
    %507 = math.tanh %500 : vector<8x32xf32>
    %508 = arith.mulf %506, %507 : vector<8x32xf32>
    %509 = vector.extract_strided_slice %491 {offsets = [0, 96], sizes = [8, 32], strides = [1, 1]} : vector<8x128xf32> to vector<8x32xf32>
    %510 = math.tanh %505 : vector<8x32xf32>
    %511 = arith.mulf %509, %510 : vector<8x32xf32>
    %512 = arith.index_cast %469 : i32 to index
    %c0_125 = arith.constant 0 : index
    %513 = vector.load %arg14[%512, %c0_125] : memref<64x64xf32, #tpu.memory_space<vmem>>, vector<8x32xf32>
    tpu.vector_store %arg14[%512, %c0_125], %508 {strides = array<i32>} : memref<64x64xf32, #tpu.memory_space<vmem>>, vector<8x32xf32>,
    %514 = arith.index_cast %472 : i32 to index
    %c32_126 = arith.constant 32 : index
    %515 = vector.load %arg14[%514, %c32_126] : memref<64x64xf32, #tpu.memory_space<vmem>>, vector<8x32xf32>
    tpu.vector_store %arg14[%514, %c32_126], %511 {strides = array<i32>} : memref<64x64xf32, #tpu.memory_space<vmem>>, vector<8x32xf32>,
    %516 = tpu.concatenate %508, %511 in 1 : vector<8x32xf32>, vector<8x32xf32> -> vector<8x64xf32>
    %c2_i32_127 = arith.constant 2 : i32
    %c8_i32_128 = arith.constant 8 : i32
    %517 = arith.muli %c2_i32_127, %c8_i32_128 : i32
    %518 = tpu.assume_multiple %517, 8 : i32
    %c7_i32_129 = arith.constant 7 : i32
    %519 = arith.subi %c7_i32_129, %c2_i32_127 : i32
    %c8_i32_130 = arith.constant 8 : i32
    %520 = arith.muli %519, %c8_i32_130 : i32
    %521 = tpu.assume_multiple %520, 8 : i32
    %cst_131 = arith.constant dense<0.000000e+00> : vector<8x256xf32>
    %522 = tpu.matmul %516, %411, %cst_131 {dimension_numbers = #tpu.dot_dimension_numbers<[1], [0], [0], [1], [0, 0, 1, 1], [], []>} : vector<8x64xf32>, vector<64x256xf32>, vector<8x256xf32> -> vector<8x256xf32>
    %523 = vector.extract_strided_slice %522 {offsets = [0, 0], sizes = [8, 128], strides = [1, 1]} : vector<8x256xf32> to vector<8x128xf32>
    %524 = arith.index_cast %518 : i32 to index
    %c0_132 = arith.constant 0 : index
    %525 = vector.load %arg13[%524, %c0_132] : memref<64x256xf32, #tpu.memory_space<vmem>>, vector<8x128xf32>
    %526 = arith.addf %523, %525 : vector<8x128xf32>
    %527 = vector.extract_strided_slice %522 {offsets = [0, 128], sizes = [8, 128], strides = [1, 1]} : vector<8x256xf32> to vector<8x128xf32>
    %528 = arith.index_cast %521 : i32 to index
    %c128_133 = arith.constant 128 : index
    %529 = vector.load %arg13[%528, %c128_133] : memref<64x256xf32, #tpu.memory_space<vmem>>, vector<8x128xf32>
    %530 = arith.addf %527, %529 : vector<8x128xf32>
    %531 = arith.negf %526 : vector<8x128xf32>
    %532 = math.exp %531 : vector<8x128xf32>
    %cst_134 = arith.constant 1.000000e+00 : f32
    %533 = vector.broadcast %cst_134 : f32 to vector<8x128xf32>
    %534 = arith.addf %533, %532 : vector<8x128xf32>
    %535 = arith.divf %533, %534 : vector<8x128xf32>
    %536 = arith.negf %530 : vector<8x128xf32>
    %537 = math.exp %536 : vector<8x128xf32>
    %cst_135 = arith.constant 1.000000e+00 : f32
    %538 = vector.broadcast %cst_135 : f32 to vector<8x128xf32>
    %539 = arith.addf %538, %537 : vector<8x128xf32>
    %540 = arith.divf %538, %539 : vector<8x128xf32>
    %541 = vector.extract_strided_slice %526 {offsets = [0, 64], sizes = [8, 32], strides = [1, 1]} : vector<8x128xf32> to vector<8x32xf32>
    %542 = math.tanh %541 : vector<8x32xf32>
    %543 = vector.extract_strided_slice %530 {offsets = [0, 64], sizes = [8, 32], strides = [1, 1]} : vector<8x128xf32> to vector<8x32xf32>
    %544 = math.tanh %543 : vector<8x32xf32>
    %545 = vector.extract_strided_slice %535 {offsets = [0, 32], sizes = [8, 32], strides = [1, 1]} : vector<8x128xf32> to vector<8x32xf32>
    %546 = arith.mulf %545, %500 : vector<8x32xf32>
    %547 = vector.extract_strided_slice %535 {offsets = [0, 0], sizes = [8, 32], strides = [1, 1]} : vector<8x128xf32> to vector<8x32xf32>
    %548 = arith.mulf %547, %542 : vector<8x32xf32>
    %549 = arith.addf %546, %548 : vector<8x32xf32>
    %550 = vector.extract_strided_slice %540 {offsets = [0, 32], sizes = [8, 32], strides = [1, 1]} : vector<8x128xf32> to vector<8x32xf32>
    %551 = arith.mulf %550, %505 : vector<8x32xf32>
    %552 = vector.extract_strided_slice %540 {offsets = [0, 0], sizes = [8, 32], strides = [1, 1]} : vector<8x128xf32> to vector<8x32xf32>
    %553 = arith.mulf %552, %544 : vector<8x32xf32>
    %554 = arith.addf %551, %553 : vector<8x32xf32>
    %555 = vector.extract_strided_slice %535 {offsets = [0, 96], sizes = [8, 32], strides = [1, 1]} : vector<8x128xf32> to vector<8x32xf32>
    %556 = math.tanh %549 : vector<8x32xf32>
    %557 = arith.mulf %555, %556 : vector<8x32xf32>
    %558 = vector.extract_strided_slice %540 {offsets = [0, 96], sizes = [8, 32], strides = [1, 1]} : vector<8x128xf32> to vector<8x32xf32>
    %559 = math.tanh %554 : vector<8x32xf32>
    %560 = arith.mulf %558, %559 : vector<8x32xf32>
    %561 = arith.index_cast %518 : i32 to index
    %c0_136 = arith.constant 0 : index
    %562 = vector.load %arg14[%561, %c0_136] : memref<64x64xf32, #tpu.memory_space<vmem>>, vector<8x32xf32>
    tpu.vector_store %arg14[%561, %c0_136], %557 {strides = array<i32>} : memref<64x64xf32, #tpu.memory_space<vmem>>, vector<8x32xf32>,
    %563 = arith.index_cast %521 : i32 to index
    %c32_137 = arith.constant 32 : index
    %564 = vector.load %arg14[%563, %c32_137] : memref<64x64xf32, #tpu.memory_space<vmem>>, vector<8x32xf32>
    tpu.vector_store %arg14[%563, %c32_137], %560 {strides = array<i32>} : memref<64x64xf32, #tpu.memory_space<vmem>>, vector<8x32xf32>,
    %565 = tpu.concatenate %557, %560 in 1 : vector<8x32xf32>, vector<8x32xf32> -> vector<8x64xf32>
    %c3_i32_138 = arith.constant 3 : i32
    %c8_i32_139 = arith.constant 8 : i32
    %566 = arith.muli %c3_i32_138, %c8_i32_139 : i32
    %567 = tpu.assume_multiple %566, 8 : i32
    %c7_i32_140 = arith.constant 7 : i32
    %568 = arith.subi %c7_i32_140, %c3_i32_138 : i32
    %c8_i32_141 = arith.constant 8 : i32
    %569 = arith.muli %568, %c8_i32_141 : i32
    %570 = tpu.assume_multiple %569, 8 : i32
    %cst_142 = arith.constant dense<0.000000e+00> : vector<8x256xf32>
    %571 = tpu.matmul %565, %411, %cst_142 {dimension_numbers = #tpu.dot_dimension_numbers<[1], [0], [0], [1], [0, 0, 1, 1], [], []>} : vector<8x64xf32>, vector<64x256xf32>, vector<8x256xf32> -> vector<8x256xf32>
    %572 = vector.extract_strided_slice %571 {offsets = [0, 0], sizes = [8, 128], strides = [1, 1]} : vector<8x256xf32> to vector<8x128xf32>
    %573 = arith.index_cast %567 : i32 to index
    %c0_143 = arith.constant 0 : index
    %574 = vector.load %arg13[%573, %c0_143] : memref<64x256xf32, #tpu.memory_space<vmem>>, vector<8x128xf32>
    %575 = arith.addf %572, %574 : vector<8x128xf32>
    %576 = vector.extract_strided_slice %571 {offsets = [0, 128], sizes = [8, 128], strides = [1, 1]} : vector<8x256xf32> to vector<8x128xf32>
    %577 = arith.index_cast %570 : i32 to index
    %c128_144 = arith.constant 128 : index
    %578 = vector.load %arg13[%577, %c128_144] : memref<64x256xf32, #tpu.memory_space<vmem>>, vector<8x128xf32>
    %579 = arith.addf %576, %578 : vector<8x128xf32>
    %580 = arith.negf %575 : vector<8x128xf32>
    %581 = math.exp %580 : vector<8x128xf32>
    %cst_145 = arith.constant 1.000000e+00 : f32
    %582 = vector.broadcast %cst_145 : f32 to vector<8x128xf32>
    %583 = arith.addf %582, %581 : vector<8x128xf32>
    %584 = arith.divf %582, %583 : vector<8x128xf32>
    %585 = arith.negf %579 : vector<8x128xf32>
    %586 = math.exp %585 : vector<8x128xf32>
    %cst_146 = arith.constant 1.000000e+00 : f32
    %587 = vector.broadcast %cst_146 : f32 to vector<8x128xf32>
    %588 = arith.addf %587, %586 : vector<8x128xf32>
    %589 = arith.divf %587, %588 : vector<8x128xf32>
    %590 = vector.extract_strided_slice %575 {offsets = [0, 64], sizes = [8, 32], strides = [1, 1]} : vector<8x128xf32> to vector<8x32xf32>
    %591 = math.tanh %590 : vector<8x32xf32>
    %592 = vector.extract_strided_slice %579 {offsets = [0, 64], sizes = [8, 32], strides = [1, 1]} : vector<8x128xf32> to vector<8x32xf32>
    %593 = math.tanh %592 : vector<8x32xf32>
    %594 = vector.extract_strided_slice %584 {offsets = [0, 32], sizes = [8, 32], strides = [1, 1]} : vector<8x128xf32> to vector<8x32xf32>
    %595 = arith.mulf %594, %549 : vector<8x32xf32>
    %596 = vector.extract_strided_slice %584 {offsets = [0, 0], sizes = [8, 32], strides = [1, 1]} : vector<8x128xf32> to vector<8x32xf32>
    %597 = arith.mulf %596, %591 : vector<8x32xf32>
    %598 = arith.addf %595, %597 : vector<8x32xf32>
    %599 = vector.extract_strided_slice %589 {offsets = [0, 32], sizes = [8, 32], strides = [1, 1]} : vector<8x128xf32> to vector<8x32xf32>
    %600 = arith.mulf %599, %554 : vector<8x32xf32>
    %601 = vector.extract_strided_slice %589 {offsets = [0, 0], sizes = [8, 32], strides = [1, 1]} : vector<8x128xf32> to vector<8x32xf32>
    %602 = arith.mulf %601, %593 : vector<8x32xf32>
    %603 = arith.addf %600, %602 : vector<8x32xf32>
    %604 = vector.extract_strided_slice %584 {offsets = [0, 96], sizes = [8, 32], strides = [1, 1]} : vector<8x128xf32> to vector<8x32xf32>
    %605 = math.tanh %598 : vector<8x32xf32>
    %606 = arith.mulf %604, %605 : vector<8x32xf32>
    %607 = vector.extract_strided_slice %589 {offsets = [0, 96], sizes = [8, 32], strides = [1, 1]} : vector<8x128xf32> to vector<8x32xf32>
    %608 = math.tanh %603 : vector<8x32xf32>
    %609 = arith.mulf %607, %608 : vector<8x32xf32>
    %610 = arith.index_cast %567 : i32 to index
    %c0_147 = arith.constant 0 : index
    %611 = vector.load %arg14[%610, %c0_147] : memref<64x64xf32, #tpu.memory_space<vmem>>, vector<8x32xf32>
    tpu.vector_store %arg14[%610, %c0_147], %606 {strides = array<i32>} : memref<64x64xf32, #tpu.memory_space<vmem>>, vector<8x32xf32>,
    %612 = arith.index_cast %570 : i32 to index
    %c32_148 = arith.constant 32 : index
    %613 = vector.load %arg14[%612, %c32_148] : memref<64x64xf32, #tpu.memory_space<vmem>>, vector<8x32xf32>
    tpu.vector_store %arg14[%612, %c32_148], %609 {strides = array<i32>} : memref<64x64xf32, #tpu.memory_space<vmem>>, vector<8x32xf32>,
    %614 = tpu.concatenate %606, %609 in 1 : vector<8x32xf32>, vector<8x32xf32> -> vector<8x64xf32>
    %c4_i32_149 = arith.constant 4 : i32
    %c8_i32_150 = arith.constant 8 : i32
    %615 = arith.muli %c4_i32_149, %c8_i32_150 : i32
    %616 = tpu.assume_multiple %615, 8 : i32
    %c7_i32_151 = arith.constant 7 : i32
    %617 = arith.subi %c7_i32_151, %c4_i32_149 : i32
    %c8_i32_152 = arith.constant 8 : i32
    %618 = arith.muli %617, %c8_i32_152 : i32
    %619 = tpu.assume_multiple %618, 8 : i32
    %cst_153 = arith.constant dense<0.000000e+00> : vector<8x256xf32>
    %620 = tpu.matmul %614, %411, %cst_153 {dimension_numbers = #tpu.dot_dimension_numbers<[1], [0], [0], [1], [0, 0, 1, 1], [], []>} : vector<8x64xf32>, vector<64x256xf32>, vector<8x256xf32> -> vector<8x256xf32>
    %621 = vector.extract_strided_slice %620 {offsets = [0, 0], sizes = [8, 128], strides = [1, 1]} : vector<8x256xf32> to vector<8x128xf32>
    %622 = arith.index_cast %616 : i32 to index
    %c0_154 = arith.constant 0 : index
    %623 = vector.load %arg13[%622, %c0_154] : memref<64x256xf32, #tpu.memory_space<vmem>>, vector<8x128xf32>
    %624 = arith.addf %621, %623 : vector<8x128xf32>
    %625 = vector.extract_strided_slice %620 {offsets = [0, 128], sizes = [8, 128], strides = [1, 1]} : vector<8x256xf32> to vector<8x128xf32>
    %626 = arith.index_cast %619 : i32 to index
    %c128_155 = arith.constant 128 : index
    %627 = vector.load %arg13[%626, %c128_155] : memref<64x256xf32, #tpu.memory_space<vmem>>, vector<8x128xf32>
    %628 = arith.addf %625, %627 : vector<8x128xf32>
    %629 = arith.negf %624 : vector<8x128xf32>
    %630 = math.exp %629 : vector<8x128xf32>
    %cst_156 = arith.constant 1.000000e+00 : f32
    %631 = vector.broadcast %cst_156 : f32 to vector<8x128xf32>
    %632 = arith.addf %631, %630 : vector<8x128xf32>
    %633 = arith.divf %631, %632 : vector<8x128xf32>
    %634 = arith.negf %628 : vector<8x128xf32>
    %635 = math.exp %634 : vector<8x128xf32>
    %cst_157 = arith.constant 1.000000e+00 : f32
    %636 = vector.broadcast %cst_157 : f32 to vector<8x128xf32>
    %637 = arith.addf %636, %635 : vector<8x128xf32>
    %638 = arith.divf %636, %637 : vector<8x128xf32>
    %639 = vector.extract_strided_slice %624 {offsets = [0, 64], sizes = [8, 32], strides = [1, 1]} : vector<8x128xf32> to vector<8x32xf32>
    %640 = math.tanh %639 : vector<8x32xf32>
    %641 = vector.extract_strided_slice %628 {offsets = [0, 64], sizes = [8, 32], strides = [1, 1]} : vector<8x128xf32> to vector<8x32xf32>
    %642 = math.tanh %641 : vector<8x32xf32>
    %643 = vector.extract_strided_slice %633 {offsets = [0, 32], sizes = [8, 32], strides = [1, 1]} : vector<8x128xf32> to vector<8x32xf32>
    %644 = arith.mulf %643, %598 : vector<8x32xf32>
    %645 = vector.extract_strided_slice %633 {offsets = [0, 0], sizes = [8, 32], strides = [1, 1]} : vector<8x128xf32> to vector<8x32xf32>
    %646 = arith.mulf %645, %640 : vector<8x32xf32>
    %647 = arith.addf %644, %646 : vector<8x32xf32>
    %648 = vector.extract_strided_slice %638 {offsets = [0, 32], sizes = [8, 32], strides = [1, 1]} : vector<8x128xf32> to vector<8x32xf32>
    %649 = arith.mulf %648, %603 : vector<8x32xf32>
    %650 = vector.extract_strided_slice %638 {offsets = [0, 0], sizes = [8, 32], strides = [1, 1]} : vector<8x128xf32> to vector<8x32xf32>
    %651 = arith.mulf %650, %642 : vector<8x32xf32>
    %652 = arith.addf %649, %651 : vector<8x32xf32>
    %653 = vector.extract_strided_slice %633 {offsets = [0, 96], sizes = [8, 32], strides = [1, 1]} : vector<8x128xf32> to vector<8x32xf32>
    %654 = math.tanh %647 : vector<8x32xf32>
    %655 = arith.mulf %653, %654 : vector<8x32xf32>
    %656 = vector.extract_strided_slice %638 {offsets = [0, 96], sizes = [8, 32], strides = [1, 1]} : vector<8x128xf32> to vector<8x32xf32>
    %657 = math.tanh %652 : vector<8x32xf32>
    %658 = arith.mulf %656, %657 : vector<8x32xf32>
    %659 = arith.index_cast %616 : i32 to index
    %c0_158 = arith.constant 0 : index
    %660 = vector.load %arg14[%659, %c0_158] : memref<64x64xf32, #tpu.memory_space<vmem>>, vector<8x32xf32>
    tpu.vector_store %arg14[%659, %c0_158], %655 {strides = array<i32>} : memref<64x64xf32, #tpu.memory_space<vmem>>, vector<8x32xf32>,
    %661 = arith.index_cast %619 : i32 to index
    %c32_159 = arith.constant 32 : index
    %662 = vector.load %arg14[%661, %c32_159] : memref<64x64xf32, #tpu.memory_space<vmem>>, vector<8x32xf32>
    tpu.vector_store %arg14[%661, %c32_159], %658 {strides = array<i32>} : memref<64x64xf32, #tpu.memory_space<vmem>>, vector<8x32xf32>,
    %663 = tpu.concatenate %655, %658 in 1 : vector<8x32xf32>, vector<8x32xf32> -> vector<8x64xf32>
    %c5_i32_160 = arith.constant 5 : i32
    %c8_i32_161 = arith.constant 8 : i32
    %664 = arith.muli %c5_i32_160, %c8_i32_161 : i32
    %665 = tpu.assume_multiple %664, 8 : i32
    %c7_i32_162 = arith.constant 7 : i32
    %666 = arith.subi %c7_i32_162, %c5_i32_160 : i32
    %c8_i32_163 = arith.constant 8 : i32
    %667 = arith.muli %666, %c8_i32_163 : i32
    %668 = tpu.assume_multiple %667, 8 : i32
    %cst_164 = arith.constant dense<0.000000e+00> : vector<8x256xf32>
    %669 = tpu.matmul %663, %411, %cst_164 {dimension_numbers = #tpu.dot_dimension_numbers<[1], [0], [0], [1], [0, 0, 1, 1], [], []>} : vector<8x64xf32>, vector<64x256xf32>, vector<8x256xf32> -> vector<8x256xf32>
    %670 = vector.extract_strided_slice %669 {offsets = [0, 0], sizes = [8, 128], strides = [1, 1]} : vector<8x256xf32> to vector<8x128xf32>
    %671 = arith.index_cast %665 : i32 to index
    %c0_165 = arith.constant 0 : index
    %672 = vector.load %arg13[%671, %c0_165] : memref<64x256xf32, #tpu.memory_space<vmem>>, vector<8x128xf32>
    %673 = arith.addf %670, %672 : vector<8x128xf32>
    %674 = vector.extract_strided_slice %669 {offsets = [0, 128], sizes = [8, 128], strides = [1, 1]} : vector<8x256xf32> to vector<8x128xf32>
    %675 = arith.index_cast %668 : i32 to index
    %c128_166 = arith.constant 128 : index
    %676 = vector.load %arg13[%675, %c128_166] : memref<64x256xf32, #tpu.memory_space<vmem>>, vector<8x128xf32>
    %677 = arith.addf %674, %676 : vector<8x128xf32>
    %678 = arith.negf %673 : vector<8x128xf32>
    %679 = math.exp %678 : vector<8x128xf32>
    %cst_167 = arith.constant 1.000000e+00 : f32
    %680 = vector.broadcast %cst_167 : f32 to vector<8x128xf32>
    %681 = arith.addf %680, %679 : vector<8x128xf32>
    %682 = arith.divf %680, %681 : vector<8x128xf32>
    %683 = arith.negf %677 : vector<8x128xf32>
    %684 = math.exp %683 : vector<8x128xf32>
    %cst_168 = arith.constant 1.000000e+00 : f32
    %685 = vector.broadcast %cst_168 : f32 to vector<8x128xf32>
    %686 = arith.addf %685, %684 : vector<8x128xf32>
    %687 = arith.divf %685, %686 : vector<8x128xf32>
    %688 = vector.extract_strided_slice %673 {offsets = [0, 64], sizes = [8, 32], strides = [1, 1]} : vector<8x128xf32> to vector<8x32xf32>
    %689 = math.tanh %688 : vector<8x32xf32>
    %690 = vector.extract_strided_slice %677 {offsets = [0, 64], sizes = [8, 32], strides = [1, 1]} : vector<8x128xf32> to vector<8x32xf32>
    %691 = math.tanh %690 : vector<8x32xf32>
    %692 = vector.extract_strided_slice %682 {offsets = [0, 32], sizes = [8, 32], strides = [1, 1]} : vector<8x128xf32> to vector<8x32xf32>
    %693 = arith.mulf %692, %647 : vector<8x32xf32>
    %694 = vector.extract_strided_slice %682 {offsets = [0, 0], sizes = [8, 32], strides = [1, 1]} : vector<8x128xf32> to vector<8x32xf32>
    %695 = arith.mulf %694, %689 : vector<8x32xf32>
    %696 = arith.addf %693, %695 : vector<8x32xf32>
    %697 = vector.extract_strided_slice %687 {offsets = [0, 32], sizes = [8, 32], strides = [1, 1]} : vector<8x128xf32> to vector<8x32xf32>
    %698 = arith.mulf %697, %652 : vector<8x32xf32>
    %699 = vector.extract_strided_slice %687 {offsets = [0, 0], sizes = [8, 32], strides = [1, 1]} : vector<8x128xf32> to vector<8x32xf32>
    %700 = arith.mulf %699, %691 : vector<8x32xf32>
    %701 = arith.addf %698, %700 : vector<8x32xf32>
    %702 = vector.extract_strided_slice %682 {offsets = [0, 96], sizes = [8, 32], strides = [1, 1]} : vector<8x128xf32> to vector<8x32xf32>
    %703 = math.tanh %696 : vector<8x32xf32>
    %704 = arith.mulf %702, %703 : vector<8x32xf32>
    %705 = vector.extract_strided_slice %687 {offsets = [0, 96], sizes = [8, 32], strides = [1, 1]} : vector<8x128xf32> to vector<8x32xf32>
    %706 = math.tanh %701 : vector<8x32xf32>
    %707 = arith.mulf %705, %706 : vector<8x32xf32>
    %708 = arith.index_cast %665 : i32 to index
    %c0_169 = arith.constant 0 : index
    %709 = vector.load %arg14[%708, %c0_169] : memref<64x64xf32, #tpu.memory_space<vmem>>, vector<8x32xf32>
    tpu.vector_store %arg14[%708, %c0_169], %704 {strides = array<i32>} : memref<64x64xf32, #tpu.memory_space<vmem>>, vector<8x32xf32>,
    %710 = arith.index_cast %668 : i32 to index
    %c32_170 = arith.constant 32 : index
    %711 = vector.load %arg14[%710, %c32_170] : memref<64x64xf32, #tpu.memory_space<vmem>>, vector<8x32xf32>
    tpu.vector_store %arg14[%710, %c32_170], %707 {strides = array<i32>} : memref<64x64xf32, #tpu.memory_space<vmem>>, vector<8x32xf32>,
    %712 = tpu.concatenate %704, %707 in 1 : vector<8x32xf32>, vector<8x32xf32> -> vector<8x64xf32>
    %c6_i32_171 = arith.constant 6 : i32
    %c8_i32_172 = arith.constant 8 : i32
    %713 = arith.muli %c6_i32_171, %c8_i32_172 : i32
    %714 = tpu.assume_multiple %713, 8 : i32
    %c7_i32_173 = arith.constant 7 : i32
    %715 = arith.subi %c7_i32_173, %c6_i32_171 : i32
    %c8_i32_174 = arith.constant 8 : i32
    %716 = arith.muli %715, %c8_i32_174 : i32
    %717 = tpu.assume_multiple %716, 8 : i32
    %cst_175 = arith.constant dense<0.000000e+00> : vector<8x256xf32>
    %718 = tpu.matmul %712, %411, %cst_175 {dimension_numbers = #tpu.dot_dimension_numbers<[1], [0], [0], [1], [0, 0, 1, 1], [], []>} : vector<8x64xf32>, vector<64x256xf32>, vector<8x256xf32> -> vector<8x256xf32>
    %719 = vector.extract_strided_slice %718 {offsets = [0, 0], sizes = [8, 128], strides = [1, 1]} : vector<8x256xf32> to vector<8x128xf32>
    %720 = arith.index_cast %714 : i32 to index
    %c0_176 = arith.constant 0 : index
    %721 = vector.load %arg13[%720, %c0_176] : memref<64x256xf32, #tpu.memory_space<vmem>>, vector<8x128xf32>
    %722 = arith.addf %719, %721 : vector<8x128xf32>
    %723 = vector.extract_strided_slice %718 {offsets = [0, 128], sizes = [8, 128], strides = [1, 1]} : vector<8x256xf32> to vector<8x128xf32>
    %724 = arith.index_cast %717 : i32 to index
    %c128_177 = arith.constant 128 : index
    %725 = vector.load %arg13[%724, %c128_177] : memref<64x256xf32, #tpu.memory_space<vmem>>, vector<8x128xf32>
    %726 = arith.addf %723, %725 : vector<8x128xf32>
    %727 = arith.negf %722 : vector<8x128xf32>
    %728 = math.exp %727 : vector<8x128xf32>
    %cst_178 = arith.constant 1.000000e+00 : f32
    %729 = vector.broadcast %cst_178 : f32 to vector<8x128xf32>
    %730 = arith.addf %729, %728 : vector<8x128xf32>
    %731 = arith.divf %729, %730 : vector<8x128xf32>
    %732 = arith.negf %726 : vector<8x128xf32>
    %733 = math.exp %732 : vector<8x128xf32>
    %cst_179 = arith.constant 1.000000e+00 : f32
    %734 = vector.broadcast %cst_179 : f32 to vector<8x128xf32>
    %735 = arith.addf %734, %733 : vector<8x128xf32>
    %736 = arith.divf %734, %735 : vector<8x128xf32>
    %737 = vector.extract_strided_slice %722 {offsets = [0, 64], sizes = [8, 32], strides = [1, 1]} : vector<8x128xf32> to vector<8x32xf32>
    %738 = math.tanh %737 : vector<8x32xf32>
    %739 = vector.extract_strided_slice %726 {offsets = [0, 64], sizes = [8, 32], strides = [1, 1]} : vector<8x128xf32> to vector<8x32xf32>
    %740 = math.tanh %739 : vector<8x32xf32>
    %741 = vector.extract_strided_slice %731 {offsets = [0, 32], sizes = [8, 32], strides = [1, 1]} : vector<8x128xf32> to vector<8x32xf32>
    %742 = arith.mulf %741, %696 : vector<8x32xf32>
    %743 = vector.extract_strided_slice %731 {offsets = [0, 0], sizes = [8, 32], strides = [1, 1]} : vector<8x128xf32> to vector<8x32xf32>
    %744 = arith.mulf %743, %738 : vector<8x32xf32>
    %745 = arith.addf %742, %744 : vector<8x32xf32>
    %746 = vector.extract_strided_slice %736 {offsets = [0, 32], sizes = [8, 32], strides = [1, 1]} : vector<8x128xf32> to vector<8x32xf32>
    %747 = arith.mulf %746, %701 : vector<8x32xf32>
    %748 = vector.extract_strided_slice %736 {offsets = [0, 0], sizes = [8, 32], strides = [1, 1]} : vector<8x128xf32> to vector<8x32xf32>
    %749 = arith.mulf %748, %740 : vector<8x32xf32>
    %750 = arith.addf %747, %749 : vector<8x32xf32>
    %751 = vector.extract_strided_slice %731 {offsets = [0, 96], sizes = [8, 32], strides = [1, 1]} : vector<8x128xf32> to vector<8x32xf32>
    %752 = math.tanh %745 : vector<8x32xf32>
    %753 = arith.mulf %751, %752 : vector<8x32xf32>
    %754 = vector.extract_strided_slice %736 {offsets = [0, 96], sizes = [8, 32], strides = [1, 1]} : vector<8x128xf32> to vector<8x32xf32>
    %755 = math.tanh %750 : vector<8x32xf32>
    %756 = arith.mulf %754, %755 : vector<8x32xf32>
    %757 = arith.index_cast %714 : i32 to index
    %c0_180 = arith.constant 0 : index
    %758 = vector.load %arg14[%757, %c0_180] : memref<64x64xf32, #tpu.memory_space<vmem>>, vector<8x32xf32>
    tpu.vector_store %arg14[%757, %c0_180], %753 {strides = array<i32>} : memref<64x64xf32, #tpu.memory_space<vmem>>, vector<8x32xf32>,
    %759 = arith.index_cast %717 : i32 to index
    %c32_181 = arith.constant 32 : index
    %760 = vector.load %arg14[%759, %c32_181] : memref<64x64xf32, #tpu.memory_space<vmem>>, vector<8x32xf32>
    tpu.vector_store %arg14[%759, %c32_181], %756 {strides = array<i32>} : memref<64x64xf32, #tpu.memory_space<vmem>>, vector<8x32xf32>,
    %761 = tpu.concatenate %753, %756 in 1 : vector<8x32xf32>, vector<8x32xf32> -> vector<8x64xf32>
    %c7_i32_182 = arith.constant 7 : i32
    %c8_i32_183 = arith.constant 8 : i32
    %762 = arith.muli %c7_i32_182, %c8_i32_183 : i32
    %763 = tpu.assume_multiple %762, 8 : i32
    %c7_i32_184 = arith.constant 7 : i32
    %764 = arith.subi %c7_i32_184, %c7_i32_182 : i32
    %c8_i32_185 = arith.constant 8 : i32
    %765 = arith.muli %764, %c8_i32_185 : i32
    %766 = tpu.assume_multiple %765, 8 : i32
    %cst_186 = arith.constant dense<0.000000e+00> : vector<8x256xf32>
    %767 = tpu.matmul %761, %411, %cst_186 {dimension_numbers = #tpu.dot_dimension_numbers<[1], [0], [0], [1], [0, 0, 1, 1], [], []>} : vector<8x64xf32>, vector<64x256xf32>, vector<8x256xf32> -> vector<8x256xf32>
    %768 = vector.extract_strided_slice %767 {offsets = [0, 0], sizes = [8, 128], strides = [1, 1]} : vector<8x256xf32> to vector<8x128xf32>
    %769 = arith.index_cast %763 : i32 to index
    %c0_187 = arith.constant 0 : index
    %770 = vector.load %arg13[%769, %c0_187] : memref<64x256xf32, #tpu.memory_space<vmem>>, vector<8x128xf32>
    %771 = arith.addf %768, %770 : vector<8x128xf32>
    %772 = vector.extract_strided_slice %767 {offsets = [0, 128], sizes = [8, 128], strides = [1, 1]} : vector<8x256xf32> to vector<8x128xf32>
    %773 = arith.index_cast %766 : i32 to index
    %c128_188 = arith.constant 128 : index
    %774 = vector.load %arg13[%773, %c128_188] : memref<64x256xf32, #tpu.memory_space<vmem>>, vector<8x128xf32>
    %775 = arith.addf %772, %774 : vector<8x128xf32>
    %776 = arith.negf %771 : vector<8x128xf32>
    %777 = math.exp %776 : vector<8x128xf32>
    %cst_189 = arith.constant 1.000000e+00 : f32
    %778 = vector.broadcast %cst_189 : f32 to vector<8x128xf32>
    %779 = arith.addf %778, %777 : vector<8x128xf32>
    %780 = arith.divf %778, %779 : vector<8x128xf32>
    %781 = arith.negf %775 : vector<8x128xf32>
    %782 = math.exp %781 : vector<8x128xf32>
    %cst_190 = arith.constant 1.000000e+00 : f32
    %783 = vector.broadcast %cst_190 : f32 to vector<8x128xf32>
    %784 = arith.addf %783, %782 : vector<8x128xf32>
    %785 = arith.divf %783, %784 : vector<8x128xf32>
    %786 = vector.extract_strided_slice %771 {offsets = [0, 64], sizes = [8, 32], strides = [1, 1]} : vector<8x128xf32> to vector<8x32xf32>
    %787 = math.tanh %786 : vector<8x32xf32>
    %788 = vector.extract_strided_slice %775 {offsets = [0, 64], sizes = [8, 32], strides = [1, 1]} : vector<8x128xf32> to vector<8x32xf32>
    %789 = math.tanh %788 : vector<8x32xf32>
    %790 = vector.extract_strided_slice %780 {offsets = [0, 32], sizes = [8, 32], strides = [1, 1]} : vector<8x128xf32> to vector<8x32xf32>
    %791 = arith.mulf %790, %745 : vector<8x32xf32>
    %792 = vector.extract_strided_slice %780 {offsets = [0, 0], sizes = [8, 32], strides = [1, 1]} : vector<8x128xf32> to vector<8x32xf32>
    %793 = arith.mulf %792, %787 : vector<8x32xf32>
    %794 = arith.addf %791, %793 : vector<8x32xf32>
    %795 = vector.extract_strided_slice %785 {offsets = [0, 32], sizes = [8, 32], strides = [1, 1]} : vector<8x128xf32> to vector<8x32xf32>
    %796 = arith.mulf %795, %750 : vector<8x32xf32>
    %797 = vector.extract_strided_slice %785 {offsets = [0, 0], sizes = [8, 32], strides = [1, 1]} : vector<8x128xf32> to vector<8x32xf32>
    %798 = arith.mulf %797, %789 : vector<8x32xf32>
    %799 = arith.addf %796, %798 : vector<8x32xf32>
    %800 = vector.extract_strided_slice %780 {offsets = [0, 96], sizes = [8, 32], strides = [1, 1]} : vector<8x128xf32> to vector<8x32xf32>
    %801 = math.tanh %794 : vector<8x32xf32>
    %802 = arith.mulf %800, %801 : vector<8x32xf32>
    %803 = vector.extract_strided_slice %785 {offsets = [0, 96], sizes = [8, 32], strides = [1, 1]} : vector<8x128xf32> to vector<8x32xf32>
    %804 = math.tanh %799 : vector<8x32xf32>
    %805 = arith.mulf %803, %804 : vector<8x32xf32>
    %806 = arith.index_cast %763 : i32 to index
    %c0_191 = arith.constant 0 : index
    %807 = vector.load %arg14[%806, %c0_191] : memref<64x64xf32, #tpu.memory_space<vmem>>, vector<8x32xf32>
    tpu.vector_store %arg14[%806, %c0_191], %802 {strides = array<i32>} : memref<64x64xf32, #tpu.memory_space<vmem>>, vector<8x32xf32>,
    %808 = arith.index_cast %766 : i32 to index
    %c32_192 = arith.constant 32 : index
    %809 = vector.load %arg14[%808, %c32_192] : memref<64x64xf32, #tpu.memory_space<vmem>>, vector<8x32xf32>
    tpu.vector_store %arg14[%808, %c32_192], %805 {strides = array<i32>} : memref<64x64xf32, #tpu.memory_space<vmem>>, vector<8x32xf32>,
    %810 = tpu.concatenate %802, %805 in 1 : vector<8x32xf32>, vector<8x32xf32> -> vector<8x64xf32>
    %c8_i32_193 = arith.constant 8 : i32
    %c0_194 = arith.constant 0 : index
    %c0_195 = arith.constant 0 : index
    %811 = vector.load %arg8[%c0_194, %c0_195] : memref<64x5xf32, #tpu.memory_space<vmem>>, vector<64x5xf32>
    %cst_196 = arith.constant dense<0.000000e+00> : vector<8x5xf32>
    %812 = tpu.matmul %810, %811, %cst_196 {dimension_numbers = #tpu.dot_dimension_numbers<[1], [0], [0], [1], [0, 0, 1, 1], [], []>} : vector<8x64xf32>, vector<64x5xf32>, vector<8x5xf32> -> vector<8x5xf32>
    %c0_197 = arith.constant 0 : index
    %c0_198 = arith.constant 0 : index
    %813 = vector.load %arg9[%c0_197, %c0_198] : memref<1x5xf32, #tpu.memory_space<vmem>>, vector<1x5xf32>
    %814 = vector.broadcast %813 : vector<1x5xf32> to vector<8x5xf32>
    %815 = arith.addf %812, %814 : vector<8x5xf32>
    %cst_199 = arith.constant 0.000000e+00 : f32
    %816 = vector.broadcast %cst_199 : f32 to vector<8x5xf32>
    %817 = arith.maximumf %815, %816 : vector<8x5xf32>
    %c0_200 = arith.constant 0 : index
    %c0_201 = arith.constant 0 : index
    %818 = vector.load %arg10[%c0_200, %c0_201] : memref<5x1xf32, #tpu.memory_space<vmem>>, vector<5x1xf32>
    %cst_202 = arith.constant dense<0.000000e+00> : vector<8x1xf32>
    %819 = tpu.matmul %817, %818, %cst_202 {dimension_numbers = #tpu.dot_dimension_numbers<[1], [0], [0], [1], [0, 0, 1, 1], [], []>} : vector<8x5xf32>, vector<5x1xf32>, vector<8x1xf32> -> vector<8x1xf32>
    %c0_203 = arith.constant 0 : index
    %c0_204 = arith.constant 0 : index
    %820 = vector.load %arg11[%c0_203, %c0_204] : memref<1x1xf32, #tpu.memory_space<vmem>>, vector<1x1xf32>
    %821 = vector.broadcast %820 : vector<1x1xf32> to vector<8x1xf32>
    %822 = arith.addf %819, %821 : vector<8x1xf32>
    %823 = arith.negf %822 : vector<8x1xf32>
    %824 = math.exp %823 : vector<8x1xf32>
    %cst_205 = arith.constant 1.000000e+00 : f32
    %825 = vector.broadcast %cst_205 : f32 to vector<8x1xf32>
    %826 = arith.addf %825, %824 : vector<8x1xf32>
    %827 = arith.divf %825, %826 : vector<8x1xf32>
    %828 = vector.extract_strided_slice %827 {offsets = [0, 0], sizes = [2, 1], strides = [1, 1]} : vector<8x1xf32> to vector<2x1xf32>
    %c0_206 = arith.constant 0 : index
    %c0_207 = arith.constant 0 : index
    %829 = vector.load %arg12[%c0_206, %c0_207] : memref<2x1xf32, #tpu.memory_space<vmem>>, vector<2x1xf32>
    tpu.vector_store %arg12[%c0_206, %c0_207], %828 {strides = array<i32>} : memref<2x1xf32, #tpu.memory_space<vmem>>, vector<2x1xf32>,
    return
  }
}

</mosaic_0001>

<llo_original>
// kernel: tpu_custom_call.1
$region0: #{tpu_custom_call.1}
  #allocation0 [shape = 'u32[]', space=smem, size = 0x4, offset = 0x4, fixed_abs, tag = 'smem constant byte address 0x4 - core index']
  #allocation1 [shape = 'u32[144,128]{1,0:T(1,128)}', space=vmem, size = 0x12000, scoped, tag = 'internal scratch']
  #allocation2 [shape = 'f32[64,256]{1,0:T(8,128)}', space=vmem, size = 0x10000, scoped, tag = 'scratch operand']
  #allocation3 [shape = 'f32[64,64]{1,0:T(8,128)}', space=vmem, size = 0x8000, scoped, tag = 'scratch operand']
  #allocation4 [shape = 'f32[1,1]{1,0:T(1,128)S(1)}', space=vmem, size = 0x200, scoped, tag = 'scoped memory for tpu_custom_call.1']
  %s0 = inlined_call_operand.vmem [shape: s32[64,1], index: 0, kind: input, shape index: {}]
  %s1 = inlined_call_operand.vmem [shape: f32[32,16], index: 1, kind: input, shape index: {}]
  %s2 = inlined_call_operand.vmem [shape: f32[16,256], index: 2, kind: input, shape index: {}]
  %s3 = inlined_call_operand.vmem [shape: f32[64,256], index: 3, kind: input, shape index: {}]
  %s4 = inlined_call_operand.vmem [shape: f32[1,256], index: 4, kind: input, shape index: {}]
  %s5 = inlined_call_operand.hbm [shape: f32[64,256], index: 5, kind: input, shape index: {}]
  %s6 = inlined_call_operand.hbm [shape: f32[64,256], index: 6, kind: input, shape index: {}]
  %s7 = inlined_call_operand.vmem [shape: f32[1,256], index: 7, kind: input, shape index: {}]
  %s8 = inlined_call_operand.vmem [shape: f32[64,5], index: 8, kind: input, shape index: {}]
  %s9 = inlined_call_operand.vmem [shape: f32[1,5], index: 9, kind: input, shape index: {}]
  %s10 = inlined_call_operand.vmem [shape: f32[5,1], index: 10, kind: input, shape index: {}]
  %s11 = inlined_call_operand.<no memory space> [shape: f32[1,1], index: 11, kind: input, shape index: {}]
  %s12 = inlined_call_operand.vmem [shape: f32[2,1], index: 12, kind: output, shape index: {}]
  %s13 = sld [smem:[#allocation0]]
  $region66: #{tpu_custom_call.1} parent=0
    _
  %s15 = ssub.s32 1, %s13
  %s16 = scalar_select 0, %s15, %s13
  %v17 = vstv %s11
  %18 = vst [vmem:[#allocation4] sm:$0x1] %v17
  $region1: #{tpu_custom_call.1} parent=0
    #allocation5 [shape = 'u8[65536]{0}', space=vmem, size = 0x10000, scoped, tag = 'input window, operand 5, single buffered']
    #allocation6 [shape = 's32[1]{0}', space=sflag, size = 0x4, scoped, tag = 'scoped memory for tpu_custom_call.1']
    #allocation7 [shape = 'u8[65536]{0}', space=vmem, size = 0x10000, scoped, tag = 'input window, operand 6, single buffered']
    #allocation8 [shape = 's32[1]{0}', space=sflag, size = 0x4, scoped, tag = 'scoped memory for tpu_custom_call.1']
    %19 = vsyncpa [#allocation6], 0
    %20 = vsyncpa [#allocation8], 0
    // Predicated region
    $region2: #{tpu_custom_call.1} parent=1 // pred_check
      _
    $region3: #{tpu_custom_call.1} parent=1 // pred_check_branch
      %22 = sbr.rel (0) target = $region5
    $region4: #{tpu_custom_call.1} parent=1 // pred_region
      _
    $region5: #{tpu_custom_call.1} parent=1 // pred_fallthru
      _
    // Predicated region
    $region6: #{tpu_custom_call.1} parent=1 // pred_check
      _
    $region7: #{tpu_custom_call.1} parent=1 // pred_check_branch
      %24 = sbr.rel (0) target = $region9
    $region8: #{tpu_custom_call.1} parent=1 // pred_region
      _
    $region9: #{tpu_custom_call.1} parent=1 // pred_fallthru
      _
    // Predicated region
    $region10: #{tpu_custom_call.1} parent=1 // pred_check
      _
    $region11: #{tpu_custom_call.1} parent=1 // pred_check_branch
      %26 = sbr.rel (0) target = $region13
    $region12: #{tpu_custom_call.1} parent=1 // pred_region
      _
    $region13: #{tpu_custom_call.1} parent=1 // pred_fallthru
      _
    // Predicated region
    $region14: #{tpu_custom_call.1} parent=1 // pred_check
      _
    $region15: #{tpu_custom_call.1} parent=1 // pred_check_branch
      %28 = sbr.rel (0) target = $region17
    $region16: #{tpu_custom_call.1} parent=1 // pred_region
      _
    $region17: #{tpu_custom_call.1} parent=1 // pred_fallthru
      _
    // Predicated region
    $region18: #{tpu_custom_call.1} parent=1 // pred_check
      _
    $region19: #{tpu_custom_call.1} parent=1 // pred_check_branch
      %30 = sbr.rel (0) target = $region21
    $region20: #{tpu_custom_call.1} parent=1 // pred_region
      _
    $region21: #{tpu_custom_call.1} parent=1 // pred_fallthru
      _
    // Predicated region
    $region22: #{tpu_custom_call.1} parent=1 // pred_check
      _
    $region23: #{tpu_custom_call.1} parent=1 // pred_check_branch
      %32 = sbr.rel (0) target = $region25
    $region24: #{tpu_custom_call.1} parent=1 // pred_region
      %s34 = ssub.s32 2048, 2048
      %35 = vsyncadd [#allocation6], %s34
      %s36 = sshll.u32 [#allocation5], 4
      %s37 = int_to_ptr.vmem [resolvable:$true] %s36
      %42 = dma.hbm_to_vmem [thread:$0]  %s5, 2048, %s37, [#allocation6], 256, 256, 16
    $region25: #{tpu_custom_call.1} parent=1 // pred_fallthru
      _
    // Predicated region
    $region26: #{tpu_custom_call.1} parent=1 // pred_check
      _
    $region27: #{tpu_custom_call.1} parent=1 // pred_check_branch
      %44 = sbr.rel (0) target = $region29
    $region28: #{tpu_custom_call.1} parent=1 // pred_region
      %s46 = ssub.s32 2048, 2048
      %47 = vsyncadd [#allocation8], %s46
      %s48 = sshll.u32 [#allocation7], 4
      %s49 = int_to_ptr.vmem [resolvable:$true] %s48
      %54 = dma.hbm_to_vmem [thread:$0]  %s6, 2048, %s49, [#allocation8], 256, 256, 16
    $region29: #{tpu_custom_call.1} parent=1 // pred_fallthru
      _
    // Predicated region
    $region30: #{tpu_custom_call.1} parent=1 // pred_check
      _
    $region31: #{tpu_custom_call.1} parent=1 // pred_check_branch
      %56 = sbr.rel (0) target = $region33
    $region32: #{tpu_custom_call.1} parent=1 // pred_region
      _
    $region33: #{tpu_custom_call.1} parent=1 // pred_fallthru
      _
    // Predicated region
    $region34: #{tpu_custom_call.1} parent=1 // pred_check
      _
    $region35: #{tpu_custom_call.1} parent=1 // pred_check_branch
      %58 = sbr.rel (0) target = $region37
    $region36: #{tpu_custom_call.1} parent=1 // pred_region
      _
    $region37: #{tpu_custom_call.1} parent=1 // pred_fallthru
      _
    // Predicated region
    $region38: #{tpu_custom_call.1} parent=1 // pred_check
      _
    $region39: #{tpu_custom_call.1} parent=1 // pred_check_branch
      %60 = sbr.rel (0) target = $region41
    $region40: #{tpu_custom_call.1} parent=1 // pred_region
      _
    $region41: #{tpu_custom_call.1} parent=1 // pred_fallthru
      _
    // Predicated region
    $region42: #{tpu_custom_call.1} parent=1 // pred_check
      _
    $region43: #{tpu_custom_call.1} parent=1 // pred_check_branch
      %62 = sbr.rel (0) target = $region45
    $region44: #{tpu_custom_call.1} parent=1 // pred_region
      _
    $region45: #{tpu_custom_call.1} parent=1 // pred_fallthru
      _
    // Predicated region
    $region46: #{tpu_custom_call.1} parent=1 // pred_check
      _
    $region47: #{tpu_custom_call.1} parent=1 // pred_check_branch
      %64 = sbr.rel (0) target = $region49
    $region48: #{tpu_custom_call.1} parent=1 // pred_region
      _
    $region49: #{tpu_custom_call.1} parent=1 // pred_fallthru
      _
    // Predicated region
    $region50: #{tpu_custom_call.1} parent=1 // pred_check
      _
    $region51: #{tpu_custom_call.1} parent=1 // pred_check_branch
      %66 = sbr.rel (0) target = $region53
    $region52: #{tpu_custom_call.1} parent=1 // pred_region
      %67 = dma.done [#allocation6], 2048
    $region53: #{tpu_custom_call.1} parent=1 // pred_fallthru
      _
    // Predicated region
    $region54: #{tpu_custom_call.1} parent=1 // pred_check
      _
    $region55: #{tpu_custom_call.1} parent=1 // pred_check_branch
      %69 = sbr.rel (0) target = $region57
    $region56: #{tpu_custom_call.1} parent=1 // pred_region
      %70 = dma.done [#allocation8], 2048
    $region57: #{tpu_custom_call.1} parent=1 // pred_fallthru
      _
    %v71 = vld [vmem:[%s0] sm:$0xff]
    %v72 = vld [vmem:[%s0 + $0x8] sm:$0xff]
    %v73 = vld [vmem:[%s0 + $0x10] sm:$0xff]
    %v74 = vld [vmem:[%s0 + $0x18] sm:$0xff]
    %v75 = vld [vmem:[%s0 + $0x20] sm:$0xff]
    %v76 = vld [vmem:[%s0 + $0x28] sm:$0xff]
    %v77 = vld [vmem:[%s0 + $0x30] sm:$0xff]
    %v78 = vld [vmem:[%s0 + $0x38] sm:$0xff]
    %v79 = vlaneseq
    %v80 = vand.u32 %v79, 127
    %81 = vset.pattern.permute.xlu0 0
    %82 = vperm.xlu0 %81, %v71
    %v83 = vpop.permute.xlu0 %82
    %84 = vset.pattern.permute.xlu0 0
    %85 = vperm.xlu0 %84, %v72
    %v86 = vpop.permute.xlu0 %85
    %87 = vset.pattern.permute.xlu0 0
    %88 = vperm.xlu0 %87, %v73
    %v89 = vpop.permute.xlu0 %88
    %90 = vset.pattern.permute.xlu0 0
    %91 = vperm.xlu0 %90, %v74
    %v92 = vpop.permute.xlu0 %91
    %93 = vset.pattern.permute.xlu0 0
    %94 = vperm.xlu0 %93, %v75
    %v95 = vpop.permute.xlu0 %94
    %96 = vset.pattern.permute.xlu0 0
    %97 = vperm.xlu0 %96, %v76
    %v98 = vpop.permute.xlu0 %97
    %99 = vset.pattern.permute.xlu0 0
    %100 = vperm.xlu0 %99, %v77
    %v101 = vpop.permute.xlu0 %100
    %102 = vset.pattern.permute.xlu0 0
    %103 = vperm.xlu0 %102, %v78
    %v104 = vpop.permute.xlu0 %103
    %vm105 = vcmp.eq.s32.totalorder %v83, %v80
    %vm106 = vcmp.eq.s32.totalorder %v86, %v80
    %vm107 = vcmp.eq.s32.totalorder %v89, %v80
    %vm108 = vcmp.eq.s32.totalorder %v92, %v80
    %vm109 = vcmp.eq.s32.totalorder %v95, %v80
    %vm110 = vcmp.eq.s32.totalorder %v98, %v80
    %vm111 = vcmp.eq.s32.totalorder %v101, %v80
    %vm112 = vcmp.eq.s32.totalorder %v104, %v80
    %v113 = vsel %vm105, 1, 0
    %v114 = vsel %vm106, 1, 0
    %v115 = vsel %vm107, 1, 0
    %v116 = vsel %vm108, 1, 0
    %v117 = vsel %vm109, 1, 0
    %v118 = vsel %vm110, 1, 0
    %v119 = vsel %vm111, 1, 0
    %v120 = vsel %vm112, 1, 0
    %v121 = vcvt.s32.f32 %v113
    %v122 = vcvt.s32.f32 %v114
    %v123 = vcvt.s32.f32 %v115
    %v124 = vcvt.s32.f32 %v116
    %v125 = vcvt.s32.f32 %v117
    %v126 = vcvt.s32.f32 %v118
    %v127 = vcvt.s32.f32 %v119
    %v128 = vcvt.s32.f32 %v120
    %v129 = vld [vmem:[%s1] sm:$0xff]
    %v130 = vld [vmem:[%s1 + $0x8] sm:$0xff]
    %v131 = vld [vmem:[%s1 + $0x10] sm:$0xff]
    %v132 = vld [vmem:[%s1 + $0x18] sm:$0xff]
    %vm133 = vcmask 261120
    %v135 = vsel %vm133, %v121, 0
    %v138 = vsel %vm133, %v122, 0
    %v141 = vsel %vm133, %v123, 0
    %v144 = vsel %vm133, %v124, 0
    %v147 = vsel %vm133, %v125, 0
    %v150 = vsel %vm133, %v126, 0
    %v153 = vsel %vm133, %v127, 0
    %v156 = vsel %vm133, %v128, 0
    %158 = vmatprep.subr.mxu0 0.0
    %159 = vmatpush1.msra.mxu0 %v129
    %160 = vmatprep.subr.mxu0 0.0
    %161 = vmatpush1.msra.mxu0 %v130
    %162 = vmatprep.subr.mxu0 0.0
    %163 = vmatpush1.msra.mxu0 %v131
    %164 = vmatprep.subr.mxu0 0.0
    %165 = vmatpush1.msra.mxu0 %v132
    %166 = vmatprep.subr.mxu0 0.0
    %167 = vmatpush1.msra.mxu0 0.0
    %168 = vmatprep.subr.mxu0 0.0
    %169 = vmatpush1.msra.mxu0 0.0
    %170 = vmatprep.subr.mxu0 0.0
    %171 = vmatpush1.msra.mxu0 0.0
    %172 = vmatprep.subr.mxu0 0.0
    %173 = vmatpush1.msra.mxu0 0.0
    %174 = vmatprep.subr.mxu0 0.0
    %175 = vmatpush1.msra.mxu0 0.0
    %176 = vmatprep.subr.mxu0 0.0
    %177 = vmatpush1.msra.mxu0 0.0
    %178 = vmatprep.subr.mxu0 0.0
    %179 = vmatpush1.msra.mxu0 0.0
    %180 = vmatprep.subr.mxu0 0.0
    %181 = vmatpush1.msra.mxu0 0.0
    %182 = vmatprep.subr.mxu0 0.0
    %183 = vmatpush1.msra.mxu0 0.0
    %184 = vmatprep.subr.mxu0 0.0
    %185 = vmatpush1.msra.mxu0 0.0
    %186 = vmatprep.subr.mxu0 0.0
    %187 = vmatpush1.msra.mxu0 0.0
    %188 = vmatprep.subr.mxu0 0.0
    %189 = vmatpush1.msra.mxu0 0.0
    %190 = vmatprep.subr.mxu0 0.0
    %191 = vmatpush1.msra.mxu0 0.0
    %192 = vmatprep.subr.mxu0 0.0
    %193 = vmatpush1.msra.mxu0 0.0
    %194 = vmatprep.subr.mxu0 0.0
    %195 = vmatpush1.msra.mxu0 0.0
    %196 = vmatprep.subr.mxu0 0.0
    %197 = vmatpush1.msra.mxu0 0.0
    %198 = vmatprep.subr.mxu0 0.0
    %199 = vmatpush1.msra.mxu0 0.0
    %200 = vmatprep.subr.mxu0 0.0
    %201 = vmatpush1.msra.mxu0 0.0
    %202 = vmatprep.subr.mxu0 0.0
    %203 = vmatpush1.msra.mxu0 0.0
    %204 = vmatprep.subr.mxu0 0.0
    %205 = vmatpush1.msra.mxu0 0.0
    %206 = vmatprep.subr.mxu0 0.0
    %207 = vmatpush1.msra.mxu0 0.0
    %208 = vmatprep.subr.mxu0 0.0
    %209 = vmatpush1.msra.mxu0 0.0
    %210 = vmatprep.subr.mxu0 0.0
    %211 = vmatpush1.msra.mxu0 0.0
    %212 = vmatprep.subr.mxu0 0.0
    %213 = vmatpush1.msra.mxu0 0.0
    %214 = vmatprep.subr.mxu0 0.0
    %215 = vmatpush1.msra.mxu0 0.0
    %216 = vmatprep.subr.mxu0 0.0
    %217 = vmatpush1.msra.mxu0 0.0
    %218 = vmatprep.subr.mxu0 0.0
    %219 = vmatpush1.msra.mxu0 0.0
    %220 = vmatprep.subr.mxu0 0.0
    %221 = vmatpush1.msra.mxu0 0.0
    %222 = vmatprep.mubr.f32.mxu0 0.0
    %223 = vmatmul.mubr.f32.gmra.mrb[0].mxu0 %v135
    %v224 = vpop.f32.mrb[0].mxu0
    %v225 = vadd.f32 0.0, %v224
    %v226 = vpop.f32.mrb[0].mxu0
    %227 = vmatprep.mubr.f32.mxu0 0.0
    %228 = vmatmul.mubr.f32.gmra.mrb[0].mxu0 %v138
    %v229 = vpop.f32.mrb[0].mxu0
    %v230 = vadd.f32 0.0, %v229
    %v231 = vpop.f32.mrb[0].mxu0
    %232 = vmatprep.mubr.f32.mxu0 0.0
    %233 = vmatmul.mubr.f32.gmra.mrb[0].mxu0 %v141
    %v234 = vpop.f32.mrb[0].mxu0
    %v235 = vadd.f32 0.0, %v234
    %v236 = vpop.f32.mrb[0].mxu0
    %237 = vmatprep.mubr.f32.mxu0 0.0
    %238 = vmatmul.mubr.f32.gmra.mrb[0].mxu0 %v144
    %v239 = vpop.f32.mrb[0].mxu0
    %v240 = vadd.f32 0.0, %v239
    %v241 = vpop.f32.mrb[0].mxu0
    %242 = vmatprep.mubr.f32.mxu0 0.0
    %243 = vmatmul.mubr.f32.gmra.mrb[0].mxu0 %v147
    %v244 = vpop.f32.mrb[0].mxu0
    %v245 = vadd.f32 0.0, %v244
    %v246 = vpop.f32.mrb[0].mxu0
    %247 = vmatprep.mubr.f32.mxu0 0.0
    %248 = vmatmul.mubr.f32.gmra.mrb[0].mxu0 %v150
    %v249 = vpop.f32.mrb[0].mxu0
    %v250 = vadd.f32 0.0, %v249
    %v251 = vpop.f32.mrb[0].mxu0
    %252 = vmatprep.mubr.f32.mxu0 0.0
    %253 = vmatmul.mubr.f32.gmra.mrb[0].mxu0 %v153
    %v254 = vpop.f32.mrb[0].mxu0
    %v255 = vadd.f32 0.0, %v254
    %v256 = vpop.f32.mrb[0].mxu0
    %257 = vmatprep.mubr.f32.mxu0 0.0
    %258 = vmatmul.mubr.f32.gmra.mrb[0].mxu0 %v156
    %v259 = vpop.f32.mrb[0].mxu0
    %v260 = vadd.f32 0.0, %v259
    %v261 = vpop.f32.mrb[0].mxu0
    %262 = vdwg.mxu0
    %v263 = vld [vmem:[%s2] sm:$0xff]
    %v264 = vld [vmem:[%s2 + $0x8] sm:$0xff]
    %v265 = vld [vmem:[%s2 + $0x10] sm:$0xff]
    %v266 = vld [vmem:[%s2 + $0x18] sm:$0xff]
    %v267 = vld [vmem:[%s3] sm:$0xff]
    %v268 = vld [vmem:[%s3 + $0x8] sm:$0xff]
    %v269 = vld [vmem:[%s3 + $0x10] sm:$0xff]
    %v270 = vld [vmem:[%s3 + $0x18] sm:$0xff]
    %v271 = vld [vmem:[%s3 + $0x20] sm:$0xff]
    %v272 = vld [vmem:[%s3 + $0x28] sm:$0xff]
    %v273 = vld [vmem:[%s3 + $0x30] sm:$0xff]
    %v274 = vld [vmem:[%s3 + $0x38] sm:$0xff]
    %v275 = vld [vmem:[%s3 + $0x40] sm:$0xff]
    %v276 = vld [vmem:[%s3 + $0x48] sm:$0xff]
    %v277 = vld [vmem:[%s3 + $0x50] sm:$0xff]
    %v278 = vld [vmem:[%s3 + $0x58] sm:$0xff]
    %v279 = vld [vmem:[%s3 + $0x60] sm:$0xff]
    %v280 = vld [vmem:[%s3 + $0x68] sm:$0xff]
    %v281 = vld [vmem:[%s3 + $0x70] sm:$0xff]
    %v282 = vld [vmem:[%s3 + $0x78] sm:$0xff]
    %v283 = vld [vmem:[%s4] sm:$0x3]
    %v285 = vlaneseq
    %v286 = vshrl.u32 %v285, 7
    %v287 = vsub.s32 0, %v286
    %v288 = vrot.slane %v283, %v287
    %v289 = vlaneseq
    %v290 = vshrl.u32 %v289, 7
    %v291 = vsub.s32 1, %v290
    %v292 = vrot.slane %v283, %v291
    %vm295 = vcmask 130048
    %v297 = vsel %vm295, %v225, 0
    %v300 = vsel %vm295, %v230, 0
    %v303 = vsel %vm295, %v235, 0
    %v306 = vsel %vm295, %v240, 0
    %v309 = vsel %vm295, %v245, 0
    %v312 = vsel %vm295, %v250, 0
    %v315 = vsel %vm295, %v255, 0
    %v318 = vsel %vm295, %v260, 0
    %320 = vmatprep.subr.mxu0 %v264
    %321 = vmatpush1.msra.mxu0 %v263
    %322 = vmatprep.subr.mxu0 %v266
    %323 = vmatpush1.msra.mxu0 %v265
    %324 = vmatprep.subr.mxu0 0.0
    %325 = vmatpush1.msra.mxu0 0.0
    %326 = vmatprep.subr.mxu0 0.0
    %327 = vmatpush1.msra.mxu0 0.0
    %328 = vmatprep.subr.mxu0 0.0
    %329 = vmatpush1.msra.mxu0 0.0
    %330 = vmatprep.subr.mxu0 0.0
    %331 = vmatpush1.msra.mxu0 0.0
    %332 = vmatprep.subr.mxu0 0.0
    %333 = vmatpush1.msra.mxu0 0.0
    %334 = vmatprep.subr.mxu0 0.0
    %335 = vmatpush1.msra.mxu0 0.0
    %336 = vmatprep.subr.mxu0 0.0
    %337 = vmatpush1.msra.mxu0 0.0
    %338 = vmatprep.subr.mxu0 0.0
    %339 = vmatpush1.msra.mxu0 0.0
    %340 = vmatprep.subr.mxu0 0.0
    %341 = vmatpush1.msra.mxu0 0.0
    %342 = vmatprep.subr.mxu0 0.0
    %343 = vmatpush1.msra.mxu0 0.0
    %344 = vmatprep.subr.mxu0 0.0
    %345 = vmatpush1.msra.mxu0 0.0
    %346 = vmatprep.subr.mxu0 0.0
    %347 = vmatpush1.msra.mxu0 0.0
    %348 = vmatprep.subr.mxu0 0.0
    %349 = vmatpush1.msra.mxu0 0.0
    %350 = vmatprep.subr.mxu0 0.0
    %351 = vmatpush1.msra.mxu0 0.0
    %352 = vmatprep.subr.mxu0 0.0
    %353 = vmatpush1.msra.mxu0 0.0
    %354 = vmatprep.subr.mxu0 0.0
    %355 = vmatpush1.msra.mxu0 0.0
    %356 = vmatprep.subr.mxu0 0.0
    %357 = vmatpush1.msra.mxu0 0.0
    %358 = vmatprep.subr.mxu0 0.0
    %359 = vmatpush1.msra.mxu0 0.0
    %360 = vmatprep.subr.mxu0 0.0
    %361 = vmatpush1.msra.mxu0 0.0
    %362 = vmatprep.subr.mxu0 0.0
    %363 = vmatpush1.msra.mxu0 0.0
    %364 = vmatprep.subr.mxu0 0.0
    %365 = vmatpush1.msra.mxu0 0.0
    %366 = vmatprep.subr.mxu0 0.0
    %367 = vmatpush1.msra.mxu0 0.0
    %368 = vmatprep.subr.mxu0 0.0
    %369 = vmatpush1.msra.mxu0 0.0
    %370 = vmatprep.subr.mxu0 0.0
    %371 = vmatpush1.msra.mxu0 0.0
    %372 = vmatprep.subr.mxu0 0.0
    %373 = vmatpush1.msra.mxu0 0.0
    %374 = vmatprep.subr.mxu0 0.0
    %375 = vmatpush1.msra.mxu0 0.0
    %376 = vmatprep.subr.mxu0 0.0
    %377 = vmatpush1.msra.mxu0 0.0
    %378 = vmatprep.subr.mxu0 0.0
    %379 = vmatpush1.msra.mxu0 0.0
    %380 = vmatprep.subr.mxu0 0.0
    %381 = vmatpush1.msra.mxu0 0.0
    %382 = vmatprep.subr.mxu0 0.0
    %383 = vmatpush1.msra.mxu0 0.0
    %384 = vmatprep.mubr.f32.mxu0 0.0
    %385 = vmatmul.mubr.f32.gmra.mrb[0].mxu0 %v297
    %v386 = vpop.f32.mrb[0].mxu0
    %v387 = vadd.f32 %v288, %v386
    %v388 = vpop.f32.mrb[0].mxu0
    %v389 = vadd.f32 %v292, %v388
    %390 = vmatprep.mubr.f32.mxu0 0.0
    %391 = vmatmul.mubr.f32.gmra.mrb[0].mxu0 %v300
    %v392 = vpop.f32.mrb[0].mxu0
    %v393 = vadd.f32 %v288, %v392
    %v394 = vpop.f32.mrb[0].mxu0
    %v395 = vadd.f32 %v292, %v394
    %396 = vmatprep.mubr.f32.mxu0 0.0
    %397 = vmatmul.mubr.f32.gmra.mrb[0].mxu0 %v303
    %v398 = vpop.f32.mrb[0].mxu0
    %v399 = vadd.f32 %v288, %v398
    %v400 = vpop.f32.mrb[0].mxu0
    %v401 = vadd.f32 %v292, %v400
    %402 = vmatprep.mubr.f32.mxu0 0.0
    %403 = vmatmul.mubr.f32.gmra.mrb[0].mxu0 %v306
    %v404 = vpop.f32.mrb[0].mxu0
    %v405 = vadd.f32 %v288, %v404
    %v406 = vpop.f32.mrb[0].mxu0
    %v407 = vadd.f32 %v292, %v406
    %408 = vmatprep.mubr.f32.mxu0 0.0
    %409 = vmatmul.mubr.f32.gmra.mrb[0].mxu0 %v309
    %v410 = vpop.f32.mrb[0].mxu0
    %v411 = vadd.f32 %v288, %v410
    %v412 = vpop.f32.mrb[0].mxu0
    %v413 = vadd.f32 %v292, %v412
    %414 = vmatprep.mubr.f32.mxu0 0.0
    %415 = vmatmul.mubr.f32.gmra.mrb[0].mxu0 %v312
    %v416 = vpop.f32.mrb[0].mxu0
    %v417 = vadd.f32 %v288, %v416
    %v418 = vpop.f32.mrb[0].mxu0
    %v419 = vadd.f32 %v292, %v418
    %420 = vmatprep.mubr.f32.mxu0 0.0
    %421 = vmatmul.mubr.f32.gmra.mrb[0].mxu0 %v315
    %v422 = vpop.f32.mrb[0].mxu0
    %v423 = vadd.f32 %v288, %v422
    %v424 = vpop.f32.mrb[0].mxu0
    %v425 = vadd.f32 %v292, %v424
    %426 = vmatprep.mubr.f32.mxu0 0.0
    %427 = vmatmul.mubr.f32.gmra.mrb[0].mxu0 %v318
    %v428 = vpop.f32.mrb[0].mxu0
    %v429 = vadd.f32 %v288, %v428
    %v430 = vpop.f32.mrb[0].mxu0
    %v431 = vadd.f32 %v292, %v430
    %432 = vdwg.mxu0
    %433 = vst [vmem:[#allocation2] sm:$0xff] %v387
    %434 = vst [vmem:[#allocation2 + $0x8] sm:$0xff] %v389
    %435 = vst [vmem:[#allocation2 + $0x10] sm:$0xff] %v393
    %436 = vst [vmem:[#allocation2 + $0x18] sm:$0xff] %v395
    %437 = vst [vmem:[#allocation2 + $0x20] sm:$0xff] %v399
    %438 = vst [vmem:[#allocation2 + $0x28] sm:$0xff] %v401
    %439 = vst [vmem:[#allocation2 + $0x30] sm:$0xff] %v405
    %440 = vst [vmem:[#allocation2 + $0x38] sm:$0xff] %v407
    %441 = vst [vmem:[#allocation2 + $0x40] sm:$0xff] %v411
    %442 = vst [vmem:[#allocation2 + $0x48] sm:$0xff] %v413
    %443 = vst [vmem:[#allocation2 + $0x50] sm:$0xff] %v417
    %444 = vst [vmem:[#allocation2 + $0x58] sm:$0xff] %v419
    %445 = vst [vmem:[#allocation2 + $0x60] sm:$0xff] %v423
    %446 = vst [vmem:[#allocation2 + $0x68] sm:$0xff] %v425
    %447 = vst [vmem:[#allocation2 + $0x70] sm:$0xff] %v429
    %448 = vst [vmem:[#allocation2 + $0x78] sm:$0xff] %v431
    %vm449 = vcmask 523264
    %v451 = vsel %vm449, 0.0, 0
    %453 = vmatprep.subr.mxu0 %v268
    %454 = vmatpush1.msra.mxu0 %v267
    %455 = vmatprep.subr.mxu0 %v270
    %456 = vmatpush1.msra.mxu0 %v269
    %457 = vmatprep.subr.mxu0 %v272
    %458 = vmatpush1.msra.mxu0 %v271
    %459 = vmatprep.subr.mxu0 %v274
    %460 = vmatpush1.msra.mxu0 %v273
    %461 = vmatprep.subr.mxu0 %v276
    %462 = vmatpush1.msra.mxu0 %v275
    %463 = vmatprep.subr.mxu0 %v278
    %464 = vmatpush1.msra.mxu0 %v277
    %465 = vmatprep.subr.mxu0 %v280
    %466 = vmatpush1.msra.mxu0 %v279
    %467 = vmatprep.subr.mxu0 %v282
    %468 = vmatpush1.msra.mxu0 %v281
    %469 = vmatprep.subr.mxu0 0.0
    %470 = vmatpush1.msra.mxu0 0.0
    %471 = vmatprep.subr.mxu0 0.0
    %472 = vmatpush1.msra.mxu0 0.0
    %473 = vmatprep.subr.mxu0 0.0
    %474 = vmatpush1.msra.mxu0 0.0
    %475 = vmatprep.subr.mxu0 0.0
    %476 = vmatpush1.msra.mxu0 0.0
    %477 = vmatprep.subr.mxu0 0.0
    %478 = vmatpush1.msra.mxu0 0.0
    %479 = vmatprep.subr.mxu0 0.0
    %480 = vmatpush1.msra.mxu0 0.0
    %481 = vmatprep.subr.mxu0 0.0
    %482 = vmatpush1.msra.mxu0 0.0
    %483 = vmatprep.subr.mxu0 0.0
    %484 = vmatpush1.msra.mxu0 0.0
    %485 = vmatprep.subr.mxu0 0.0
    %486 = vmatpush1.msra.mxu0 0.0
    %487 = vmatprep.subr.mxu0 0.0
    %488 = vmatpush1.msra.mxu0 0.0
    %489 = vmatprep.subr.mxu0 0.0
    %490 = vmatpush1.msra.mxu0 0.0
    %491 = vmatprep.subr.mxu0 0.0
    %492 = vmatpush1.msra.mxu0 0.0
    %493 = vmatprep.subr.mxu0 0.0
    %494 = vmatpush1.msra.mxu0 0.0
    %495 = vmatprep.subr.mxu0 0.0
    %496 = vmatpush1.msra.mxu0 0.0
    %497 = vmatprep.subr.mxu0 0.0
    %498 = vmatpush1.msra.mxu0 0.0
    %499 = vmatprep.subr.mxu0 0.0
    %500 = vmatpush1.msra.mxu0 0.0
    %501 = vmatprep.subr.mxu0 0.0
    %502 = vmatpush1.msra.mxu0 0.0
    %503 = vmatprep.subr.mxu0 0.0
    %504 = vmatpush1.msra.mxu0 0.0
    %505 = vmatprep.subr.mxu0 0.0
    %506 = vmatpush1.msra.mxu0 0.0
    %507 = vmatprep.subr.mxu0 0.0
    %508 = vmatpush1.msra.mxu0 0.0
    %509 = vmatprep.subr.mxu0 0.0
    %510 = vmatpush1.msra.mxu0 0.0
    %511 = vmatprep.subr.mxu0 0.0
    %512 = vmatpush1.msra.mxu0 0.0
    %513 = vmatprep.subr.mxu0 0.0
    %514 = vmatpush1.msra.mxu0 0.0
    %515 = vmatprep.subr.mxu0 0.0
    %516 = vmatpush1.msra.mxu0 0.0
    %517 = vmatprep.mubr.f32.mxu0 0.0
    %518 = vmatmul.mubr.f32.gmra.mrb[0].mxu0 %v451
    %v519 = vpop.f32.mrb[0].mxu0
    %v520 = vadd.f32 0.0, %v519
    %v521 = vpop.f32.mrb[0].mxu0
    %v522 = vadd.f32 0.0, %v521
    %523 = vdwg.mxu0
    %s524 = smul.u32 0, 2
    %s525 = smul.addr %s524, 8
    %s526 = scalar_lea.vmem [#allocation2], %s525
    %v527 = vld [vmem:[%s526] sm:$0xff]
    %v528 = vadd.f32 %v520, %v527
    %s529 = smul.u32 7, 2
    %s530 = smul.addr %s529, 8
    %s531 = scalar_lea.vmem [#allocation2], %s530
    %v532 = vld [vmem:[%s531 + $0x8] sm:$0xff]
    %v533 = vadd.f32 %v522, %v532
    %v534 = vxor.u32 %v528, 2147483648
    %v535 = vmul.f32 %v534, 1.442695
    %v536 = vpow.pop %v535
    %v537 = vadd.f32 %v536, 1.0
    %v538 = vrcp.pop %v537
    %v539 = vmul.f32 1.0, %v538
    %v540 = vxor.u32 %v533, 2147483648
    %v541 = vmul.f32 %v540, 1.442695
    %v542 = vpow.pop %v541
    %v543 = vadd.f32 %v542, 1.0
    %v544 = vrcp.pop %v543
    %v545 = vmul.f32 1.0, %v544
    %v546 = vtanh.pop %v528
    %v547 = vtanh.pop %v533
    %v548 = vmul.f32 %v539, 0.0
    %550 = vrot.lane.b32.xlu0 %v546, 64
    %v551 = vpop.permute.xlu0 %550
    %v553 = vmul.f32 %v539, %v551
    %555 = vrot.lane.b32.xlu0 %v553, 32
    %v556 = vpop.permute.xlu0 %555
    %v558 = vadd.f32 %v548, %v556
    %v559 = vmul.f32 %v545, 0.0
    %561 = vrot.lane.b32.xlu0 %v547, 64
    %v562 = vpop.permute.xlu0 %561
    %v564 = vmul.f32 %v545, %v562
    %566 = vrot.lane.b32.xlu0 %v564, 32
    %v567 = vpop.permute.xlu0 %566
    %v569 = vadd.f32 %v559, %v567
    %v570 = vtanh.pop %v558
    %572 = vrot.lane.b32.xlu0 %v570, 64
    %v573 = vpop.permute.xlu0 %572
    %v575 = vmul.f32 %v539, %v573
    %v576 = vtanh.pop %v569
    %578 = vrot.lane.b32.xlu0 %v576, 64
    %v579 = vpop.permute.xlu0 %578
    %v581 = vmul.f32 %v545, %v579
    %583 = vrot.lane.b32.xlu0 %v575, 32
    %v584 = vpop.permute.xlu0 %583
    %586 = vst.msk [vmem:[#allocation3] sm:$0xff] %vm133, %v584
    %588 = vrot.lane.b32.xlu0 %v581, 64
    %v589 = vpop.permute.xlu0 %588
    %s591 = scalar_lea.vmem [#allocation3], 56
    %vm592 = vcmask 523520
    %593 = vst.msk [vmem:[%s591] sm:$0xff] %vm592, %v589
    %v594 = vsel %vm133, %v584, %v589
    %v596 = vsel %vm449, %v594, 0
    %598 = vmatprep.subr.mxu0 %v268
    %599 = vmatpush1.msra.mxu0 %v267
    %600 = vmatprep.subr.mxu0 %v270
    %601 = vmatpush1.msra.mxu0 %v269
    %602 = vmatprep.subr.mxu0 %v272
    %603 = vmatpush1.msra.mxu0 %v271
    %604 = vmatprep.subr.mxu0 %v274
    %605 = vmatpush1.msra.mxu0 %v273
    %606 = vmatprep.subr.mxu0 %v276
    %607 = vmatpush1.msra.mxu0 %v275
    %608 = vmatprep.subr.mxu0 %v278
    %609 = vmatpush1.msra.mxu0 %v277
    %610 = vmatprep.subr.mxu0 %v280
    %611 = vmatpush1.msra.mxu0 %v279
    %612 = vmatprep.subr.mxu0 %v282
    %613 = vmatpush1.msra.mxu0 %v281
    %614 = vmatprep.subr.mxu0 0.0
    %615 = vmatpush1.msra.mxu0 0.0
    %616 = vmatprep.subr.mxu0 0.0
    %617 = vmatpush1.msra.mxu0 0.0
    %618 = vmatprep.subr.mxu0 0.0
    %619 = vmatpush1.msra.mxu0 0.0
    %620 = vmatprep.subr.mxu0 0.0
    %621 = vmatpush1.msra.mxu0 0.0
    %622 = vmatprep.subr.mxu0 0.0
    %623 = vmatpush1.msra.mxu0 0.0
    %624 = vmatprep.subr.mxu0 0.0
    %625 = vmatpush1.msra.mxu0 0.0
    %626 = vmatprep.subr.mxu0 0.0
    %627 = vmatpush1.msra.mxu0 0.0
    %628 = vmatprep.subr.mxu0 0.0
    %629 = vmatpush1.msra.mxu0 0.0
    %630 = vmatprep.subr.mxu0 0.0
    %631 = vmatpush1.msra.mxu0 0.0
    %632 = vmatprep.subr.mxu0 0.0
    %633 = vmatpush1.msra.mxu0 0.0
    %634 = vmatprep.subr.mxu0 0.0
    %635 = vmatpush1.msra.mxu0 0.0
    %636 = vmatprep.subr.mxu0 0.0
    %637 = vmatpush1.msra.mxu0 0.0
    %638 = vmatprep.subr.mxu0 0.0
    %639 = vmatpush1.msra.mxu0 0.0
    %640 = vmatprep.subr.mxu0 0.0
    %641 = vmatpush1.msra.mxu0 0.0
    %642 = vmatprep.subr.mxu0 0.0
    %643 = vmatpush1.msra.mxu0 0.0
    %644 = vmatprep.subr.mxu0 0.0
    %645 = vmatpush1.msra.mxu0 0.0
    %646 = vmatprep.subr.mxu0 0.0
    %647 = vmatpush1.msra.mxu0 0.0
    %648 = vmatprep.subr.mxu0 0.0
    %649 = vmatpush1.msra.mxu0 0.0
    %650 = vmatprep.subr.mxu0 0.0
    %651 = vmatpush1.msra.mxu0 0.0
    %652 = vmatprep.subr.mxu0 0.0
    %653 = vmatpush1.msra.mxu0 0.0
    %654 = vmatprep.subr.mxu0 0.0
    %655 = vmatpush1.msra.mxu0 0.0
    %656 = vmatprep.subr.mxu0 0.0
    %657 = vmatpush1.msra.mxu0 0.0
    %658 = vmatprep.subr.mxu0 0.0
    %659 = vmatpush1.msra.mxu0 0.0
    %660 = vmatprep.subr.mxu0 0.0
    %661 = vmatpush1.msra.mxu0 0.0
    %662 = vmatprep.mubr.f32.mxu0 0.0
    %663 = vmatmul.mubr.f32.gmra.mrb[0].mxu0 %v596
    %v664 = vpop.f32.mrb[0].mxu0
    %v665 = vadd.f32 0.0, %v664
    %v666 = vpop.f32.mrb[0].mxu0
    %v667 = vadd.f32 0.0, %v666
    %668 = vdwg.mxu0
    %s669 = smul.u32 1, 2
    %s670 = smul.addr %s669, 8
    %s671 = scalar_lea.vmem [#allocation2], %s670
    %v672 = vld [vmem:[%s671] sm:$0xff]
    %v673 = vadd.f32 %v665, %v672
    %s674 = smul.u32 6, 2
    %s675 = smul.addr %s674, 8
    %s676 = scalar_lea.vmem [#allocation2], %s675
    %v677 = vld [vmem:[%s676 + $0x8] sm:$0xff]
    %v678 = vadd.f32 %v667, %v677
    %v679 = vxor.u32 %v673, 2147483648
    %v680 = vmul.f32 %v679, 1.442695
    %v681 = vpow.pop %v680
    %v682 = vadd.f32 %v681, 1.0
    %v683 = vrcp.pop %v682
    %v684 = vmul.f32 1.0, %v683
    %v685 = vxor.u32 %v678, 2147483648
    %v686 = vmul.f32 %v685, 1.442695
    %v687 = vpow.pop %v686
    %v688 = vadd.f32 %v687, 1.0
    %v689 = vrcp.pop %v688
    %v690 = vmul.f32 1.0, %v689
    %v691 = vtanh.pop %v673
    %v692 = vtanh.pop %v678
    %v693 = vmul.f32 %v684, %v558
    %695 = vrot.lane.b32.xlu0 %v691, 64
    %v696 = vpop.permute.xlu0 %695
    %v698 = vmul.f32 %v684, %v696
    %700 = vrot.lane.b32.xlu0 %v698, 32
    %v701 = vpop.permute.xlu0 %700
    %v703 = vadd.f32 %v693, %v701
    %v704 = vmul.f32 %v690, %v569
    %706 = vrot.lane.b32.xlu0 %v692, 64
    %v707 = vpop.permute.xlu0 %706
    %v709 = vmul.f32 %v690, %v707
    %711 = vrot.lane.b32.xlu0 %v709, 32
    %v712 = vpop.permute.xlu0 %711
    %v714 = vadd.f32 %v704, %v712
    %v715 = vtanh.pop %v703
    %717 = vrot.lane.b32.xlu0 %v715, 64
    %v718 = vpop.permute.xlu0 %717
    %v720 = vmul.f32 %v684, %v718
    %v721 = vtanh.pop %v714
    %723 = vrot.lane.b32.xlu0 %v721, 64
    %v724 = vpop.permute.xlu0 %723
    %v726 = vmul.f32 %v690, %v724
    %728 = vrot.lane.b32.xlu0 %v720, 32
    %v729 = vpop.permute.xlu0 %728
    %s731 = scalar_lea.vmem [#allocation3], 8
    %732 = vst.msk [vmem:[%s731] sm:$0xff] %vm133, %v729
    %734 = vrot.lane.b32.xlu0 %v726, 64
    %v735 = vpop.permute.xlu0 %734
    %s737 = scalar_lea.vmem [#allocation3], 48
    %738 = vst.msk [vmem:[%s737] sm:$0xff] %vm592, %v735
    %v739 = vsel %vm133, %v729, %v735
    %v741 = vsel %vm449, %v739, 0
    %743 = vmatprep.subr.mxu0 %v268
    %744 = vmatpush1.msra.mxu0 %v267
    %745 = vmatprep.subr.mxu0 %v270
    %746 = vmatpush1.msra.mxu0 %v269
    %747 = vmatprep.subr.mxu0 %v272
    %748 = vmatpush1.msra.mxu0 %v271
    %749 = vmatprep.subr.mxu0 %v274
    %750 = vmatpush1.msra.mxu0 %v273
    %751 = vmatprep.subr.mxu0 %v276
    %752 = vmatpush1.msra.mxu0 %v275
    %753 = vmatprep.subr.mxu0 %v278
    %754 = vmatpush1.msra.mxu0 %v277
    %755 = vmatprep.subr.mxu0 %v280
    %756 = vmatpush1.msra.mxu0 %v279
    %757 = vmatprep.subr.mxu0 %v282
    %758 = vmatpush1.msra.mxu0 %v281
    %759 = vmatprep.subr.mxu0 0.0
    %760 = vmatpush1.msra.mxu0 0.0
    %761 = vmatprep.subr.mxu0 0.0
    %762 = vmatpush1.msra.mxu0 0.0
    %763 = vmatprep.subr.mxu0 0.0
    %764 = vmatpush1.msra.mxu0 0.0
    %765 = vmatprep.subr.mxu0 0.0
    %766 = vmatpush1.msra.mxu0 0.0
    %767 = vmatprep.subr.mxu0 0.0
    %768 = vmatpush1.msra.mxu0 0.0
    %769 = vmatprep.subr.mxu0 0.0
    %770 = vmatpush1.msra.mxu0 0.0
    %771 = vmatprep.subr.mxu0 0.0
    %772 = vmatpush1.msra.mxu0 0.0
    %773 = vmatprep.subr.mxu0 0.0
    %774 = vmatpush1.msra.mxu0 0.0
    %775 = vmatprep.subr.mxu0 0.0
    %776 = vmatpush1.msra.mxu0 0.0
    %777 = vmatprep.subr.mxu0 0.0
    %778 = vmatpush1.msra.mxu0 0.0
    %779 = vmatprep.subr.mxu0 0.0
    %780 = vmatpush1.msra.mxu0 0.0
    %781 = vmatprep.subr.mxu0 0.0
    %782 = vmatpush1.msra.mxu0 0.0
    %783 = vmatprep.subr.mxu0 0.0
    %784 = vmatpush1.msra.mxu0 0.0
    %785 = vmatprep.subr.mxu0 0.0
    %786 = vmatpush1.msra.mxu0 0.0
    %787 = vmatprep.subr.mxu0 0.0
    %788 = vmatpush1.msra.mxu0 0.0
    %789 = vmatprep.subr.mxu0 0.0
    %790 = vmatpush1.msra.mxu0 0.0
    %791 = vmatprep.subr.mxu0 0.0
    %792 = vmatpush1.msra.mxu0 0.0
    %793 = vmatprep.subr.mxu0 0.0
    %794 = vmatpush1.msra.mxu0 0.0
    %795 = vmatprep.subr.mxu0 0.0
    %796 = vmatpush1.msra.mxu0 0.0
    %797 = vmatprep.subr.mxu0 0.0
    %798 = vmatpush1.msra.mxu0 0.0
    %799 = vmatprep.subr.mxu0 0.0
    %800 = vmatpush1.msra.mxu0 0.0
    %801 = vmatprep.subr.mxu0 0.0
    %802 = vmatpush1.msra.mxu0 0.0
    %803 = vmatprep.subr.mxu0 0.0
    %804 = vmatpush1.msra.mxu0 0.0
    %805 = vmatprep.subr.mxu0 0.0
    %806 = vmatpush1.msra.mxu0 0.0
    %807 = vmatprep.mubr.f32.mxu0 0.0
    %808 = vmatmul.mubr.f32.gmra.mrb[0].mxu0 %v741
    %v809 = vpop.f32.mrb[0].mxu0
    %v810 = vadd.f32 0.0, %v809
    %v811 = vpop.f32.mrb[0].mxu0
    %v812 = vadd.f32 0.0, %v811
    %813 = vdwg.mxu0
    %s814 = smul.u32 2, 2
    %s815 = smul.addr %s814, 8
    %s816 = scalar_lea.vmem [#allocation2], %s815
    %v817 = vld [vmem:[%s816] sm:$0xff]
    %v818 = vadd.f32 %v810, %v817
    %s819 = smul.u32 5, 2
    %s820 = smul.addr %s819, 8
    %s821 = scalar_lea.vmem [#allocation2], %s820
    %v822 = vld [vmem:[%s821 + $0x8] sm:$0xff]
    %v823 = vadd.f32 %v812, %v822
    %v824 = vxor.u32 %v818, 2147483648
    %v825 = vmul.f32 %v824, 1.442695
    %v826 = vpow.pop %v825
    %v827 = vadd.f32 %v826, 1.0
    %v828 = vrcp.pop %v827
    %v829 = vmul.f32 1.0, %v828
    %v830 = vxor.u32 %v823, 2147483648
    %v831 = vmul.f32 %v830, 1.442695
    %v832 = vpow.pop %v831
    %v833 = vadd.f32 %v832, 1.0
    %v834 = vrcp.pop %v833
    %v835 = vmul.f32 1.0, %v834
    %v836 = vtanh.pop %v818
    %v837 = vtanh.pop %v823
    %v838 = vmul.f32 %v829, %v703
    %840 = vrot.lane.b32.xlu0 %v836, 64
    %v841 = vpop.permute.xlu0 %840
    %v843 = vmul.f32 %v829, %v841
    %845 = vrot.lane.b32.xlu0 %v843, 32
    %v846 = vpop.permute.xlu0 %845
    %v848 = vadd.f32 %v838, %v846
    %v849 = vmul.f32 %v835, %v714
    %851 = vrot.lane.b32.xlu0 %v837, 64
    %v852 = vpop.permute.xlu0 %851
    %v854 = vmul.f32 %v835, %v852
    %856 = vrot.lane.b32.xlu0 %v854, 32
    %v857 = vpop.permute.xlu0 %856
    %v859 = vadd.f32 %v849, %v857
    %v860 = vtanh.pop %v848
    %862 = vrot.lane.b32.xlu0 %v860, 64
    %v863 = vpop.permute.xlu0 %862
    %v865 = vmul.f32 %v829, %v863
    %v866 = vtanh.pop %v859
    %868 = vrot.lane.b32.xlu0 %v866, 64
    %v869 = vpop.permute.xlu0 %868
    %v871 = vmul.f32 %v835, %v869
    %873 = vrot.lane.b32.xlu0 %v865, 32
    %v874 = vpop.permute.xlu0 %873
    %s876 = scalar_lea.vmem [#allocation3], 16
    %877 = vst.msk [vmem:[%s876] sm:$0xff] %vm133, %v874
    %879 = vrot.lane.b32.xlu0 %v871, 64
    %v880 = vpop.permute.xlu0 %879
    %s882 = scalar_lea.vmem [#allocation3], 40
    %883 = vst.msk [vmem:[%s882] sm:$0xff] %vm592, %v880
    %v884 = vsel %vm133, %v874, %v880
    %v886 = vsel %vm449, %v884, 0
    %888 = vmatprep.subr.mxu0 %v268
    %889 = vmatpush1.msra.mxu0 %v267
    %890 = vmatprep.subr.mxu0 %v270
    %891 = vmatpush1.msra.mxu0 %v269
    %892 = vmatprep.subr.mxu0 %v272
    %893 = vmatpush1.msra.mxu0 %v271
    %894 = vmatprep.subr.mxu0 %v274
    %895 = vmatpush1.msra.mxu0 %v273
    %896 = vmatprep.subr.mxu0 %v276
    %897 = vmatpush1.msra.mxu0 %v275
    %898 = vmatprep.subr.mxu0 %v278
    %899 = vmatpush1.msra.mxu0 %v277
    %900 = vmatprep.subr.mxu0 %v280
    %901 = vmatpush1.msra.mxu0 %v279
    %902 = vmatprep.subr.mxu0 %v282
    %903 = vmatpush1.msra.mxu0 %v281
    %904 = vmatprep.subr.mxu0 0.0
    %905 = vmatpush1.msra.mxu0 0.0
    %906 = vmatprep.subr.mxu0 0.0
    %907 = vmatpush1.msra.mxu0 0.0
    %908 = vmatprep.subr.mxu0 0.0
    %909 = vmatpush1.msra.mxu0 0.0
    %910 = vmatprep.subr.mxu0 0.0
    %911 = vmatpush1.msra.mxu0 0.0
    %912 = vmatprep.subr.mxu0 0.0
    %913 = vmatpush1.msra.mxu0 0.0
    %914 = vmatprep.subr.mxu0 0.0
    %915 = vmatpush1.msra.mxu0 0.0
    %916 = vmatprep.subr.mxu0 0.0
    %917 = vmatpush1.msra.mxu0 0.0
    %918 = vmatprep.subr.mxu0 0.0
    %919 = vmatpush1.msra.mxu0 0.0
    %920 = vmatprep.subr.mxu0 0.0
    %921 = vmatpush1.msra.mxu0 0.0
    %922 = vmatprep.subr.mxu0 0.0
    %923 = vmatpush1.msra.mxu0 0.0
    %924 = vmatprep.subr.mxu0 0.0
    %925 = vmatpush1.msra.mxu0 0.0
    %926 = vmatprep.subr.mxu0 0.0
    %927 = vmatpush1.msra.mxu0 0.0
    %928 = vmatprep.subr.mxu0 0.0
    %929 = vmatpush1.msra.mxu0 0.0
    %930 = vmatprep.subr.mxu0 0.0
    %931 = vmatpush1.msra.mxu0 0.0
    %932 = vmatprep.subr.mxu0 0.0
    %933 = vmatpush1.msra.mxu0 0.0
    %934 = vmatprep.subr.mxu0 0.0
    %935 = vmatpush1.msra.mxu0 0.0
    %936 = vmatprep.subr.mxu0 0.0
    %937 = vmatpush1.msra.mxu0 0.0
    %938 = vmatprep.subr.mxu0 0.0
    %939 = vmatpush1.msra.mxu0 0.0
    %940 = vmatprep.subr.mxu0 0.0
    %941 = vmatpush1.msra.mxu0 0.0
    %942 = vmatprep.subr.mxu0 0.0
    %943 = vmatpush1.msra.mxu0 0.0
    %944 = vmatprep.subr.mxu0 0.0
    %945 = vmatpush1.msra.mxu0 0.0
    %946 = vmatprep.subr.mxu0 0.0
    %947 = vmatpush1.msra.mxu0 0.0
    %948 = vmatprep.subr.mxu0 0.0
    %949 = vmatpush1.msra.mxu0 0.0
    %950 = vmatprep.subr.mxu0 0.0
    %951 = vmatpush1.msra.mxu0 0.0
    %952 = vmatprep.mubr.f32.mxu0 0.0
    %953 = vmatmul.mubr.f32.gmra.mrb[0].mxu0 %v886
    %v954 = vpop.f32.mrb[0].mxu0
    %v955 = vadd.f32 0.0, %v954
    %v956 = vpop.f32.mrb[0].mxu0
    %v957 = vadd.f32 0.0, %v956
    %958 = vdwg.mxu0
    %s959 = smul.u32 3, 2
    %s960 = smul.addr %s959, 8
    %s961 = scalar_lea.vmem [#allocation2], %s960
    %v962 = vld [vmem:[%s961] sm:$0xff]
    %v963 = vadd.f32 %v955, %v962
    %s964 = smul.u32 4, 2
    %s965 = smul.addr %s964, 8
    %s966 = scalar_lea.vmem [#allocation2], %s965
    %v967 = vld [vmem:[%s966 + $0x8] sm:$0xff]
    %v968 = vadd.f32 %v957, %v967
    %v969 = vxor.u32 %v963, 2147483648
    %v970 = vmul.f32 %v969, 1.442695
    %v971 = vpow.pop %v970
    %v972 = vadd.f32 %v971, 1.0
    %v973 = vrcp.pop %v972
    %v974 = vmul.f32 1.0, %v973
    %v975 = vxor.u32 %v968, 2147483648
    %v976 = vmul.f32 %v975, 1.442695
    %v977 = vpow.pop %v976
    %v978 = vadd.f32 %v977, 1.0
    %v979 = vrcp.pop %v978
    %v980 = vmul.f32 1.0, %v979
    %v981 = vtanh.pop %v963
    %v982 = vtanh.pop %v968
    %v983 = vmul.f32 %v974, %v848
    %985 = vrot.lane.b32.xlu0 %v981, 64
    %v986 = vpop.permute.xlu0 %985
    %v988 = vmul.f32 %v974, %v986
    %990 = vrot.lane.b32.xlu0 %v988, 32
    %v991 = vpop.permute.xlu0 %990
    %v993 = vadd.f32 %v983, %v991
    %v994 = vmul.f32 %v980, %v859
    %996 = vrot.lane.b32.xlu0 %v982, 64
    %v997 = vpop.permute.xlu0 %996
    %v999 = vmul.f32 %v980, %v997
    %1001 = vrot.lane.b32.xlu0 %v999, 32
    %v1002 = vpop.permute.xlu0 %1001
    %v1004 = vadd.f32 %v994, %v1002
    %v1005 = vtanh.pop %v993
    %1007 = vrot.lane.b32.xlu0 %v1005, 64
    %v1008 = vpop.permute.xlu0 %1007
    %v1010 = vmul.f32 %v974, %v1008
    %v1011 = vtanh.pop %v1004
    %1013 = vrot.lane.b32.xlu0 %v1011, 64
    %v1014 = vpop.permute.xlu0 %1013
    %v1016 = vmul.f32 %v980, %v1014
    %1018 = vrot.lane.b32.xlu0 %v1010, 32
    %v1019 = vpop.permute.xlu0 %1018
    %s1021 = scalar_lea.vmem [#allocation3], 24
    %1022 = vst.msk [vmem:[%s1021] sm:$0xff] %vm133, %v1019
    %1024 = vrot.lane.b32.xlu0 %v1016, 64
    %v1025 = vpop.permute.xlu0 %1024
    %s1027 = scalar_lea.vmem [#allocation3], 32
    %1028 = vst.msk [vmem:[%s1027] sm:$0xff] %vm592, %v1025
    %v1029 = vsel %vm133, %v1019, %v1025
    %v1031 = vsel %vm449, %v1029, 0
    %1033 = vmatprep.subr.mxu0 %v268
    %1034 = vmatpush1.msra.mxu0 %v267
    %1035 = vmatprep.subr.mxu0 %v270
    %1036 = vmatpush1.msra.mxu0 %v269
    %1037 = vmatprep.subr.mxu0 %v272
    %1038 = vmatpush1.msra.mxu0 %v271
    %1039 = vmatprep.subr.mxu0 %v274
    %1040 = vmatpush1.msra.mxu0 %v273
    %1041 = vmatprep.subr.mxu0 %v276
    %1042 = vmatpush1.msra.mxu0 %v275
    %1043 = vmatprep.subr.mxu0 %v278
    %1044 = vmatpush1.msra.mxu0 %v277
    %1045 = vmatprep.subr.mxu0 %v280
    %1046 = vmatpush1.msra.mxu0 %v279
    %1047 = vmatprep.subr.mxu0 %v282
    %1048 = vmatpush1.msra.mxu0 %v281
    %1049 = vmatprep.subr.mxu0 0.0
    %1050 = vmatpush1.msra.mxu0 0.0
    %1051 = vmatprep.subr.mxu0 0.0
    %1052 = vmatpush1.msra.mxu0 0.0
    %1053 = vmatprep.subr.mxu0 0.0
    %1054 = vmatpush1.msra.mxu0 0.0
    %1055 = vmatprep.subr.mxu0 0.0
    %1056 = vmatpush1.msra.mxu0 0.0
    %1057 = vmatprep.subr.mxu0 0.0
    %1058 = vmatpush1.msra.mxu0 0.0
    %1059 = vmatprep.subr.mxu0 0.0
    %1060 = vmatpush1.msra.mxu0 0.0
    %1061 = vmatprep.subr.mxu0 0.0
    %1062 = vmatpush1.msra.mxu0 0.0
    %1063 = vmatprep.subr.mxu0 0.0
    %1064 = vmatpush1.msra.mxu0 0.0
    %1065 = vmatprep.subr.mxu0 0.0
    %1066 = vmatpush1.msra.mxu0 0.0
    %1067 = vmatprep.subr.mxu0 0.0
    %1068 = vmatpush1.msra.mxu0 0.0
    %1069 = vmatprep.subr.mxu0 0.0
    %1070 = vmatpush1.msra.mxu0 0.0
    %1071 = vmatprep.subr.mxu0 0.0
    %1072 = vmatpush1.msra.mxu0 0.0
    %1073 = vmatprep.subr.mxu0 0.0
    %1074 = vmatpush1.msra.mxu0 0.0
    %1075 = vmatprep.subr.mxu0 0.0
    %1076 = vmatpush1.msra.mxu0 0.0
    %1077 = vmatprep.subr.mxu0 0.0
    %1078 = vmatpush1.msra.mxu0 0.0
    %1079 = vmatprep.subr.mxu0 0.0
    %1080 = vmatpush1.msra.mxu0 0.0
    %1081 = vmatprep.subr.mxu0 0.0
    %1082 = vmatpush1.msra.mxu0 0.0
    %1083 = vmatprep.subr.mxu0 0.0
    %1084 = vmatpush1.msra.mxu0 0.0
    %1085 = vmatprep.subr.mxu0 0.0
    %1086 = vmatpush1.msra.mxu0 0.0
    %1087 = vmatprep.subr.mxu0 0.0
    %1088 = vmatpush1.msra.mxu0 0.0
    %1089 = vmatprep.subr.mxu0 0.0
    %1090 = vmatpush1.msra.mxu0 0.0
    %1091 = vmatprep.subr.mxu0 0.0
    %1092 = vmatpush1.msra.mxu0 0.0
    %1093 = vmatprep.subr.mxu0 0.0
    %1094 = vmatpush1.msra.mxu0 0.0
    %1095 = vmatprep.subr.mxu0 0.0
    %1096 = vmatpush1.msra.mxu0 0.0
    %1097 = vmatprep.mubr.f32.mxu0 0.0
    %1098 = vmatmul.mubr.f32.gmra.mrb[0].mxu0 %v1031
    %v1099 = vpop.f32.mrb[0].mxu0
    %v1100 = vadd.f32 0.0, %v1099
    %v1101 = vpop.f32.mrb[0].mxu0
    %v1102 = vadd.f32 0.0, %v1101
    %1103 = vdwg.mxu0
    %v1104 = vld [vmem:[%s966] sm:$0xff]
    %v1105 = vadd.f32 %v1100, %v1104
    %v1106 = vld [vmem:[%s961 + $0x8] sm:$0xff]
    %v1107 = vadd.f32 %v1102, %v1106
    %v1108 = vxor.u32 %v1105, 2147483648
    %v1109 = vmul.f32 %v1108, 1.442695
    %v1110 = vpow.pop %v1109
    %v1111 = vadd.f32 %v1110, 1.0
    %v1112 = vrcp.pop %v1111
    %v1113 = vmul.f32 1.0, %v1112
    %v1114 = vxor.u32 %v1107, 2147483648
    %v1115 = vmul.f32 %v1114, 1.442695
    %v1116 = vpow.pop %v1115
    %v1117 = vadd.f32 %v1116, 1.0
    %v1118 = vrcp.pop %v1117
    %v1119 = vmul.f32 1.0, %v1118
    %v1120 = vtanh.pop %v1105
    %v1121 = vtanh.pop %v1107
    %v1122 = vmul.f32 %v1113, %v993
    %1124 = vrot.lane.b32.xlu0 %v1120, 64
    %v1125 = vpop.permute.xlu0 %1124
    %v1127 = vmul.f32 %v1113, %v1125
    %1129 = vrot.lane.b32.xlu0 %v1127, 32
    %v1130 = vpop.permute.xlu0 %1129
    %v1132 = vadd.f32 %v1122, %v1130
    %v1133 = vmul.f32 %v1119, %v1004
    %1135 = vrot.lane.b32.xlu0 %v1121, 64
    %v1136 = vpop.permute.xlu0 %1135
    %v1138 = vmul.f32 %v1119, %v1136
    %1140 = vrot.lane.b32.xlu0 %v1138, 32
    %v1141 = vpop.permute.xlu0 %1140
    %v1143 = vadd.f32 %v1133, %v1141
    %v1144 = vtanh.pop %v1132
    %1146 = vrot.lane.b32.xlu0 %v1144, 64
    %v1147 = vpop.permute.xlu0 %1146
    %v1149 = vmul.f32 %v1113, %v1147
    %v1150 = vtanh.pop %v1143
    %1152 = vrot.lane.b32.xlu0 %v1150, 64
    %v1153 = vpop.permute.xlu0 %1152
    %v1155 = vmul.f32 %v1119, %v1153
    %1157 = vrot.lane.b32.xlu0 %v1149, 32
    %v1158 = vpop.permute.xlu0 %1157
    %1160 = vst.msk [vmem:[%s1027] sm:$0xff] %vm133, %v1158
    %1162 = vrot.lane.b32.xlu0 %v1155, 64
    %v1163 = vpop.permute.xlu0 %1162
    %1165 = vst.msk [vmem:[%s1021] sm:$0xff] %vm592, %v1163
    %v1166 = vsel %vm133, %v1158, %v1163
    %v1168 = vsel %vm449, %v1166, 0
    %1170 = vmatprep.subr.mxu0 %v268
    %1171 = vmatpush1.msra.mxu0 %v267
    %1172 = vmatprep.subr.mxu0 %v270
    %1173 = vmatpush1.msra.mxu0 %v269
    %1174 = vmatprep.subr.mxu0 %v272
    %1175 = vmatpush1.msra.mxu0 %v271
    %1176 = vmatprep.subr.mxu0 %v274
    %1177 = vmatpush1.msra.mxu0 %v273
    %1178 = vmatprep.subr.mxu0 %v276
    %1179 = vmatpush1.msra.mxu0 %v275
    %1180 = vmatprep.subr.mxu0 %v278
    %1181 = vmatpush1.msra.mxu0 %v277
    %1182 = vmatprep.subr.mxu0 %v280
    %1183 = vmatpush1.msra.mxu0 %v279
    %1184 = vmatprep.subr.mxu0 %v282
    %1185 = vmatpush1.msra.mxu0 %v281
    %1186 = vmatprep.subr.mxu0 0.0
    %1187 = vmatpush1.msra.mxu0 0.0
    %1188 = vmatprep.subr.mxu0 0.0
    %1189 = vmatpush1.msra.mxu0 0.0
    %1190 = vmatprep.subr.mxu0 0.0
    %1191 = vmatpush1.msra.mxu0 0.0
    %1192 = vmatprep.subr.mxu0 0.0
    %1193 = vmatpush1.msra.mxu0 0.0
    %1194 = vmatprep.subr.mxu0 0.0
    %1195 = vmatpush1.msra.mxu0 0.0
    %1196 = vmatprep.subr.mxu0 0.0
    %1197 = vmatpush1.msra.mxu0 0.0
    %1198 = vmatprep.subr.mxu0 0.0
    %1199 = vmatpush1.msra.mxu0 0.0
    %1200 = vmatprep.subr.mxu0 0.0
    %1201 = vmatpush1.msra.mxu0 0.0
    %1202 = vmatprep.subr.mxu0 0.0
    %1203 = vmatpush1.msra.mxu0 0.0
    %1204 = vmatprep.subr.mxu0 0.0
    %1205 = vmatpush1.msra.mxu0 0.0
    %1206 = vmatprep.subr.mxu0 0.0
    %1207 = vmatpush1.msra.mxu0 0.0
    %1208 = vmatprep.subr.mxu0 0.0
    %1209 = vmatpush1.msra.mxu0 0.0
    %1210 = vmatprep.subr.mxu0 0.0
    %1211 = vmatpush1.msra.mxu0 0.0
    %1212 = vmatprep.subr.mxu0 0.0
    %1213 = vmatpush1.msra.mxu0 0.0
    %1214 = vmatprep.subr.mxu0 0.0
    %1215 = vmatpush1.msra.mxu0 0.0
    %1216 = vmatprep.subr.mxu0 0.0
    %1217 = vmatpush1.msra.mxu0 0.0
    %1218 = vmatprep.subr.mxu0 0.0
    %1219 = vmatpush1.msra.mxu0 0.0
    %1220 = vmatprep.subr.mxu0 0.0
    %1221 = vmatpush1.msra.mxu0 0.0
    %1222 = vmatprep.subr.mxu0 0.0
    %1223 = vmatpush1.msra.mxu0 0.0
    %1224 = vmatprep.subr.mxu0 0.0
    %1225 = vmatpush1.msra.mxu0 0.0
    %1226 = vmatprep.subr.mxu0 0.0
    %1227 = vmatpush1.msra.mxu0 0.0
    %1228 = vmatprep.subr.mxu0 0.0
    %1229 = vmatpush1.msra.mxu0 0.0
    %1230 = vmatprep.subr.mxu0 0.0
    %1231 = vmatpush1.msra.mxu0 0.0
    %1232 = vmatprep.subr.mxu0 0.0
    %1233 = vmatpush1.msra.mxu0 0.0
    %1234 = vmatprep.mubr.f32.mxu0 0.0
    %1235 = vmatmul.mubr.f32.gmra.mrb[0].mxu0 %v1168
    %v1236 = vpop.f32.mrb[0].mxu0
    %v1237 = vadd.f32 0.0, %v1236
    %v1238 = vpop.f32.mrb[0].mxu0
    %v1239 = vadd.f32 0.0, %v1238
    %1240 = vdwg.mxu0
    %v1241 = vld [vmem:[%s821] sm:$0xff]
    %v1242 = vadd.f32 %v1237, %v1241
    %v1243 = vld [vmem:[%s816 + $0x8] sm:$0xff]
    %v1244 = vadd.f32 %v1239, %v1243
    %v1245 = vxor.u32 %v1242, 2147483648
    %v1246 = vmul.f32 %v1245, 1.442695
    %v1247 = vpow.pop %v1246
    %v1248 = vadd.f32 %v1247, 1.0
    %v1249 = vrcp.pop %v1248
    %v1250 = vmul.f32 1.0, %v1249
    %v1251 = vxor.u32 %v1244, 2147483648
    %v1252 = vmul.f32 %v1251, 1.442695
    %v1253 = vpow.pop %v1252
    %v1254 = vadd.f32 %v1253, 1.0
    %v1255 = vrcp.pop %v1254
    %v1256 = vmul.f32 1.0, %v1255
    %v1257 = vtanh.pop %v1242
    %v1258 = vtanh.pop %v1244
    %v1259 = vmul.f32 %v1250, %v1132
    %1261 = vrot.lane.b32.xlu0 %v1257, 64
    %v1262 = vpop.permute.xlu0 %1261
    %v1264 = vmul.f32 %v1250, %v1262
    %1266 = vrot.lane.b32.xlu0 %v1264, 32
    %v1267 = vpop.permute.xlu0 %1266
    %v1269 = vadd.f32 %v1259, %v1267
    %v1270 = vmul.f32 %v1256, %v1143
    %1272 = vrot.lane.b32.xlu0 %v1258, 64
    %v1273 = vpop.permute.xlu0 %1272
    %v1275 = vmul.f32 %v1256, %v1273
    %1277 = vrot.lane.b32.xlu0 %v1275, 32
    %v1278 = vpop.permute.xlu0 %1277
    %v1280 = vadd.f32 %v1270, %v1278
    %v1281 = vtanh.pop %v1269
    %1283 = vrot.lane.b32.xlu0 %v1281, 64
    %v1284 = vpop.permute.xlu0 %1283
    %v1286 = vmul.f32 %v1250, %v1284
    %v1287 = vtanh.pop %v1280
    %1289 = vrot.lane.b32.xlu0 %v1287, 64
    %v1290 = vpop.permute.xlu0 %1289
    %v1292 = vmul.f32 %v1256, %v1290
    %1294 = vrot.lane.b32.xlu0 %v1286, 32
    %v1295 = vpop.permute.xlu0 %1294
    %1297 = vst.msk [vmem:[%s882] sm:$0xff] %vm133, %v1295
    %1299 = vrot.lane.b32.xlu0 %v1292, 64
    %v1300 = vpop.permute.xlu0 %1299
    %1302 = vst.msk [vmem:[%s876] sm:$0xff] %vm592, %v1300
    %v1303 = vsel %vm133, %v1295, %v1300
    %v1305 = vsel %vm449, %v1303, 0
    %1307 = vmatprep.subr.mxu0 %v268
    %1308 = vmatpush1.msra.mxu0 %v267
    %1309 = vmatprep.subr.mxu0 %v270
    %1310 = vmatpush1.msra.mxu0 %v269
    %1311 = vmatprep.subr.mxu0 %v272
    %1312 = vmatpush1.msra.mxu0 %v271
    %1313 = vmatprep.subr.mxu0 %v274
    %1314 = vmatpush1.msra.mxu0 %v273
    %1315 = vmatprep.subr.mxu0 %v276
    %1316 = vmatpush1.msra.mxu0 %v275
    %1317 = vmatprep.subr.mxu0 %v278
    %1318 = vmatpush1.msra.mxu0 %v277
    %1319 = vmatprep.subr.mxu0 %v280
    %1320 = vmatpush1.msra.mxu0 %v279
    %1321 = vmatprep.subr.mxu0 %v282
    %1322 = vmatpush1.msra.mxu0 %v281
    %1323 = vmatprep.subr.mxu0 0.0
    %1324 = vmatpush1.msra.mxu0 0.0
    %1325 = vmatprep.subr.mxu0 0.0
    %1326 = vmatpush1.msra.mxu0 0.0
    %1327 = vmatprep.subr.mxu0 0.0
    %1328 = vmatpush1.msra.mxu0 0.0
    %1329 = vmatprep.subr.mxu0 0.0
    %1330 = vmatpush1.msra.mxu0 0.0
    %1331 = vmatprep.subr.mxu0 0.0
    %1332 = vmatpush1.msra.mxu0 0.0
    %1333 = vmatprep.subr.mxu0 0.0
    %1334 = vmatpush1.msra.mxu0 0.0
    %1335 = vmatprep.subr.mxu0 0.0
    %1336 = vmatpush1.msra.mxu0 0.0
    %1337 = vmatprep.subr.mxu0 0.0
    %1338 = vmatpush1.msra.mxu0 0.0
    %1339 = vmatprep.subr.mxu0 0.0
    %1340 = vmatpush1.msra.mxu0 0.0
    %1341 = vmatprep.subr.mxu0 0.0
    %1342 = vmatpush1.msra.mxu0 0.0
    %1343 = vmatprep.subr.mxu0 0.0
    %1344 = vmatpush1.msra.mxu0 0.0
    %1345 = vmatprep.subr.mxu0 0.0
    %1346 = vmatpush1.msra.mxu0 0.0
    %1347 = vmatprep.subr.mxu0 0.0
    %1348 = vmatpush1.msra.mxu0 0.0
    %1349 = vmatprep.subr.mxu0 0.0
    %1350 = vmatpush1.msra.mxu0 0.0
    %1351 = vmatprep.subr.mxu0 0.0
    %1352 = vmatpush1.msra.mxu0 0.0
    %1353 = vmatprep.subr.mxu0 0.0
    %1354 = vmatpush1.msra.mxu0 0.0
    %1355 = vmatprep.subr.mxu0 0.0
    %1356 = vmatpush1.msra.mxu0 0.0
    %1357 = vmatprep.subr.mxu0 0.0
    %1358 = vmatpush1.msra.mxu0 0.0
    %1359 = vmatprep.subr.mxu0 0.0
    %1360 = vmatpush1.msra.mxu0 0.0
    %1361 = vmatprep.subr.mxu0 0.0
    %1362 = vmatpush1.msra.mxu0 0.0
    %1363 = vmatprep.subr.mxu0 0.0
    %1364 = vmatpush1.msra.mxu0 0.0
    %1365 = vmatprep.subr.mxu0 0.0
    %1366 = vmatpush1.msra.mxu0 0.0
    %1367 = vmatprep.subr.mxu0 0.0
    %1368 = vmatpush1.msra.mxu0 0.0
    %1369 = vmatprep.subr.mxu0 0.0
    %1370 = vmatpush1.msra.mxu0 0.0
    %1371 = vmatprep.mubr.f32.mxu0 0.0
    %1372 = vmatmul.mubr.f32.gmra.mrb[0].mxu0 %v1305
    %v1373 = vpop.f32.mrb[0].mxu0
    %v1374 = vadd.f32 0.0, %v1373
    %v1375 = vpop.f32.mrb[0].mxu0
    %v1376 = vadd.f32 0.0, %v1375
    %1377 = vdwg.mxu0
    %v1378 = vld [vmem:[%s676] sm:$0xff]
    %v1379 = vadd.f32 %v1374, %v1378
    %v1380 = vld [vmem:[%s671 + $0x8] sm:$0xff]
    %v1381 = vadd.f32 %v1376, %v1380
    %v1382 = vxor.u32 %v1379, 2147483648
    %v1383 = vmul.f32 %v1382, 1.442695
    %v1384 = vpow.pop %v1383
    %v1385 = vadd.f32 %v1384, 1.0
    %v1386 = vrcp.pop %v1385
    %v1387 = vmul.f32 1.0, %v1386
    %v1388 = vxor.u32 %v1381, 2147483648
    %v1389 = vmul.f32 %v1388, 1.442695
    %v1390 = vpow.pop %v1389
    %v1391 = vadd.f32 %v1390, 1.0
    %v1392 = vrcp.pop %v1391
    %v1393 = vmul.f32 1.0, %v1392
    %v1394 = vtanh.pop %v1379
    %v1395 = vtanh.pop %v1381
    %v1396 = vmul.f32 %v1387, %v1269
    %1398 = vrot.lane.b32.xlu0 %v1394, 64
    %v1399 = vpop.permute.xlu0 %1398
    %v1401 = vmul.f32 %v1387, %v1399
    %1403 = vrot.lane.b32.xlu0 %v1401, 32
    %v1404 = vpop.permute.xlu0 %1403
    %v1406 = vadd.f32 %v1396, %v1404
    %v1407 = vmul.f32 %v1393, %v1280
    %1409 = vrot.lane.b32.xlu0 %v1395, 64
    %v1410 = vpop.permute.xlu0 %1409
    %v1412 = vmul.f32 %v1393, %v1410
    %1414 = vrot.lane.b32.xlu0 %v1412, 32
    %v1415 = vpop.permute.xlu0 %1414
    %v1417 = vadd.f32 %v1407, %v1415
    %v1418 = vtanh.pop %v1406
    %1420 = vrot.lane.b32.xlu0 %v1418, 64
    %v1421 = vpop.permute.xlu0 %1420
    %v1423 = vmul.f32 %v1387, %v1421
    %v1424 = vtanh.pop %v1417
    %1426 = vrot.lane.b32.xlu0 %v1424, 64
    %v1427 = vpop.permute.xlu0 %1426
    %v1429 = vmul.f32 %v1393, %v1427
    %1431 = vrot.lane.b32.xlu0 %v1423, 32
    %v1432 = vpop.permute.xlu0 %1431
    %1434 = vst.msk [vmem:[%s737] sm:$0xff] %vm133, %v1432
    %1436 = vrot.lane.b32.xlu0 %v1429, 64
    %v1437 = vpop.permute.xlu0 %1436
    %1439 = vst.msk [vmem:[%s731] sm:$0xff] %vm592, %v1437
    %v1440 = vsel %vm133, %v1432, %v1437
    %v1442 = vsel %vm449, %v1440, 0
    %1444 = vmatprep.subr.mxu0 %v268
    %1445 = vmatpush1.msra.mxu0 %v267
    %1446 = vmatprep.subr.mxu0 %v270
    %1447 = vmatpush1.msra.mxu0 %v269
    %1448 = vmatprep.subr.mxu0 %v272
    %1449 = vmatpush1.msra.mxu0 %v271
    %1450 = vmatprep.subr.mxu0 %v274
    %1451 = vmatpush1.msra.mxu0 %v273
    %1452 = vmatprep.subr.mxu0 %v276
    %1453 = vmatpush1.msra.mxu0 %v275
    %1454 = vmatprep.subr.mxu0 %v278
    %1455 = vmatpush1.msra.mxu0 %v277
    %1456 = vmatprep.subr.mxu0 %v280
    %1457 = vmatpush1.msra.mxu0 %v279
    %1458 = vmatprep.subr.mxu0 %v282
    %1459 = vmatpush1.msra.mxu0 %v281
    %1460 = vmatprep.subr.mxu0 0.0
    %1461 = vmatpush1.msra.mxu0 0.0
    %1462 = vmatprep.subr.mxu0 0.0
    %1463 = vmatpush1.msra.mxu0 0.0
    %1464 = vmatprep.subr.mxu0 0.0
    %1465 = vmatpush1.msra.mxu0 0.0
    %1466 = vmatprep.subr.mxu0 0.0
    %1467 = vmatpush1.msra.mxu0 0.0
    %1468 = vmatprep.subr.mxu0 0.0
    %1469 = vmatpush1.msra.mxu0 0.0
    %1470 = vmatprep.subr.mxu0 0.0
    %1471 = vmatpush1.msra.mxu0 0.0
    %1472 = vmatprep.subr.mxu0 0.0
    %1473 = vmatpush1.msra.mxu0 0.0
    %1474 = vmatprep.subr.mxu0 0.0
    %1475 = vmatpush1.msra.mxu0 0.0
    %1476 = vmatprep.subr.mxu0 0.0
    %1477 = vmatpush1.msra.mxu0 0.0
    %1478 = vmatprep.subr.mxu0 0.0
    %1479 = vmatpush1.msra.mxu0 0.0
    %1480 = vmatprep.subr.mxu0 0.0
    %1481 = vmatpush1.msra.mxu0 0.0
    %1482 = vmatprep.subr.mxu0 0.0
    %1483 = vmatpush1.msra.mxu0 0.0
    %1484 = vmatprep.subr.mxu0 0.0
    %1485 = vmatpush1.msra.mxu0 0.0
    %1486 = vmatprep.subr.mxu0 0.0
    %1487 = vmatpush1.msra.mxu0 0.0
    %1488 = vmatprep.subr.mxu0 0.0
    %1489 = vmatpush1.msra.mxu0 0.0
    %1490 = vmatprep.subr.mxu0 0.0
    %1491 = vmatpush1.msra.mxu0 0.0
    %1492 = vmatprep.subr.mxu0 0.0
    %1493 = vmatpush1.msra.mxu0 0.0
    %1494 = vmatprep.subr.mxu0 0.0
    %1495 = vmatpush1.msra.mxu0 0.0
    %1496 = vmatprep.subr.mxu0 0.0
    %1497 = vmatpush1.msra.mxu0 0.0
    %1498 = vmatprep.subr.mxu0 0.0
    %1499 = vmatpush1.msra.mxu0 0.0
    %1500 = vmatprep.subr.mxu0 0.0
    %1501 = vmatpush1.msra.mxu0 0.0
    %1502 = vmatprep.subr.mxu0 0.0
    %1503 = vmatpush1.msra.mxu0 0.0
    %1504 = vmatprep.subr.mxu0 0.0
    %1505 = vmatpush1.msra.mxu0 0.0
    %1506 = vmatprep.subr.mxu0 0.0
    %1507 = vmatpush1.msra.mxu0 0.0
    %1508 = vmatprep.mubr.f32.mxu0 0.0
    %1509 = vmatmul.mubr.f32.gmra.mrb[0].mxu0 %v1442
    %v1510 = vpop.f32.mrb[0].mxu0
    %v1511 = vadd.f32 0.0, %v1510
    %v1512 = vpop.f32.mrb[0].mxu0
    %v1513 = vadd.f32 0.0, %v1512
    %1514 = vdwg.mxu0
    %v1515 = vld [vmem:[%s531] sm:$0xff]
    %v1516 = vadd.f32 %v1511, %v1515
    %v1517 = vld [vmem:[%s526 + $0x8] sm:$0xff]
    %v1518 = vadd.f32 %v1513, %v1517
    %v1519 = vxor.u32 %v1516, 2147483648
    %v1520 = vmul.f32 %v1519, 1.442695
    %v1521 = vpow.pop %v1520
    %v1522 = vadd.f32 %v1521, 1.0
    %v1523 = vrcp.pop %v1522
    %v1524 = vmul.f32 1.0, %v1523
    %v1525 = vxor.u32 %v1518, 2147483648
    %v1526 = vmul.f32 %v1525, 1.442695
    %v1527 = vpow.pop %v1526
    %v1528 = vadd.f32 %v1527, 1.0
    %v1529 = vrcp.pop %v1528
    %v1530 = vmul.f32 1.0, %v1529
    %v1531 = vtanh.pop %v1516
    %v1532 = vtanh.pop %v1518
    %v1533 = vmul.f32 %v1524, %v1406
    %1535 = vrot.lane.b32.xlu0 %v1531, 64
    %v1536 = vpop.permute.xlu0 %1535
    %v1538 = vmul.f32 %v1524, %v1536
    %1540 = vrot.lane.b32.xlu0 %v1538, 32
    %v1541 = vpop.permute.xlu0 %1540
    %v1543 = vadd.f32 %v1533, %v1541
    %v1544 = vmul.f32 %v1530, %v1417
    %1546 = vrot.lane.b32.xlu0 %v1532, 64
    %v1547 = vpop.permute.xlu0 %1546
    %v1549 = vmul.f32 %v1530, %v1547
    %1551 = vrot.lane.b32.xlu0 %v1549, 32
    %v1552 = vpop.permute.xlu0 %1551
    %v1554 = vadd.f32 %v1544, %v1552
    %v1555 = vtanh.pop %v1543
    %1557 = vrot.lane.b32.xlu0 %v1555, 64
    %v1558 = vpop.permute.xlu0 %1557
    %v1560 = vmul.f32 %v1524, %v1558
    %v1561 = vtanh.pop %v1554
    %1563 = vrot.lane.b32.xlu0 %v1561, 64
    %v1564 = vpop.permute.xlu0 %1563
    %v1566 = vmul.f32 %v1530, %v1564
    %1568 = vrot.lane.b32.xlu0 %v1560, 32
    %v1569 = vpop.permute.xlu0 %1568
    %1571 = vst.msk [vmem:[%s591] sm:$0xff] %vm133, %v1569
    %1573 = vrot.lane.b32.xlu0 %v1566, 64
    %v1574 = vpop.permute.xlu0 %1573
    %1576 = vst.msk [vmem:[#allocation3] sm:$0xff] %vm592, %v1574
    %v1577 = vld [vmem:[#allocation3] sm:$0xff]
    %v1578 = vld [vmem:[#allocation3 + $0x8] sm:$0xff]
    %v1579 = vld [vmem:[#allocation3 + $0x10] sm:$0xff]
    %v1580 = vld [vmem:[#allocation3 + $0x18] sm:$0xff]
    %v1581 = vld [vmem:[#allocation3 + $0x20] sm:$0xff]
    %v1582 = vld [vmem:[#allocation3 + $0x28] sm:$0xff]
    %v1583 = vld [vmem:[#allocation3 + $0x30] sm:$0xff]
    %v1584 = vld [vmem:[#allocation3 + $0x38] sm:$0xff]
    %v1585 = vld [vmem:[#allocation5] sm:$0xff]
    %v1586 = vld [vmem:[#allocation5 + $0x8] sm:$0xff]
    %v1587 = vld [vmem:[#allocation5 + $0x10] sm:$0xff]
    %v1588 = vld [vmem:[#allocation5 + $0x18] sm:$0xff]
    %v1589 = vld [vmem:[#allocation5 + $0x20] sm:$0xff]
    %v1590 = vld [vmem:[#allocation5 + $0x28] sm:$0xff]
    %v1591 = vld [vmem:[#allocation5 + $0x30] sm:$0xff]
    %v1592 = vld [vmem:[#allocation5 + $0x38] sm:$0xff]
    %v1593 = vld [vmem:[#allocation5 + $0x40] sm:$0xff]
    %v1594 = vld [vmem:[#allocation5 + $0x48] sm:$0xff]
    %v1595 = vld [vmem:[#allocation5 + $0x50] sm:$0xff]
    %v1596 = vld [vmem:[#allocation5 + $0x58] sm:$0xff]
    %v1597 = vld [vmem:[#allocation5 + $0x60] sm:$0xff]
    %v1598 = vld [vmem:[#allocation5 + $0x68] sm:$0xff]
    %v1599 = vld [vmem:[#allocation5 + $0x70] sm:$0xff]
    %v1600 = vld [vmem:[#allocation5 + $0x78] sm:$0xff]
    %v1601 = vld [vmem:[#allocation7] sm:$0xff]
    %v1602 = vld [vmem:[#allocation7 + $0x8] sm:$0xff]
    %v1603 = vld [vmem:[#allocation7 + $0x10] sm:$0xff]
    %v1604 = vld [vmem:[#allocation7 + $0x18] sm:$0xff]
    %v1605 = vld [vmem:[#allocation7 + $0x20] sm:$0xff]
    %v1606 = vld [vmem:[#allocation7 + $0x28] sm:$0xff]
    %v1607 = vld [vmem:[#allocation7 + $0x30] sm:$0xff]
    %v1608 = vld [vmem:[#allocation7 + $0x38] sm:$0xff]
    %v1609 = vld [vmem:[#allocation7 + $0x40] sm:$0xff]
    %v1610 = vld [vmem:[#allocation7 + $0x48] sm:$0xff]
    %v1611 = vld [vmem:[#allocation7 + $0x50] sm:$0xff]
    %v1612 = vld [vmem:[#allocation7 + $0x58] sm:$0xff]
    %v1613 = vld [vmem:[#allocation7 + $0x60] sm:$0xff]
    %v1614 = vld [vmem:[#allocation7 + $0x68] sm:$0xff]
    %v1615 = vld [vmem:[#allocation7 + $0x70] sm:$0xff]
    %v1616 = vld [vmem:[#allocation7 + $0x78] sm:$0xff]
    %v1617 = vld [vmem:[%s7] sm:$0x3]
    %v1619 = vlaneseq
    %v1620 = vshrl.u32 %v1619, 7
    %v1621 = vsub.s32 0, %v1620
    %v1622 = vrot.slane %v1617, %v1621
    %v1623 = vlaneseq
    %v1624 = vshrl.u32 %v1623, 7
    %v1625 = vsub.s32 1, %v1624
    %v1626 = vrot.slane %v1617, %v1625
    %v1630 = vsel %vm449, %v1577, 0
    %v1633 = vsel %vm449, %v1578, 0
    %v1636 = vsel %vm449, %v1579, 0
    %v1639 = vsel %vm449, %v1580, 0
    %v1642 = vsel %vm449, %v1581, 0
    %v1645 = vsel %vm449, %v1582, 0
    %v1648 = vsel %vm449, %v1583, 0
    %v1651 = vsel %vm449, %v1584, 0
    %1653 = vmatprep.subr.mxu0 %v1586
    %1654 = vmatpush1.msra.mxu0 %v1585
    %1655 = vmatprep.subr.mxu0 %v1588
    %1656 = vmatpush1.msra.mxu0 %v1587
    %1657 = vmatprep.subr.mxu0 %v1590
    %1658 = vmatpush1.msra.mxu0 %v1589
    %1659 = vmatprep.subr.mxu0 %v1592
    %1660 = vmatpush1.msra.mxu0 %v1591
    %1661 = vmatprep.subr.mxu0 %v1594
    %1662 = vmatpush1.msra.mxu0 %v1593
    %1663 = vmatprep.subr.mxu0 %v1596
    %1664 = vmatpush1.msra.mxu0 %v1595
    %1665 = vmatprep.subr.mxu0 %v1598
    %1666 = vmatpush1.msra.mxu0 %v1597
    %1667 = vmatprep.subr.mxu0 %v1600
    %1668 = vmatpush1.msra.mxu0 %v1599
    %1669 = vmatprep.subr.mxu0 0.0
    %1670 = vmatpush1.msra.mxu0 0.0
    %1671 = vmatprep.subr.mxu0 0.0
    %1672 = vmatpush1.msra.mxu0 0.0
    %1673 = vmatprep.subr.mxu0 0.0
    %1674 = vmatpush1.msra.mxu0 0.0
    %1675 = vmatprep.subr.mxu0 0.0
    %1676 = vmatpush1.msra.mxu0 0.0
    %1677 = vmatprep.subr.mxu0 0.0
    %1678 = vmatpush1.msra.mxu0 0.0
    %1679 = vmatprep.subr.mxu0 0.0
    %1680 = vmatpush1.msra.mxu0 0.0
    %1681 = vmatprep.subr.mxu0 0.0
    %1682 = vmatpush1.msra.mxu0 0.0
    %1683 = vmatprep.subr.mxu0 0.0
    %1684 = vmatpush1.msra.mxu0 0.0
    %1685 = vmatprep.subr.mxu0 0.0
    %1686 = vmatpush1.msra.mxu0 0.0
    %1687 = vmatprep.subr.mxu0 0.0
    %1688 = vmatpush1.msra.mxu0 0.0
    %1689 = vmatprep.subr.mxu0 0.0
    %1690 = vmatpush1.msra.mxu0 0.0
    %1691 = vmatprep.subr.mxu0 0.0
    %1692 = vmatpush1.msra.mxu0 0.0
    %1693 = vmatprep.subr.mxu0 0.0
    %1694 = vmatpush1.msra.mxu0 0.0
    %1695 = vmatprep.subr.mxu0 0.0
    %1696 = vmatpush1.msra.mxu0 0.0
    %1697 = vmatprep.subr.mxu0 0.0
    %1698 = vmatpush1.msra.mxu0 0.0
    %1699 = vmatprep.subr.mxu0 0.0
    %1700 = vmatpush1.msra.mxu0 0.0
    %1701 = vmatprep.subr.mxu0 0.0
    %1702 = vmatpush1.msra.mxu0 0.0
    %1703 = vmatprep.subr.mxu0 0.0
    %1704 = vmatpush1.msra.mxu0 0.0
    %1705 = vmatprep.subr.mxu0 0.0
    %1706 = vmatpush1.msra.mxu0 0.0
    %1707 = vmatprep.subr.mxu0 0.0
    %1708 = vmatpush1.msra.mxu0 0.0
    %1709 = vmatprep.subr.mxu0 0.0
    %1710 = vmatpush1.msra.mxu0 0.0
    %1711 = vmatprep.subr.mxu0 0.0
    %1712 = vmatpush1.msra.mxu0 0.0
    %1713 = vmatprep.subr.mxu0 0.0
    %1714 = vmatpush1.msra.mxu0 0.0
    %1715 = vmatprep.subr.mxu0 0.0
    %1716 = vmatpush1.msra.mxu0 0.0
    %1717 = vmatprep.mubr.f32.mxu0 0.0
    %1718 = vmatmul.mubr.f32.gmra.mrb[0].mxu0 %v1630
    %v1719 = vpop.f32.mrb[0].mxu0
    %v1720 = vadd.f32 %v1622, %v1719
    %v1721 = vpop.f32.mrb[0].mxu0
    %v1722 = vadd.f32 %v1626, %v1721
    %1723 = vmatprep.mubr.f32.mxu0 0.0
    %1724 = vmatmul.mubr.f32.gmra.mrb[0].mxu0 %v1633
    %v1725 = vpop.f32.mrb[0].mxu0
    %v1726 = vadd.f32 %v1622, %v1725
    %v1727 = vpop.f32.mrb[0].mxu0
    %v1728 = vadd.f32 %v1626, %v1727
    %1729 = vmatprep.mubr.f32.mxu0 0.0
    %1730 = vmatmul.mubr.f32.gmra.mrb[0].mxu0 %v1636
    %v1731 = vpop.f32.mrb[0].mxu0
    %v1732 = vadd.f32 %v1622, %v1731
    %v1733 = vpop.f32.mrb[0].mxu0
    %v1734 = vadd.f32 %v1626, %v1733
    %1735 = vmatprep.mubr.f32.mxu0 0.0
    %1736 = vmatmul.mubr.f32.gmra.mrb[0].mxu0 %v1639
    %v1737 = vpop.f32.mrb[0].mxu0
    %v1738 = vadd.f32 %v1622, %v1737
    %v1739 = vpop.f32.mrb[0].mxu0
    %v1740 = vadd.f32 %v1626, %v1739
    %1741 = vmatprep.mubr.f32.mxu0 0.0
    %1742 = vmatmul.mubr.f32.gmra.mrb[0].mxu0 %v1642
    %v1743 = vpop.f32.mrb[0].mxu0
    %v1744 = vadd.f32 %v1622, %v1743
    %v1745 = vpop.f32.mrb[0].mxu0
    %v1746 = vadd.f32 %v1626, %v1745
    %1747 = vmatprep.mubr.f32.mxu0 0.0
    %1748 = vmatmul.mubr.f32.gmra.mrb[0].mxu0 %v1645
    %v1749 = vpop.f32.mrb[0].mxu0
    %v1750 = vadd.f32 %v1622, %v1749
    %v1751 = vpop.f32.mrb[0].mxu0
    %v1752 = vadd.f32 %v1626, %v1751
    %1753 = vmatprep.mubr.f32.mxu0 0.0
    %1754 = vmatmul.mubr.f32.gmra.mrb[0].mxu0 %v1648
    %v1755 = vpop.f32.mrb[0].mxu0
    %v1756 = vadd.f32 %v1622, %v1755
    %v1757 = vpop.f32.mrb[0].mxu0
    %v1758 = vadd.f32 %v1626, %v1757
    %1759 = vmatprep.mubr.f32.mxu0 0.0
    %1760 = vmatmul.mubr.f32.gmra.mrb[0].mxu0 %v1651
    %v1761 = vpop.f32.mrb[0].mxu0
    %v1762 = vadd.f32 %v1622, %v1761
    %v1763 = vpop.f32.mrb[0].mxu0
    %v1764 = vadd.f32 %v1626, %v1763
    %1765 = vdwg.mxu0
    %1766 = vst [vmem:[#allocation2] sm:$0xff] %v1720
    %1767 = vst [vmem:[#allocation2 + $0x8] sm:$0xff] %v1722
    %1768 = vst [vmem:[#allocation2 + $0x10] sm:$0xff] %v1726
    %1769 = vst [vmem:[#allocation2 + $0x18] sm:$0xff] %v1728
    %1770 = vst [vmem:[#allocation2 + $0x20] sm:$0xff] %v1732
    %1771 = vst [vmem:[#allocation2 + $0x28] sm:$0xff] %v1734
    %1772 = vst [vmem:[#allocation2 + $0x30] sm:$0xff] %v1738
    %1773 = vst [vmem:[#allocation2 + $0x38] sm:$0xff] %v1740
    %1774 = vst [vmem:[#allocation2 + $0x40] sm:$0xff] %v1744
    %1775 = vst [vmem:[#allocation2 + $0x48] sm:$0xff] %v1746
    %1776 = vst [vmem:[#allocation2 + $0x50] sm:$0xff] %v1750
    %1777 = vst [vmem:[#allocation2 + $0x58] sm:$0xff] %v1752
    %1778 = vst [vmem:[#allocation2 + $0x60] sm:$0xff] %v1756
    %1779 = vst [vmem:[#allocation2 + $0x68] sm:$0xff] %v1758
    %1780 = vst [vmem:[#allocation2 + $0x70] sm:$0xff] %v1762
    %1781 = vst [vmem:[#allocation2 + $0x78] sm:$0xff] %v1764
    %1782 = vmatprep.subr.mxu0 %v1602
    %1783 = vmatpush1.msra.mxu0 %v1601
    %1784 = vmatprep.subr.mxu0 %v1604
    %1785 = vmatpush1.msra.mxu0 %v1603
    %1786 = vmatprep.subr.mxu0 %v1606
    %1787 = vmatpush1.msra.mxu0 %v1605
    %1788 = vmatprep.subr.mxu0 %v1608
    %1789 = vmatpush1.msra.mxu0 %v1607
    %1790 = vmatprep.subr.mxu0 %v1610
    %1791 = vmatpush1.msra.mxu0 %v1609
    %1792 = vmatprep.subr.mxu0 %v1612
    %1793 = vmatpush1.msra.mxu0 %v1611
    %1794 = vmatprep.subr.mxu0 %v1614
    %1795 = vmatpush1.msra.mxu0 %v1613
    %1796 = vmatprep.subr.mxu0 %v1616
    %1797 = vmatpush1.msra.mxu0 %v1615
    %1798 = vmatprep.subr.mxu0 0.0
    %1799 = vmatpush1.msra.mxu0 0.0
    %1800 = vmatprep.subr.mxu0 0.0
    %1801 = vmatpush1.msra.mxu0 0.0
    %1802 = vmatprep.subr.mxu0 0.0
    %1803 = vmatpush1.msra.mxu0 0.0
    %1804 = vmatprep.subr.mxu0 0.0
    %1805 = vmatpush1.msra.mxu0 0.0
    %1806 = vmatprep.subr.mxu0 0.0
    %1807 = vmatpush1.msra.mxu0 0.0
    %1808 = vmatprep.subr.mxu0 0.0
    %1809 = vmatpush1.msra.mxu0 0.0
    %1810 = vmatprep.subr.mxu0 0.0
    %1811 = vmatpush1.msra.mxu0 0.0
    %1812 = vmatprep.subr.mxu0 0.0
    %1813 = vmatpush1.msra.mxu0 0.0
    %1814 = vmatprep.subr.mxu0 0.0
    %1815 = vmatpush1.msra.mxu0 0.0
    %1816 = vmatprep.subr.mxu0 0.0
    %1817 = vmatpush1.msra.mxu0 0.0
    %1818 = vmatprep.subr.mxu0 0.0
    %1819 = vmatpush1.msra.mxu0 0.0
    %1820 = vmatprep.subr.mxu0 0.0
    %1821 = vmatpush1.msra.mxu0 0.0
    %1822 = vmatprep.subr.mxu0 0.0
    %1823 = vmatpush1.msra.mxu0 0.0
    %1824 = vmatprep.subr.mxu0 0.0
    %1825 = vmatpush1.msra.mxu0 0.0
    %1826 = vmatprep.subr.mxu0 0.0
    %1827 = vmatpush1.msra.mxu0 0.0
    %1828 = vmatprep.subr.mxu0 0.0
    %1829 = vmatpush1.msra.mxu0 0.0
    %1830 = vmatprep.subr.mxu0 0.0
    %1831 = vmatpush1.msra.mxu0 0.0
    %1832 = vmatprep.subr.mxu0 0.0
    %1833 = vmatpush1.msra.mxu0 0.0
    %1834 = vmatprep.subr.mxu0 0.0
    %1835 = vmatpush1.msra.mxu0 0.0
    %1836 = vmatprep.subr.mxu0 0.0
    %1837 = vmatpush1.msra.mxu0 0.0
    %1838 = vmatprep.subr.mxu0 0.0
    %1839 = vmatpush1.msra.mxu0 0.0
    %1840 = vmatprep.subr.mxu0 0.0
    %1841 = vmatpush1.msra.mxu0 0.0
    %1842 = vmatprep.subr.mxu0 0.0
    %1843 = vmatpush1.msra.mxu0 0.0
    %1844 = vmatprep.subr.mxu0 0.0
    %1845 = vmatpush1.msra.mxu0 0.0
    %1846 = vmatprep.mubr.f32.mxu0 0.0
    %1847 = vmatmul.mubr.f32.gmra.mrb[0].mxu0 %v451
    %v1848 = vpop.f32.mrb[0].mxu0
    %v1849 = vadd.f32 0.0, %v1848
    %v1850 = vpop.f32.mrb[0].mxu0
    %v1851 = vadd.f32 0.0, %v1850
    %1852 = vdwg.mxu0
    %v1853 = vld [vmem:[%s526] sm:$0xff]
    %v1854 = vadd.f32 %v1849, %v1853
    %v1855 = vld [vmem:[%s531 + $0x8] sm:$0xff]
    %v1856 = vadd.f32 %v1851, %v1855
    %v1857 = vxor.u32 %v1854, 2147483648
    %v1858 = vmul.f32 %v1857, 1.442695
    %v1859 = vpow.pop %v1858
    %v1860 = vadd.f32 %v1859, 1.0
    %v1861 = vrcp.pop %v1860
    %v1862 = vmul.f32 1.0, %v1861
    %v1863 = vxor.u32 %v1856, 2147483648
    %v1864 = vmul.f32 %v1863, 1.442695
    %v1865 = vpow.pop %v1864
    %v1866 = vadd.f32 %v1865, 1.0
    %v1867 = vrcp.pop %v1866
    %v1868 = vmul.f32 1.0, %v1867
    %v1869 = vtanh.pop %v1854
    %v1870 = vtanh.pop %v1856
    %v1871 = vmul.f32 %v1862, 0.0
    %1873 = vrot.lane.b32.xlu0 %v1869, 64
    %v1874 = vpop.permute.xlu0 %1873
    %v1876 = vmul.f32 %v1862, %v1874
    %1878 = vrot.lane.b32.xlu0 %v1876, 32
    %v1879 = vpop.permute.xlu0 %1878
    %v1881 = vadd.f32 %v1871, %v1879
    %v1882 = vmul.f32 %v1868, 0.0
    %1884 = vrot.lane.b32.xlu0 %v1870, 64
    %v1885 = vpop.permute.xlu0 %1884
    %v1887 = vmul.f32 %v1868, %v1885
    %1889 = vrot.lane.b32.xlu0 %v1887, 32
    %v1890 = vpop.permute.xlu0 %1889
    %v1892 = vadd.f32 %v1882, %v1890
    %v1893 = vtanh.pop %v1881
    %1895 = vrot.lane.b32.xlu0 %v1893, 64
    %v1896 = vpop.permute.xlu0 %1895
    %v1898 = vmul.f32 %v1862, %v1896
    %v1899 = vtanh.pop %v1892
    %1901 = vrot.lane.b32.xlu0 %v1899, 64
    %v1902 = vpop.permute.xlu0 %1901
    %v1904 = vmul.f32 %v1868, %v1902
    %1906 = vrot.lane.b32.xlu0 %v1898, 32
    %v1907 = vpop.permute.xlu0 %1906
    %1909 = vst.msk [vmem:[#allocation3] sm:$0xff] %vm133, %v1907
    %1911 = vrot.lane.b32.xlu0 %v1904, 64
    %v1912 = vpop.permute.xlu0 %1911
    %1914 = vst.msk [vmem:[%s591] sm:$0xff] %vm592, %v1912
    %v1915 = vsel %vm133, %v1907, %v1912
    %v1917 = vsel %vm449, %v1915, 0
    %1919 = vmatprep.subr.mxu0 %v1602
    %1920 = vmatpush1.msra.mxu0 %v1601
    %1921 = vmatprep.subr.mxu0 %v1604
    %1922 = vmatpush1.msra.mxu0 %v1603
    %1923 = vmatprep.subr.mxu0 %v1606
    %1924 = vmatpush1.msra.mxu0 %v1605
    %1925 = vmatprep.subr.mxu0 %v1608
    %1926 = vmatpush1.msra.mxu0 %v1607
    %1927 = vmatprep.subr.mxu0 %v1610
    %1928 = vmatpush1.msra.mxu0 %v1609
    %1929 = vmatprep.subr.mxu0 %v1612
    %1930 = vmatpush1.msra.mxu0 %v1611
    %1931 = vmatprep.subr.mxu0 %v1614
    %1932 = vmatpush1.msra.mxu0 %v1613
    %1933 = vmatprep.subr.mxu0 %v1616
    %1934 = vmatpush1.msra.mxu0 %v1615
    %1935 = vmatprep.subr.mxu0 0.0
    %1936 = vmatpush1.msra.mxu0 0.0
    %1937 = vmatprep.subr.mxu0 0.0
    %1938 = vmatpush1.msra.mxu0 0.0
    %1939 = vmatprep.subr.mxu0 0.0
    %1940 = vmatpush1.msra.mxu0 0.0
    %1941 = vmatprep.subr.mxu0 0.0
    %1942 = vmatpush1.msra.mxu0 0.0
    %1943 = vmatprep.subr.mxu0 0.0
    %1944 = vmatpush1.msra.mxu0 0.0
    %1945 = vmatprep.subr.mxu0 0.0
    %1946 = vmatpush1.msra.mxu0 0.0
    %1947 = vmatprep.subr.mxu0 0.0
    %1948 = vmatpush1.msra.mxu0 0.0
    %1949 = vmatprep.subr.mxu0 0.0
    %1950 = vmatpush1.msra.mxu0 0.0
    %1951 = vmatprep.subr.mxu0 0.0
    %1952 = vmatpush1.msra.mxu0 0.0
    %1953 = vmatprep.subr.mxu0 0.0
    %1954 = vmatpush1.msra.mxu0 0.0
    %1955 = vmatprep.subr.mxu0 0.0
    %1956 = vmatpush1.msra.mxu0 0.0
    %1957 = vmatprep.subr.mxu0 0.0
    %1958 = vmatpush1.msra.mxu0 0.0
    %1959 = vmatprep.subr.mxu0 0.0
    %1960 = vmatpush1.msra.mxu0 0.0
    %1961 = vmatprep.subr.mxu0 0.0
    %1962 = vmatpush1.msra.mxu0 0.0
    %1963 = vmatprep.subr.mxu0 0.0
    %1964 = vmatpush1.msra.mxu0 0.0
    %1965 = vmatprep.subr.mxu0 0.0
    %1966 = vmatpush1.msra.mxu0 0.0
    %1967 = vmatprep.subr.mxu0 0.0
    %1968 = vmatpush1.msra.mxu0 0.0
    %1969 = vmatprep.subr.mxu0 0.0
    %1970 = vmatpush1.msra.mxu0 0.0
    %1971 = vmatprep.subr.mxu0 0.0
    %1972 = vmatpush1.msra.mxu0 0.0
    %1973 = vmatprep.subr.mxu0 0.0
    %1974 = vmatpush1.msra.mxu0 0.0
    %1975 = vmatprep.subr.mxu0 0.0
    %1976 = vmatpush1.msra.mxu0 0.0
    %1977 = vmatprep.subr.mxu0 0.0
    %1978 = vmatpush1.msra.mxu0 0.0
    %1979 = vmatprep.subr.mxu0 0.0
    %1980 = vmatpush1.msra.mxu0 0.0
    %1981 = vmatprep.subr.mxu0 0.0
    %1982 = vmatpush1.msra.mxu0 0.0
    %1983 = vmatprep.mubr.f32.mxu0 0.0
    %1984 = vmatmul.mubr.f32.gmra.mrb[0].mxu0 %v1917
    %v1985 = vpop.f32.mrb[0].mxu0
    %v1986 = vadd.f32 0.0, %v1985
    %v1987 = vpop.f32.mrb[0].mxu0
    %v1988 = vadd.f32 0.0, %v1987
    %1989 = vdwg.mxu0
    %v1990 = vld [vmem:[%s671] sm:$0xff]
    %v1991 = vadd.f32 %v1986, %v1990
    %v1992 = vld [vmem:[%s676 + $0x8] sm:$0xff]
    %v1993 = vadd.f32 %v1988, %v1992
    %v1994 = vxor.u32 %v1991, 2147483648
    %v1995 = vmul.f32 %v1994, 1.442695
    %v1996 = vpow.pop %v1995
    %v1997 = vadd.f32 %v1996, 1.0
    %v1998 = vrcp.pop %v1997
    %v1999 = vmul.f32 1.0, %v1998
    %v2000 = vxor.u32 %v1993, 2147483648
    %v2001 = vmul.f32 %v2000, 1.442695
    %v2002 = vpow.pop %v2001
    %v2003 = vadd.f32 %v2002, 1.0
    %v2004 = vrcp.pop %v2003
    %v2005 = vmul.f32 1.0, %v2004
    %v2006 = vtanh.pop %v1991
    %v2007 = vtanh.pop %v1993
    %v2008 = vmul.f32 %v1999, %v1881
    %2010 = vrot.lane.b32.xlu0 %v2006, 64
    %v2011 = vpop.permute.xlu0 %2010
    %v2013 = vmul.f32 %v1999, %v2011
    %2015 = vrot.lane.b32.xlu0 %v2013, 32
    %v2016 = vpop.permute.xlu0 %2015
    %v2018 = vadd.f32 %v2008, %v2016
    %v2019 = vmul.f32 %v2005, %v1892
    %2021 = vrot.lane.b32.xlu0 %v2007, 64
    %v2022 = vpop.permute.xlu0 %2021
    %v2024 = vmul.f32 %v2005, %v2022
    %2026 = vrot.lane.b32.xlu0 %v2024, 32
    %v2027 = vpop.permute.xlu0 %2026
    %v2029 = vadd.f32 %v2019, %v2027
    %v2030 = vtanh.pop %v2018
    %2032 = vrot.lane.b32.xlu0 %v2030, 64
    %v2033 = vpop.permute.xlu0 %2032
    %v2035 = vmul.f32 %v1999, %v2033
    %v2036 = vtanh.pop %v2029
    %2038 = vrot.lane.b32.xlu0 %v2036, 64
    %v2039 = vpop.permute.xlu0 %2038
    %v2041 = vmul.f32 %v2005, %v2039
    %2043 = vrot.lane.b32.xlu0 %v2035, 32
    %v2044 = vpop.permute.xlu0 %2043
    %2046 = vst.msk [vmem:[%s731] sm:$0xff] %vm133, %v2044
    %2048 = vrot.lane.b32.xlu0 %v2041, 64
    %v2049 = vpop.permute.xlu0 %2048
    %2051 = vst.msk [vmem:[%s737] sm:$0xff] %vm592, %v2049
    %v2052 = vsel %vm133, %v2044, %v2049
    %v2054 = vsel %vm449, %v2052, 0
    %2056 = vmatprep.subr.mxu0 %v1602
    %2057 = vmatpush1.msra.mxu0 %v1601
    %2058 = vmatprep.subr.mxu0 %v1604
    %2059 = vmatpush1.msra.mxu0 %v1603
    %2060 = vmatprep.subr.mxu0 %v1606
    %2061 = vmatpush1.msra.mxu0 %v1605
    %2062 = vmatprep.subr.mxu0 %v1608
    %2063 = vmatpush1.msra.mxu0 %v1607
    %2064 = vmatprep.subr.mxu0 %v1610
    %2065 = vmatpush1.msra.mxu0 %v1609
    %2066 = vmatprep.subr.mxu0 %v1612
    %2067 = vmatpush1.msra.mxu0 %v1611
    %2068 = vmatprep.subr.mxu0 %v1614
    %2069 = vmatpush1.msra.mxu0 %v1613
    %2070 = vmatprep.subr.mxu0 %v1616
    %2071 = vmatpush1.msra.mxu0 %v1615
    %2072 = vmatprep.subr.mxu0 0.0
    %2073 = vmatpush1.msra.mxu0 0.0
    %2074 = vmatprep.subr.mxu0 0.0
    %2075 = vmatpush1.msra.mxu0 0.0
    %2076 = vmatprep.subr.mxu0 0.0
    %2077 = vmatpush1.msra.mxu0 0.0
    %2078 = vmatprep.subr.mxu0 0.0
    %2079 = vmatpush1.msra.mxu0 0.0
    %2080 = vmatprep.subr.mxu0 0.0
    %2081 = vmatpush1.msra.mxu0 0.0
    %2082 = vmatprep.subr.mxu0 0.0
    %2083 = vmatpush1.msra.mxu0 0.0
    %2084 = vmatprep.subr.mxu0 0.0
    %2085 = vmatpush1.msra.mxu0 0.0
    %2086 = vmatprep.subr.mxu0 0.0
    %2087 = vmatpush1.msra.mxu0 0.0
    %2088 = vmatprep.subr.mxu0 0.0
    %2089 = vmatpush1.msra.mxu0 0.0
    %2090 = vmatprep.subr.mxu0 0.0
    %2091 = vmatpush1.msra.mxu0 0.0
    %2092 = vmatprep.subr.mxu0 0.0
    %2093 = vmatpush1.msra.mxu0 0.0
    %2094 = vmatprep.subr.mxu0 0.0
    %2095 = vmatpush1.msra.mxu0 0.0
    %2096 = vmatprep.subr.mxu0 0.0
    %2097 = vmatpush1.msra.mxu0 0.0
    %2098 = vmatprep.subr.mxu0 0.0
    %2099 = vmatpush1.msra.mxu0 0.0
    %2100 = vmatprep.subr.mxu0 0.0
    %2101 = vmatpush1.msra.mxu0 0.0
    %2102 = vmatprep.subr.mxu0 0.0
    %2103 = vmatpush1.msra.mxu0 0.0
    %2104 = vmatprep.subr.mxu0 0.0
    %2105 = vmatpush1.msra.mxu0 0.0
    %2106 = vmatprep.subr.mxu0 0.0
    %2107 = vmatpush1.msra.mxu0 0.0
    %2108 = vmatprep.subr.mxu0 0.0
    %2109 = vmatpush1.msra.mxu0 0.0
    %2110 = vmatprep.subr.mxu0 0.0
    %2111 = vmatpush1.msra.mxu0 0.0
    %2112 = vmatprep.subr.mxu0 0.0
    %2113 = vmatpush1.msra.mxu0 0.0
    %2114 = vmatprep.subr.mxu0 0.0
    %2115 = vmatpush1.msra.mxu0 0.0
    %2116 = vmatprep.subr.mxu0 0.0
    %2117 = vmatpush1.msra.mxu0 0.0
    %2118 = vmatprep.subr.mxu0 0.0
    %2119 = vmatpush1.msra.mxu0 0.0
    %2120 = vmatprep.mubr.f32.mxu0 0.0
    %2121 = vmatmul.mubr.f32.gmra.mrb[0].mxu0 %v2054
    %v2122 = vpop.f32.mrb[0].mxu0
    %v2123 = vadd.f32 0.0, %v2122
    %v2124 = vpop.f32.mrb[0].mxu0
    %v2125 = vadd.f32 0.0, %v2124
    %2126 = vdwg.mxu0
    %v2127 = vld [vmem:[%s816] sm:$0xff]
    %v2128 = vadd.f32 %v2123, %v2127
    %v2129 = vld [vmem:[%s821 + $0x8] sm:$0xff]
    %v2130 = vadd.f32 %v2125, %v2129
    %v2131 = vxor.u32 %v2128, 2147483648
    %v2132 = vmul.f32 %v2131, 1.442695
    %v2133 = vpow.pop %v2132
    %v2134 = vadd.f32 %v2133, 1.0
    %v2135 = vrcp.pop %v2134
    %v2136 = vmul.f32 1.0, %v2135
    %v2137 = vxor.u32 %v2130, 2147483648
    %v2138 = vmul.f32 %v2137, 1.442695
    %v2139 = vpow.pop %v2138
    %v2140 = vadd.f32 %v2139, 1.0
    %v2141 = vrcp.pop %v2140
    %v2142 = vmul.f32 1.0, %v2141
    %v2143 = vtanh.pop %v2128
    %v2144 = vtanh.pop %v2130
    %v2145 = vmul.f32 %v2136, %v2018
    %2147 = vrot.lane.b32.xlu0 %v2143, 64
    %v2148 = vpop.permute.xlu0 %2147
    %v2150 = vmul.f32 %v2136, %v2148
    %2152 = vrot.lane.b32.xlu0 %v2150, 32
    %v2153 = vpop.permute.xlu0 %2152
    %v2155 = vadd.f32 %v2145, %v2153
    %v2156 = vmul.f32 %v2142, %v2029
    %2158 = vrot.lane.b32.xlu0 %v2144, 64
    %v2159 = vpop.permute.xlu0 %2158
    %v2161 = vmul.f32 %v2142, %v2159
    %2163 = vrot.lane.b32.xlu0 %v2161, 32
    %v2164 = vpop.permute.xlu0 %2163
    %v2166 = vadd.f32 %v2156, %v2164
    %v2167 = vtanh.pop %v2155
    %2169 = vrot.lane.b32.xlu0 %v2167, 64
    %v2170 = vpop.permute.xlu0 %2169
    %v2172 = vmul.f32 %v2136, %v2170
    %v2173 = vtanh.pop %v2166
    %2175 = vrot.lane.b32.xlu0 %v2173, 64
    %v2176 = vpop.permute.xlu0 %2175
    %v2178 = vmul.f32 %v2142, %v2176
    %2180 = vrot.lane.b32.xlu0 %v2172, 32
    %v2181 = vpop.permute.xlu0 %2180
    %2183 = vst.msk [vmem:[%s876] sm:$0xff] %vm133, %v2181
    %2185 = vrot.lane.b32.xlu0 %v2178, 64
    %v2186 = vpop.permute.xlu0 %2185
    %2188 = vst.msk [vmem:[%s882] sm:$0xff] %vm592, %v2186
    %v2189 = vsel %vm133, %v2181, %v2186
    %v2191 = vsel %vm449, %v2189, 0
    %2193 = vmatprep.subr.mxu0 %v1602
    %2194 = vmatpush1.msra.mxu0 %v1601
    %2195 = vmatprep.subr.mxu0 %v1604
    %2196 = vmatpush1.msra.mxu0 %v1603
    %2197 = vmatprep.subr.mxu0 %v1606
    %2198 = vmatpush1.msra.mxu0 %v1605
    %2199 = vmatprep.subr.mxu0 %v1608
    %2200 = vmatpush1.msra.mxu0 %v1607
    %2201 = vmatprep.subr.mxu0 %v1610
    %2202 = vmatpush1.msra.mxu0 %v1609
    %2203 = vmatprep.subr.mxu0 %v1612
    %2204 = vmatpush1.msra.mxu0 %v1611
    %2205 = vmatprep.subr.mxu0 %v1614
    %2206 = vmatpush1.msra.mxu0 %v1613
    %2207 = vmatprep.subr.mxu0 %v1616
    %2208 = vmatpush1.msra.mxu0 %v1615
    %2209 = vmatprep.subr.mxu0 0.0
    %2210 = vmatpush1.msra.mxu0 0.0
    %2211 = vmatprep.subr.mxu0 0.0
    %2212 = vmatpush1.msra.mxu0 0.0
    %2213 = vmatprep.subr.mxu0 0.0
    %2214 = vmatpush1.msra.mxu0 0.0
    %2215 = vmatprep.subr.mxu0 0.0
    %2216 = vmatpush1.msra.mxu0 0.0
    %2217 = vmatprep.subr.mxu0 0.0
    %2218 = vmatpush1.msra.mxu0 0.0
    %2219 = vmatprep.subr.mxu0 0.0
    %2220 = vmatpush1.msra.mxu0 0.0
    %2221 = vmatprep.subr.mxu0 0.0
    %2222 = vmatpush1.msra.mxu0 0.0
    %2223 = vmatprep.subr.mxu0 0.0
    %2224 = vmatpush1.msra.mxu0 0.0
    %2225 = vmatprep.subr.mxu0 0.0
    %2226 = vmatpush1.msra.mxu0 0.0
    %2227 = vmatprep.subr.mxu0 0.0
    %2228 = vmatpush1.msra.mxu0 0.0
    %2229 = vmatprep.subr.mxu0 0.0
    %2230 = vmatpush1.msra.mxu0 0.0
    %2231 = vmatprep.subr.mxu0 0.0
    %2232 = vmatpush1.msra.mxu0 0.0
    %2233 = vmatprep.subr.mxu0 0.0
    %2234 = vmatpush1.msra.mxu0 0.0
    %2235 = vmatprep.subr.mxu0 0.0
    %2236 = vmatpush1.msra.mxu0 0.0
    %2237 = vmatprep.subr.mxu0 0.0
    %2238 = vmatpush1.msra.mxu0 0.0
    %2239 = vmatprep.subr.mxu0 0.0
    %2240 = vmatpush1.msra.mxu0 0.0
    %2241 = vmatprep.subr.mxu0 0.0
    %2242 = vmatpush1.msra.mxu0 0.0
    %2243 = vmatprep.subr.mxu0 0.0
    %2244 = vmatpush1.msra.mxu0 0.0
    %2245 = vmatprep.subr.mxu0 0.0
    %2246 = vmatpush1.msra.mxu0 0.0
    %2247 = vmatprep.subr.mxu0 0.0
    %2248 = vmatpush1.msra.mxu0 0.0
    %2249 = vmatprep.subr.mxu0 0.0
    %2250 = vmatpush1.msra.mxu0 0.0
    %2251 = vmatprep.subr.mxu0 0.0
    %2252 = vmatpush1.msra.mxu0 0.0
    %2253 = vmatprep.subr.mxu0 0.0
    %2254 = vmatpush1.msra.mxu0 0.0
    %2255 = vmatprep.subr.mxu0 0.0
    %2256 = vmatpush1.msra.mxu0 0.0
    %2257 = vmatprep.mubr.f32.mxu0 0.0
    %2258 = vmatmul.mubr.f32.gmra.mrb[0].mxu0 %v2191
    %v2259 = vpop.f32.mrb[0].mxu0
    %v2260 = vadd.f32 0.0, %v2259
    %v2261 = vpop.f32.mrb[0].mxu0
    %v2262 = vadd.f32 0.0, %v2261
    %2263 = vdwg.mxu0
    %v2264 = vld [vmem:[%s961] sm:$0xff]
    %v2265 = vadd.f32 %v2260, %v2264
    %v2266 = vld [vmem:[%s966 + $0x8] sm:$0xff]
    %v2267 = vadd.f32 %v2262, %v2266
    %v2268 = vxor.u32 %v2265, 2147483648
    %v2269 = vmul.f32 %v2268, 1.442695
    %v2270 = vpow.pop %v2269
    %v2271 = vadd.f32 %v2270, 1.0
    %v2272 = vrcp.pop %v2271
    %v2273 = vmul.f32 1.0, %v2272
    %v2274 = vxor.u32 %v2267, 2147483648
    %v2275 = vmul.f32 %v2274, 1.442695
    %v2276 = vpow.pop %v2275
    %v2277 = vadd.f32 %v2276, 1.0
    %v2278 = vrcp.pop %v2277
    %v2279 = vmul.f32 1.0, %v2278
    %v2280 = vtanh.pop %v2265
    %v2281 = vtanh.pop %v2267
    %v2282 = vmul.f32 %v2273, %v2155
    %2284 = vrot.lane.b32.xlu0 %v2280, 64
    %v2285 = vpop.permute.xlu0 %2284
    %v2287 = vmul.f32 %v2273, %v2285
    %2289 = vrot.lane.b32.xlu0 %v2287, 32
    %v2290 = vpop.permute.xlu0 %2289
    %v2292 = vadd.f32 %v2282, %v2290
    %v2293 = vmul.f32 %v2279, %v2166
    %2295 = vrot.lane.b32.xlu0 %v2281, 64
    %v2296 = vpop.permute.xlu0 %2295
    %v2298 = vmul.f32 %v2279, %v2296
    %2300 = vrot.lane.b32.xlu0 %v2298, 32
    %v2301 = vpop.permute.xlu0 %2300
    %v2303 = vadd.f32 %v2293, %v2301
    %v2304 = vtanh.pop %v2292
    %2306 = vrot.lane.b32.xlu0 %v2304, 64
    %v2307 = vpop.permute.xlu0 %2306
    %v2309 = vmul.f32 %v2273, %v2307
    %v2310 = vtanh.pop %v2303
    %2312 = vrot.lane.b32.xlu0 %v2310, 64
    %v2313 = vpop.permute.xlu0 %2312
    %v2315 = vmul.f32 %v2279, %v2313
    %2317 = vrot.lane.b32.xlu0 %v2309, 32
    %v2318 = vpop.permute.xlu0 %2317
    %2320 = vst.msk [vmem:[%s1021] sm:$0xff] %vm133, %v2318
    %2322 = vrot.lane.b32.xlu0 %v2315, 64
    %v2323 = vpop.permute.xlu0 %2322
    %2325 = vst.msk [vmem:[%s1027] sm:$0xff] %vm592, %v2323
    %v2326 = vsel %vm133, %v2318, %v2323
    %v2328 = vsel %vm449, %v2326, 0
    %2330 = vmatprep.subr.mxu0 %v1602
    %2331 = vmatpush1.msra.mxu0 %v1601
    %2332 = vmatprep.subr.mxu0 %v1604
    %2333 = vmatpush1.msra.mxu0 %v1603
    %2334 = vmatprep.subr.mxu0 %v1606
    %2335 = vmatpush1.msra.mxu0 %v1605
    %2336 = vmatprep.subr.mxu0 %v1608
    %2337 = vmatpush1.msra.mxu0 %v1607
    %2338 = vmatprep.subr.mxu0 %v1610
    %2339 = vmatpush1.msra.mxu0 %v1609
    %2340 = vmatprep.subr.mxu0 %v1612
    %2341 = vmatpush1.msra.mxu0 %v1611
    %2342 = vmatprep.subr.mxu0 %v1614
    %2343 = vmatpush1.msra.mxu0 %v1613
    %2344 = vmatprep.subr.mxu0 %v1616
    %2345 = vmatpush1.msra.mxu0 %v1615
    %2346 = vmatprep.subr.mxu0 0.0
    %2347 = vmatpush1.msra.mxu0 0.0
    %2348 = vmatprep.subr.mxu0 0.0
    %2349 = vmatpush1.msra.mxu0 0.0
    %2350 = vmatprep.subr.mxu0 0.0
    %2351 = vmatpush1.msra.mxu0 0.0
    %2352 = vmatprep.subr.mxu0 0.0
    %2353 = vmatpush1.msra.mxu0 0.0
    %2354 = vmatprep.subr.mxu0 0.0
    %2355 = vmatpush1.msra.mxu0 0.0
    %2356 = vmatprep.subr.mxu0 0.0
    %2357 = vmatpush1.msra.mxu0 0.0
    %2358 = vmatprep.subr.mxu0 0.0
    %2359 = vmatpush1.msra.mxu0 0.0
    %2360 = vmatprep.subr.mxu0 0.0
    %2361 = vmatpush1.msra.mxu0 0.0
    %2362 = vmatprep.subr.mxu0 0.0
    %2363 = vmatpush1.msra.mxu0 0.0
    %2364 = vmatprep.subr.mxu0 0.0
    %2365 = vmatpush1.msra.mxu0 0.0
    %2366 = vmatprep.subr.mxu0 0.0
    %2367 = vmatpush1.msra.mxu0 0.0
    %2368 = vmatprep.subr.mxu0 0.0
    %2369 = vmatpush1.msra.mxu0 0.0
    %2370 = vmatprep.subr.mxu0 0.0
    %2371 = vmatpush1.msra.mxu0 0.0
    %2372 = vmatprep.subr.mxu0 0.0
    %2373 = vmatpush1.msra.mxu0 0.0
    %2374 = vmatprep.subr.mxu0 0.0
    %2375 = vmatpush1.msra.mxu0 0.0
    %2376 = vmatprep.subr.mxu0 0.0
    %2377 = vmatpush1.msra.mxu0 0.0
    %2378 = vmatprep.subr.mxu0 0.0
    %2379 = vmatpush1.msra.mxu0 0.0
    %2380 = vmatprep.subr.mxu0 0.0
    %2381 = vmatpush1.msra.mxu0 0.0
    %2382 = vmatprep.subr.mxu0 0.0
    %2383 = vmatpush1.msra.mxu0 0.0
    %2384 = vmatprep.subr.mxu0 0.0
    %2385 = vmatpush1.msra.mxu0 0.0
    %2386 = vmatprep.subr.mxu0 0.0
    %2387 = vmatpush1.msra.mxu0 0.0
    %2388 = vmatprep.subr.mxu0 0.0
    %2389 = vmatpush1.msra.mxu0 0.0
    %2390 = vmatprep.subr.mxu0 0.0
    %2391 = vmatpush1.msra.mxu0 0.0
    %2392 = vmatprep.subr.mxu0 0.0
    %2393 = vmatpush1.msra.mxu0 0.0
    %2394 = vmatprep.mubr.f32.mxu0 0.0
    %2395 = vmatmul.mubr.f32.gmra.mrb[0].mxu0 %v2328
    %v2396 = vpop.f32.mrb[0].mxu0
    %v2397 = vadd.f32 0.0, %v2396
    %v2398 = vpop.f32.mrb[0].mxu0
    %v2399 = vadd.f32 0.0, %v2398
    %2400 = vdwg.mxu0
    %v2401 = vld [vmem:[%s966] sm:$0xff]
    %v2402 = vadd.f32 %v2397, %v2401
    %v2403 = vld [vmem:[%s961 + $0x8] sm:$0xff]
    %v2404 = vadd.f32 %v2399, %v2403
    %v2405 = vxor.u32 %v2402, 2147483648
    %v2406 = vmul.f32 %v2405, 1.442695
    %v2407 = vpow.pop %v2406
    %v2408 = vadd.f32 %v2407, 1.0
    %v2409 = vrcp.pop %v2408
    %v2410 = vmul.f32 1.0, %v2409
    %v2411 = vxor.u32 %v2404, 2147483648
    %v2412 = vmul.f32 %v2411, 1.442695
    %v2413 = vpow.pop %v2412
    %v2414 = vadd.f32 %v2413, 1.0
    %v2415 = vrcp.pop %v2414
    %v2416 = vmul.f32 1.0, %v2415
    %v2417 = vtanh.pop %v2402
    %v2418 = vtanh.pop %v2404
    %v2419 = vmul.f32 %v2410, %v2292
    %2421 = vrot.lane.b32.xlu0 %v2417, 64
    %v2422 = vpop.permute.xlu0 %2421
    %v2424 = vmul.f32 %v2410, %v2422
    %2426 = vrot.lane.b32.xlu0 %v2424, 32
    %v2427 = vpop.permute.xlu0 %2426
    %v2429 = vadd.f32 %v2419, %v2427
    %v2430 = vmul.f32 %v2416, %v2303
    %2432 = vrot.lane.b32.xlu0 %v2418, 64
    %v2433 = vpop.permute.xlu0 %2432
    %v2435 = vmul.f32 %v2416, %v2433
    %2437 = vrot.lane.b32.xlu0 %v2435, 32
    %v2438 = vpop.permute.xlu0 %2437
    %v2440 = vadd.f32 %v2430, %v2438
    %v2441 = vtanh.pop %v2429
    %2443 = vrot.lane.b32.xlu0 %v2441, 64
    %v2444 = vpop.permute.xlu0 %2443
    %v2446 = vmul.f32 %v2410, %v2444
    %v2447 = vtanh.pop %v2440
    %2449 = vrot.lane.b32.xlu0 %v2447, 64
    %v2450 = vpop.permute.xlu0 %2449
    %v2452 = vmul.f32 %v2416, %v2450
    %2454 = vrot.lane.b32.xlu0 %v2446, 32
    %v2455 = vpop.permute.xlu0 %2454
    %2457 = vst.msk [vmem:[%s1027] sm:$0xff] %vm133, %v2455
    %2459 = vrot.lane.b32.xlu0 %v2452, 64
    %v2460 = vpop.permute.xlu0 %2459
    %2462 = vst.msk [vmem:[%s1021] sm:$0xff] %vm592, %v2460
    %v2463 = vsel %vm133, %v2455, %v2460
    %v2465 = vsel %vm449, %v2463, 0
    %2467 = vmatprep.subr.mxu0 %v1602
    %2468 = vmatpush1.msra.mxu0 %v1601
    %2469 = vmatprep.subr.mxu0 %v1604
    %2470 = vmatpush1.msra.mxu0 %v1603
    %2471 = vmatprep.subr.mxu0 %v1606
    %2472 = vmatpush1.msra.mxu0 %v1605
    %2473 = vmatprep.subr.mxu0 %v1608
    %2474 = vmatpush1.msra.mxu0 %v1607
    %2475 = vmatprep.subr.mxu0 %v1610
    %2476 = vmatpush1.msra.mxu0 %v1609
    %2477 = vmatprep.subr.mxu0 %v1612
    %2478 = vmatpush1.msra.mxu0 %v1611
    %2479 = vmatprep.subr.mxu0 %v1614
    %2480 = vmatpush1.msra.mxu0 %v1613
    %2481 = vmatprep.subr.mxu0 %v1616
    %2482 = vmatpush1.msra.mxu0 %v1615
    %2483 = vmatprep.subr.mxu0 0.0
    %2484 = vmatpush1.msra.mxu0 0.0
    %2485 = vmatprep.subr.mxu0 0.0
    %2486 = vmatpush1.msra.mxu0 0.0
    %2487 = vmatprep.subr.mxu0 0.0
    %2488 = vmatpush1.msra.mxu0 0.0
    %2489 = vmatprep.subr.mxu0 0.0
    %2490 = vmatpush1.msra.mxu0 0.0
    %2491 = vmatprep.subr.mxu0 0.0
    %2492 = vmatpush1.msra.mxu0 0.0
    %2493 = vmatprep.subr.mxu0 0.0
    %2494 = vmatpush1.msra.mxu0 0.0
    %2495 = vmatprep.subr.mxu0 0.0
    %2496 = vmatpush1.msra.mxu0 0.0
    %2497 = vmatprep.subr.mxu0 0.0
    %2498 = vmatpush1.msra.mxu0 0.0
    %2499 = vmatprep.subr.mxu0 0.0
    %2500 = vmatpush1.msra.mxu0 0.0
    %2501 = vmatprep.subr.mxu0 0.0
    %2502 = vmatpush1.msra.mxu0 0.0
    %2503 = vmatprep.subr.mxu0 0.0
    %2504 = vmatpush1.msra.mxu0 0.0
    %2505 = vmatprep.subr.mxu0 0.0
    %2506 = vmatpush1.msra.mxu0 0.0
    %2507 = vmatprep.subr.mxu0 0.0
    %2508 = vmatpush1.msra.mxu0 0.0
    %2509 = vmatprep.subr.mxu0 0.0
    %2510 = vmatpush1.msra.mxu0 0.0
    %2511 = vmatprep.subr.mxu0 0.0
    %2512 = vmatpush1.msra.mxu0 0.0
    %2513 = vmatprep.subr.mxu0 0.0
    %2514 = vmatpush1.msra.mxu0 0.0
    %2515 = vmatprep.subr.mxu0 0.0
    %2516 = vmatpush1.msra.mxu0 0.0
    %2517 = vmatprep.subr.mxu0 0.0
    %2518 = vmatpush1.msra.mxu0 0.0
    %2519 = vmatprep.subr.mxu0 0.0
    %2520 = vmatpush1.msra.mxu0 0.0
    %2521 = vmatprep.subr.mxu0 0.0
    %2522 = vmatpush1.msra.mxu0 0.0
    %2523 = vmatprep.subr.mxu0 0.0
    %2524 = vmatpush1.msra.mxu0 0.0
    %2525 = vmatprep.subr.mxu0 0.0
    %2526 = vmatpush1.msra.mxu0 0.0
    %2527 = vmatprep.subr.mxu0 0.0
    %2528 = vmatpush1.msra.mxu0 0.0
    %2529 = vmatprep.subr.mxu0 0.0
    %2530 = vmatpush1.msra.mxu0 0.0
    %2531 = vmatprep.mubr.f32.mxu0 0.0
    %2532 = vmatmul.mubr.f32.gmra.mrb[0].mxu0 %v2465
    %v2533 = vpop.f32.mrb[0].mxu0
    %v2534 = vadd.f32 0.0, %v2533
    %v2535 = vpop.f32.mrb[0].mxu0
    %v2536 = vadd.f32 0.0, %v2535
    %2537 = vdwg.mxu0
    %v2538 = vld [vmem:[%s821] sm:$0xff]
    %v2539 = vadd.f32 %v2534, %v2538
    %v2540 = vld [vmem:[%s816 + $0x8] sm:$0xff]
    %v2541 = vadd.f32 %v2536, %v2540
    %v2542 = vxor.u32 %v2539, 2147483648
    %v2543 = vmul.f32 %v2542, 1.442695
    %v2544 = vpow.pop %v2543
    %v2545 = vadd.f32 %v2544, 1.0
    %v2546 = vrcp.pop %v2545
    %v2547 = vmul.f32 1.0, %v2546
    %v2548 = vxor.u32 %v2541, 2147483648
    %v2549 = vmul.f32 %v2548, 1.442695
    %v2550 = vpow.pop %v2549
    %v2551 = vadd.f32 %v2550, 1.0
    %v2552 = vrcp.pop %v2551
    %v2553 = vmul.f32 1.0, %v2552
    %v2554 = vtanh.pop %v2539
    %v2555 = vtanh.pop %v2541
    %v2556 = vmul.f32 %v2547, %v2429
    %2558 = vrot.lane.b32.xlu0 %v2554, 64
    %v2559 = vpop.permute.xlu0 %2558
    %v2561 = vmul.f32 %v2547, %v2559
    %2563 = vrot.lane.b32.xlu0 %v2561, 32
    %v2564 = vpop.permute.xlu0 %2563
    %v2566 = vadd.f32 %v2556, %v2564
    %v2567 = vmul.f32 %v2553, %v2440
    %2569 = vrot.lane.b32.xlu0 %v2555, 64
    %v2570 = vpop.permute.xlu0 %2569
    %v2572 = vmul.f32 %v2553, %v2570
    %2574 = vrot.lane.b32.xlu0 %v2572, 32
    %v2575 = vpop.permute.xlu0 %2574
    %v2577 = vadd.f32 %v2567, %v2575
    %v2578 = vtanh.pop %v2566
    %2580 = vrot.lane.b32.xlu0 %v2578, 64
    %v2581 = vpop.permute.xlu0 %2580
    %v2583 = vmul.f32 %v2547, %v2581
    %v2584 = vtanh.pop %v2577
    %2586 = vrot.lane.b32.xlu0 %v2584, 64
    %v2587 = vpop.permute.xlu0 %2586
    %v2589 = vmul.f32 %v2553, %v2587
    %2591 = vrot.lane.b32.xlu0 %v2583, 32
    %v2592 = vpop.permute.xlu0 %2591
    %2594 = vst.msk [vmem:[%s882] sm:$0xff] %vm133, %v2592
    %2596 = vrot.lane.b32.xlu0 %v2589, 64
    %v2597 = vpop.permute.xlu0 %2596
    %2599 = vst.msk [vmem:[%s876] sm:$0xff] %vm592, %v2597
    %v2600 = vsel %vm133, %v2592, %v2597
    %v2602 = vsel %vm449, %v2600, 0
    %2604 = vmatprep.subr.mxu0 %v1602
    %2605 = vmatpush1.msra.mxu0 %v1601
    %2606 = vmatprep.subr.mxu0 %v1604
    %2607 = vmatpush1.msra.mxu0 %v1603
    %2608 = vmatprep.subr.mxu0 %v1606
    %2609 = vmatpush1.msra.mxu0 %v1605
    %2610 = vmatprep.subr.mxu0 %v1608
    %2611 = vmatpush1.msra.mxu0 %v1607
    %2612 = vmatprep.subr.mxu0 %v1610
    %2613 = vmatpush1.msra.mxu0 %v1609
    %2614 = vmatprep.subr.mxu0 %v1612
    %2615 = vmatpush1.msra.mxu0 %v1611
    %2616 = vmatprep.subr.mxu0 %v1614
    %2617 = vmatpush1.msra.mxu0 %v1613
    %2618 = vmatprep.subr.mxu0 %v1616
    %2619 = vmatpush1.msra.mxu0 %v1615
    %2620 = vmatprep.subr.mxu0 0.0
    %2621 = vmatpush1.msra.mxu0 0.0
    %2622 = vmatprep.subr.mxu0 0.0
    %2623 = vmatpush1.msra.mxu0 0.0
    %2624 = vmatprep.subr.mxu0 0.0
    %2625 = vmatpush1.msra.mxu0 0.0
    %2626 = vmatprep.subr.mxu0 0.0
    %2627 = vmatpush1.msra.mxu0 0.0
    %2628 = vmatprep.subr.mxu0 0.0
    %2629 = vmatpush1.msra.mxu0 0.0
    %2630 = vmatprep.subr.mxu0 0.0
    %2631 = vmatpush1.msra.mxu0 0.0
    %2632 = vmatprep.subr.mxu0 0.0
    %2633 = vmatpush1.msra.mxu0 0.0
    %2634 = vmatprep.subr.mxu0 0.0
    %2635 = vmatpush1.msra.mxu0 0.0
    %2636 = vmatprep.subr.mxu0 0.0
    %2637 = vmatpush1.msra.mxu0 0.0
    %2638 = vmatprep.subr.mxu0 0.0
    %2639 = vmatpush1.msra.mxu0 0.0
    %2640 = vmatprep.subr.mxu0 0.0
    %2641 = vmatpush1.msra.mxu0 0.0
    %2642 = vmatprep.subr.mxu0 0.0
    %2643 = vmatpush1.msra.mxu0 0.0
    %2644 = vmatprep.subr.mxu0 0.0
    %2645 = vmatpush1.msra.mxu0 0.0
    %2646 = vmatprep.subr.mxu0 0.0
    %2647 = vmatpush1.msra.mxu0 0.0
    %2648 = vmatprep.subr.mxu0 0.0
    %2649 = vmatpush1.msra.mxu0 0.0
    %2650 = vmatprep.subr.mxu0 0.0
    %2651 = vmatpush1.msra.mxu0 0.0
    %2652 = vmatprep.subr.mxu0 0.0
    %2653 = vmatpush1.msra.mxu0 0.0
    %2654 = vmatprep.subr.mxu0 0.0
    %2655 = vmatpush1.msra.mxu0 0.0
    %2656 = vmatprep.subr.mxu0 0.0
    %2657 = vmatpush1.msra.mxu0 0.0
    %2658 = vmatprep.subr.mxu0 0.0
    %2659 = vmatpush1.msra.mxu0 0.0
    %2660 = vmatprep.subr.mxu0 0.0
    %2661 = vmatpush1.msra.mxu0 0.0
    %2662 = vmatprep.subr.mxu0 0.0
    %2663 = vmatpush1.msra.mxu0 0.0
    %2664 = vmatprep.subr.mxu0 0.0
    %2665 = vmatpush1.msra.mxu0 0.0
    %2666 = vmatprep.subr.mxu0 0.0
    %2667 = vmatpush1.msra.mxu0 0.0
    %2668 = vmatprep.mubr.f32.mxu0 0.0
    %2669 = vmatmul.mubr.f32.gmra.mrb[0].mxu0 %v2602
    %v2670 = vpop.f32.mrb[0].mxu0
    %v2671 = vadd.f32 0.0, %v2670
    %v2672 = vpop.f32.mrb[0].mxu0
    %v2673 = vadd.f32 0.0, %v2672
    %2674 = vdwg.mxu0
    %v2675 = vld [vmem:[%s676] sm:$0xff]
    %v2676 = vadd.f32 %v2671, %v2675
    %v2677 = vld [vmem:[%s671 + $0x8] sm:$0xff]
    %v2678 = vadd.f32 %v2673, %v2677
    %v2679 = vxor.u32 %v2676, 2147483648
    %v2680 = vmul.f32 %v2679, 1.442695
    %v2681 = vpow.pop %v2680
    %v2682 = vadd.f32 %v2681, 1.0
    %v2683 = vrcp.pop %v2682
    %v2684 = vmul.f32 1.0, %v2683
    %v2685 = vxor.u32 %v2678, 2147483648
    %v2686 = vmul.f32 %v2685, 1.442695
    %v2687 = vpow.pop %v2686
    %v2688 = vadd.f32 %v2687, 1.0
    %v2689 = vrcp.pop %v2688
    %v2690 = vmul.f32 1.0, %v2689
    %v2691 = vtanh.pop %v2676
    %v2692 = vtanh.pop %v2678
    %v2693 = vmul.f32 %v2684, %v2566
    %2695 = vrot.lane.b32.xlu0 %v2691, 64
    %v2696 = vpop.permute.xlu0 %2695
    %v2698 = vmul.f32 %v2684, %v2696
    %2700 = vrot.lane.b32.xlu0 %v2698, 32
    %v2701 = vpop.permute.xlu0 %2700
    %v2703 = vadd.f32 %v2693, %v2701
    %v2704 = vmul.f32 %v2690, %v2577
    %2706 = vrot.lane.b32.xlu0 %v2692, 64
    %v2707 = vpop.permute.xlu0 %2706
    %v2709 = vmul.f32 %v2690, %v2707
    %2711 = vrot.lane.b32.xlu0 %v2709, 32
    %v2712 = vpop.permute.xlu0 %2711
    %v2714 = vadd.f32 %v2704, %v2712
    %v2715 = vtanh.pop %v2703
    %2717 = vrot.lane.b32.xlu0 %v2715, 64
    %v2718 = vpop.permute.xlu0 %2717
    %v2720 = vmul.f32 %v2684, %v2718
    %v2721 = vtanh.pop %v2714
    %2723 = vrot.lane.b32.xlu0 %v2721, 64
    %v2724 = vpop.permute.xlu0 %2723
    %v2726 = vmul.f32 %v2690, %v2724
    %2728 = vrot.lane.b32.xlu0 %v2720, 32
    %v2729 = vpop.permute.xlu0 %2728
    %2731 = vst.msk [vmem:[%s737] sm:$0xff] %vm133, %v2729
    %2733 = vrot.lane.b32.xlu0 %v2726, 64
    %v2734 = vpop.permute.xlu0 %2733
    %2736 = vst.msk [vmem:[%s731] sm:$0xff] %vm592, %v2734
    %v2737 = vsel %vm133, %v2729, %v2734
    %v2739 = vsel %vm449, %v2737, 0
    %2741 = vmatprep.subr.mxu0 %v1602
    %2742 = vmatpush1.msra.mxu0 %v1601
    %2743 = vmatprep.subr.mxu0 %v1604
    %2744 = vmatpush1.msra.mxu0 %v1603
    %2745 = vmatprep.subr.mxu0 %v1606
    %2746 = vmatpush1.msra.mxu0 %v1605
    %2747 = vmatprep.subr.mxu0 %v1608
    %2748 = vmatpush1.msra.mxu0 %v1607
    %2749 = vmatprep.subr.mxu0 %v1610
    %2750 = vmatpush1.msra.mxu0 %v1609
    %2751 = vmatprep.subr.mxu0 %v1612
    %2752 = vmatpush1.msra.mxu0 %v1611
    %2753 = vmatprep.subr.mxu0 %v1614
    %2754 = vmatpush1.msra.mxu0 %v1613
    %2755 = vmatprep.subr.mxu0 %v1616
    %2756 = vmatpush1.msra.mxu0 %v1615
    %2757 = vmatprep.subr.mxu0 0.0
    %2758 = vmatpush1.msra.mxu0 0.0
    %2759 = vmatprep.subr.mxu0 0.0
    %2760 = vmatpush1.msra.mxu0 0.0
    %2761 = vmatprep.subr.mxu0 0.0
    %2762 = vmatpush1.msra.mxu0 0.0
    %2763 = vmatprep.subr.mxu0 0.0
    %2764 = vmatpush1.msra.mxu0 0.0
    %2765 = vmatprep.subr.mxu0 0.0
    %2766 = vmatpush1.msra.mxu0 0.0
    %2767 = vmatprep.subr.mxu0 0.0
    %2768 = vmatpush1.msra.mxu0 0.0
    %2769 = vmatprep.subr.mxu0 0.0
    %2770 = vmatpush1.msra.mxu0 0.0
    %2771 = vmatprep.subr.mxu0 0.0
    %2772 = vmatpush1.msra.mxu0 0.0
    %2773 = vmatprep.subr.mxu0 0.0
    %2774 = vmatpush1.msra.mxu0 0.0
    %2775 = vmatprep.subr.mxu0 0.0
    %2776 = vmatpush1.msra.mxu0 0.0
    %2777 = vmatprep.subr.mxu0 0.0
    %2778 = vmatpush1.msra.mxu0 0.0
    %2779 = vmatprep.subr.mxu0 0.0
    %2780 = vmatpush1.msra.mxu0 0.0
    %2781 = vmatprep.subr.mxu0 0.0
    %2782 = vmatpush1.msra.mxu0 0.0
    %2783 = vmatprep.subr.mxu0 0.0
    %2784 = vmatpush1.msra.mxu0 0.0
    %2785 = vmatprep.subr.mxu0 0.0
    %2786 = vmatpush1.msra.mxu0 0.0
    %2787 = vmatprep.subr.mxu0 0.0
    %2788 = vmatpush1.msra.mxu0 0.0
    %2789 = vmatprep.subr.mxu0 0.0
    %2790 = vmatpush1.msra.mxu0 0.0
    %2791 = vmatprep.subr.mxu0 0.0
    %2792 = vmatpush1.msra.mxu0 0.0
    %2793 = vmatprep.subr.mxu0 0.0
    %2794 = vmatpush1.msra.mxu0 0.0
    %2795 = vmatprep.subr.mxu0 0.0
    %2796 = vmatpush1.msra.mxu0 0.0
    %2797 = vmatprep.subr.mxu0 0.0
    %2798 = vmatpush1.msra.mxu0 0.0
    %2799 = vmatprep.subr.mxu0 0.0
    %2800 = vmatpush1.msra.mxu0 0.0
    %2801 = vmatprep.subr.mxu0 0.0
    %2802 = vmatpush1.msra.mxu0 0.0
    %2803 = vmatprep.subr.mxu0 0.0
    %2804 = vmatpush1.msra.mxu0 0.0
    %2805 = vmatprep.mubr.f32.mxu0 0.0
    %2806 = vmatmul.mubr.f32.gmra.mrb[0].mxu0 %v2739
    %v2807 = vpop.f32.mrb[0].mxu0
    %v2808 = vadd.f32 0.0, %v2807
    %v2809 = vpop.f32.mrb[0].mxu0
    %v2810 = vadd.f32 0.0, %v2809
    %2811 = vdwg.mxu0
    %v2812 = vld [vmem:[%s531] sm:$0xff]
    %v2813 = vadd.f32 %v2808, %v2812
    %v2814 = vld [vmem:[%s526 + $0x8] sm:$0xff]
    %v2815 = vadd.f32 %v2810, %v2814
    %v2816 = vxor.u32 %v2813, 2147483648
    %v2817 = vmul.f32 %v2816, 1.442695
    %v2818 = vpow.pop %v2817
    %v2819 = vadd.f32 %v2818, 1.0
    %v2820 = vrcp.pop %v2819
    %v2821 = vmul.f32 1.0, %v2820
    %v2822 = vxor.u32 %v2815, 2147483648
    %v2823 = vmul.f32 %v2822, 1.442695
    %v2824 = vpow.pop %v2823
    %v2825 = vadd.f32 %v2824, 1.0
    %v2826 = vrcp.pop %v2825
    %v2827 = vmul.f32 1.0, %v2826
    %v2828 = vtanh.pop %v2813
    %v2829 = vtanh.pop %v2815
    %v2830 = vmul.f32 %v2821, %v2703
    %2832 = vrot.lane.b32.xlu0 %v2828, 64
    %v2833 = vpop.permute.xlu0 %2832
    %v2835 = vmul.f32 %v2821, %v2833
    %2837 = vrot.lane.b32.xlu0 %v2835, 32
    %v2838 = vpop.permute.xlu0 %2837
    %v2840 = vadd.f32 %v2830, %v2838
    %v2841 = vmul.f32 %v2827, %v2714
    %2843 = vrot.lane.b32.xlu0 %v2829, 64
    %v2844 = vpop.permute.xlu0 %2843
    %v2846 = vmul.f32 %v2827, %v2844
    %2848 = vrot.lane.b32.xlu0 %v2846, 32
    %v2849 = vpop.permute.xlu0 %2848
    %v2851 = vadd.f32 %v2841, %v2849
    %v2852 = vtanh.pop %v2840
    %2854 = vrot.lane.b32.xlu0 %v2852, 64
    %v2855 = vpop.permute.xlu0 %2854
    %v2857 = vmul.f32 %v2821, %v2855
    %v2858 = vtanh.pop %v2851
    %2860 = vrot.lane.b32.xlu0 %v2858, 64
    %v2861 = vpop.permute.xlu0 %2860
    %v2863 = vmul.f32 %v2827, %v2861
    %2865 = vrot.lane.b32.xlu0 %v2857, 32
    %v2866 = vpop.permute.xlu0 %2865
    %2868 = vst.msk [vmem:[%s591] sm:$0xff] %vm133, %v2866
    %2870 = vrot.lane.b32.xlu0 %v2863, 64
    %v2871 = vpop.permute.xlu0 %2870
    %2873 = vst.msk [vmem:[#allocation3] sm:$0xff] %vm592, %v2871
    %v2874 = vsel %vm133, %v2866, %v2871
    %v2875 = vld [vmem:[%s8] sm:$0xff]
    %v2876 = vld [vmem:[%s8 + $0x8] sm:$0xff]
    %v2877 = vld [vmem:[%s8 + $0x10] sm:$0xff]
    %v2878 = vld [vmem:[%s8 + $0x18] sm:$0xff]
    %v2879 = vld [vmem:[%s8 + $0x20] sm:$0xff]
    %v2880 = vld [vmem:[%s8 + $0x28] sm:$0xff]
    %v2881 = vld [vmem:[%s8 + $0x30] sm:$0xff]
    %v2882 = vld [vmem:[%s8 + $0x38] sm:$0xff]
    %v2883 = vld [vmem:[%s9] sm:$0x1]
    %v2885 = vlaneseq
    %v2886 = vshrl.u32 %v2885, 7
    %v2887 = vsub.s32 0, %v2886
    %v2888 = vrot.slane %v2883, %v2887
    %v2891 = vsel %vm449, %v2874, 0
    %2893 = vmatprep.subr.mxu0 0.0
    %2894 = vmatpush1.msra.mxu0 %v2875
    %2895 = vmatprep.subr.mxu0 0.0
    %2896 = vmatpush1.msra.mxu0 %v2876
    %2897 = vmatprep.subr.mxu0 0.0
    %2898 = vmatpush1.msra.mxu0 %v2877
    %2899 = vmatprep.subr.mxu0 0.0
    %2900 = vmatpush1.msra.mxu0 %v2878
    %2901 = vmatprep.subr.mxu0 0.0
    %2902 = vmatpush1.msra.mxu0 %v2879
    %2903 = vmatprep.subr.mxu0 0.0
    %2904 = vmatpush1.msra.mxu0 %v2880
    %2905 = vmatprep.subr.mxu0 0.0
    %2906 = vmatpush1.msra.mxu0 %v2881
    %2907 = vmatprep.subr.mxu0 0.0
    %2908 = vmatpush1.msra.mxu0 %v2882
    %2909 = vmatprep.subr.mxu0 0.0
    %2910 = vmatpush1.msra.mxu0 0.0
    %2911 = vmatprep.subr.mxu0 0.0
    %2912 = vmatpush1.msra.mxu0 0.0
    %2913 = vmatprep.subr.mxu0 0.0
    %2914 = vmatpush1.msra.mxu0 0.0
    %2915 = vmatprep.subr.mxu0 0.0
    %2916 = vmatpush1.msra.mxu0 0.0
    %2917 = vmatprep.subr.mxu0 0.0
    %2918 = vmatpush1.msra.mxu0 0.0
    %2919 = vmatprep.subr.mxu0 0.0
    %2920 = vmatpush1.msra.mxu0 0.0
    %2921 = vmatprep.subr.mxu0 0.0
    %2922 = vmatpush1.msra.mxu0 0.0
    %2923 = vmatprep.subr.mxu0 0.0
    %2924 = vmatpush1.msra.mxu0 0.0
    %2925 = vmatprep.subr.mxu0 0.0
    %2926 = vmatpush1.msra.mxu0 0.0
    %2927 = vmatprep.subr.mxu0 0.0
    %2928 = vmatpush1.msra.mxu0 0.0
    %2929 = vmatprep.subr.mxu0 0.0
    %2930 = vmatpush1.msra.mxu0 0.0
    %2931 = vmatprep.subr.mxu0 0.0
    %2932 = vmatpush1.msra.mxu0 0.0
    %2933 = vmatprep.subr.mxu0 0.0
    %2934 = vmatpush1.msra.mxu0 0.0
    %2935 = vmatprep.subr.mxu0 0.0
    %2936 = vmatpush1.msra.mxu0 0.0
    %2937 = vmatprep.subr.mxu0 0.0
    %2938 = vmatpush1.msra.mxu0 0.0
    %2939 = vmatprep.subr.mxu0 0.0
    %2940 = vmatpush1.msra.mxu0 0.0
    %2941 = vmatprep.subr.mxu0 0.0
    %2942 = vmatpush1.msra.mxu0 0.0
    %2943 = vmatprep.subr.mxu0 0.0
    %2944 = vmatpush1.msra.mxu0 0.0
    %2945 = vmatprep.subr.mxu0 0.0
    %2946 = vmatpush1.msra.mxu0 0.0
    %2947 = vmatprep.subr.mxu0 0.0
    %2948 = vmatpush1.msra.mxu0 0.0
    %2949 = vmatprep.subr.mxu0 0.0
    %2950 = vmatpush1.msra.mxu0 0.0
    %2951 = vmatprep.subr.mxu0 0.0
    %2952 = vmatpush1.msra.mxu0 0.0
    %2953 = vmatprep.subr.mxu0 0.0
    %2954 = vmatpush1.msra.mxu0 0.0
    %2955 = vmatprep.subr.mxu0 0.0
    %2956 = vmatpush1.msra.mxu0 0.0
    %2957 = vmatprep.mubr.f32.mxu0 0.0
    %2958 = vmatmul.mubr.f32.gmra.mrb[0].mxu0 %v2891
    %v2959 = vpop.f32.mrb[0].mxu0
    %v2960 = vadd.f32 %v2888, %v2959
    %v2961 = vpop.f32.mrb[0].mxu0
    %2962 = vdwg.mxu0
    %v2963 = vmax.f32 %v2960, 0.0
    %v2964 = vld [vmem:[%s10] sm:$0x1f]
    %v2965 = vld [vmem:[#allocation4] sm:$0x1]
    %v2967 = vlaneseq
    %v2968 = vshrl.u32 %v2967, 7
    %v2969 = vsub.s32 0, %v2968
    %v2970 = vrot.slane %v2965, %v2969
    %vm2972 = vcmask 39936
    %v2974 = vsel %vm2972, %v2963, 0
    %vm2976 = vcmask 1044480
    %v2978 = vsel %vm2976, %v2964, 0
    %2980 = vmatprep.subr.mxu0 0.0
    %2981 = vmatpush1.msra.mxu0 %v2978
    %2982 = vmatprep.subr.mxu0 0.0
    %2983 = vmatpush1.msra.mxu0 0.0
    %2984 = vmatprep.subr.mxu0 0.0
    %2985 = vmatpush1.msra.mxu0 0.0
    %2986 = vmatprep.subr.mxu0 0.0
    %2987 = vmatpush1.msra.mxu0 0.0
    %2988 = vmatprep.subr.mxu0 0.0
    %2989 = vmatpush1.msra.mxu0 0.0
    %2990 = vmatprep.subr.mxu0 0.0
    %2991 = vmatpush1.msra.mxu0 0.0
    %2992 = vmatprep.subr.mxu0 0.0
    %2993 = vmatpush1.msra.mxu0 0.0
    %2994 = vmatprep.subr.mxu0 0.0
    %2995 = vmatpush1.msra.mxu0 0.0
    %2996 = vmatprep.subr.mxu0 0.0
    %2997 = vmatpush1.msra.mxu0 0.0
    %2998 = vmatprep.subr.mxu0 0.0
    %2999 = vmatpush1.msra.mxu0 0.0
    %3000 = vmatprep.subr.mxu0 0.0
    %3001 = vmatpush1.msra.mxu0 0.0
    %3002 = vmatprep.subr.mxu0 0.0
    %3003 = vmatpush1.msra.mxu0 0.0
    %3004 = vmatprep.subr.mxu0 0.0
    %3005 = vmatpush1.msra.mxu0 0.0
    %3006 = vmatprep.subr.mxu0 0.0
    %3007 = vmatpush1.msra.mxu0 0.0
    %3008 = vmatprep.subr.mxu0 0.0
    %3009 = vmatpush1.msra.mxu0 0.0
    %3010 = vmatprep.subr.mxu0 0.0
    %3011 = vmatpush1.msra.mxu0 0.0
    %3012 = vmatprep.subr.mxu0 0.0
    %3013 = vmatpush1.msra.mxu0 0.0
    %3014 = vmatprep.subr.mxu0 0.0
    %3015 = vmatpush1.msra.mxu0 0.0
    %3016 = vmatprep.subr.mxu0 0.0
    %3017 = vmatpush1.msra.mxu0 0.0
    %3018 = vmatprep.subr.mxu0 0.0
    %3019 = vmatpush1.msra.mxu0 0.0
    %3020 = vmatprep.subr.mxu0 0.0
    %3021 = vmatpush1.msra.mxu0 0.0
    %3022 = vmatprep.subr.mxu0 0.0
    %3023 = vmatpush1.msra.mxu0 0.0
    %3024 = vmatprep.subr.mxu0 0.0
    %3025 = vmatpush1.msra.mxu0 0.0
    %3026 = vmatprep.subr.mxu0 0.0
    %3027 = vmatpush1.msra.mxu0 0.0
    %3028 = vmatprep.subr.mxu0 0.0
    %3029 = vmatpush1.msra.mxu0 0.0
    %3030 = vmatprep.subr.mxu0 0.0
    %3031 = vmatpush1.msra.mxu0 0.0
    %3032 = vmatprep.subr.mxu0 0.0
    %3033 = vmatpush1.msra.mxu0 0.0
    %3034 = vmatprep.subr.mxu0 0.0
    %3035 = vmatpush1.msra.mxu0 0.0
    %3036 = vmatprep.subr.mxu0 0.0
    %3037 = vmatpush1.msra.mxu0 0.0
    %3038 = vmatprep.subr.mxu0 0.0
    %3039 = vmatpush1.msra.mxu0 0.0
    %3040 = vmatprep.subr.mxu0 0.0
    %3041 = vmatpush1.msra.mxu0 0.0
    %3042 = vmatprep.subr.mxu0 0.0
    %3043 = vmatpush1.msra.mxu0 0.0
    %3044 = vmatprep.mubr.f32.mxu0 0.0
    %3045 = vmatmul.mubr.f32.gmra.mrb[0].mxu0 %v2974
    %v3046 = vpop.f32.mrb[0].mxu0
    %v3047 = vadd.f32 %v2970, %v3046
    %v3048 = vpop.f32.mrb[0].mxu0
    %3049 = vdwg.mxu0
    %v3050 = vxor.u32 %v3047, 2147483648
    %v3051 = vmul.f32 %v3050, 1.442695
    %v3052 = vpow.pop %v3051
    %v3053 = vadd.f32 %v3052, 1.0
    %v3054 = vrcp.pop %v3053
    %v3055 = vmul.f32 1.0, %v3054
    %vm3056 = vcmask 1024
    %3057 = vst.msk [vmem:[%s12] sm:$0x3] %vm3056, %v3055
    // Predicated region
    $region58: #{tpu_custom_call.1} parent=1 // pred_check
      _
    $region59: #{tpu_custom_call.1} parent=1 // pred_check_branch
      %3059 = sbr.rel (0) target = $region61
    $region60: #{tpu_custom_call.1} parent=1 // pred_region
      _
    $region61: #{tpu_custom_call.1} parent=1 // pred_fallthru
      _
    // Predicated region
    $region62: #{tpu_custom_call.1} parent=1 // pred_check
      _
    $region63: #{tpu_custom_call.1} parent=1 // pred_check_branch
      %3061 = sbr.rel (0) target = $region65
    $region64: #{tpu_custom_call.1} parent=1 // pred_region
      _
    $region65: #{tpu_custom_call.1} parent=1 // pred_fallthru
      _
    %3062 = vsyncpa [#allocation6], 1
    %3063 = vsyncpa [#allocation8], 1

</llo_original>
